<compile_context>
chip_gen: v5e
topology: v5e:2x2
jax: 0.10.0
libtpu: 0.0.40
codegen_flags: <defaults>
</compile_context>

<pallas_src>
import functools
import numpy as np

import jax
import jax.numpy as jnp
from jax import lax
from jax.experimental import pallas as pl
from jax.experimental.pallas import tpu as pltpu


def _round_up(v, m):
    return ((v + m - 1) // m) * m


def _pick_rows_per_tile(H, max_rows):
    """Largest multiple-of-8 divisor of H that is <= max_rows; else the whole image."""
    if H <= max_rows:
        return H
    best = None
    for r in range(8, max_rows + 1, 8):
        if H % r == 0:
            best = r
    return best if best is not None else H


def _make_convtr_kernel(R, W, C_in_p, C_out, C_out_p):
    """Kernel closure over static sizes. R rows of the input image per grid step."""
    W2 = 2 * W

    def kernel(x_ref, w_ref, ss_ref, o_ref):
        # x_ref:  (1, 1, C_in_p, R+1, 2W+2) bf16  lane-upsampled input rows of this
        #         tile, plus one halo row below and two zero lanes on the right.
        # w_ref:  (4*C_out_p, 4*C_in_p) bf16      K-stacked tap weights, resident.
        # ss_ref: (C_out, 2) f32                  folded BN scale / shift, resident.
        # o_ref:  (1, C_out, R, 4W)               each row holds [even out row | odd out row].
        w = w_ref[...]
        scale = ss_ref[:, 0:1]          # (C_out, 1)
        shift = ss_ref[:, 1:2]
        col = lax.broadcasted_iota(jnp.int32, (1, W2), 1)
        even_col = (col & 1) == 0       # hoisted out of the row loop

        def epilogue(p):
            # fused conv-bias + BatchNorm(eval) + ReLU
            return jnp.maximum(p * scale + shift, 0.0).astype(o_ref.dtype)

        # Static (unrolled) loop over the R input rows of this tile.
        for q in range(R):
            rowa = x_ref[0, 0, :, q, :]          # (C_in_p, 2W+2)  input row i
            rowb = x_ref[0, 0, :, q + 1, :]      # (C_in_p, 2W+2)  row i+1 (halo / zeros)
            # Shifted neighbours are plain lane slices of the zero-padded rows:
            #   a0[l] = x[i,   l//2]     a1[l] = x[i,   l//2 + 1]
            #   b0[l] = x[i+1, l//2]     b1[l] = x[i+1, l//2 + 1]
            stack = jnp.concatenate(
                [rowa[:, 0:W2], rowa[:, 2:W2 + 2],
                 rowb[:, 0:W2], rowb[:, 2:W2 + 2]], axis=0)      # (4*C_in_p, 2W) bf16
            # One MXU matmul covering all 9 taps / 4 output parity planes.
            res = jnp.dot(w, stack, preferred_element_type=jnp.float32)  # (4*C_out_p, 2W)
            # Plane blocks: [p00; p01; p10; p11]; select by output-column parity.
            even_row = jnp.where(even_col,
                                 res[0:C_out],
                                 res[C_out_p:C_out_p + C_out])
            odd_row = jnp.where(even_col,
                                res[2 * C_out_p:2 * C_out_p + C_out],
                                res[3 * C_out_p:3 * C_out_p + C_out])
            o_ref[0, :, q, 0:W2] = epilogue(even_row)       # output row 2i
            o_ref[0, :, q, W2:2 * W2] = epilogue(odd_row)   # output row 2i+1

    return kernel


@functools.partial(jax.jit, static_argnames=("eps", "max_rows_per_tile"))
def convtr_pallas(x, weight, bias, gamma, beta, running_mean, running_var,
                  eps=1e-5, max_rows_per_tile=32):
    """ConvTranspose2d(k=3, s=2, p=1, op=1) + BatchNorm2d(eval) + ReLU.

    x:      (N, C_in, H, W)
    weight: (C_in, C_out, 3, 3)   (PyTorch ConvTranspose2d layout)
    bias, gamma, beta, running_mean, running_var: (C_out,)
    returns (N, C_out, 2H, 2W) in x.dtype
    """
    N, C_in, H, W = x.shape
    C_out = weight.shape[1]
    C_in_p = _round_up(C_in, 8)
    C_out_p = _round_up(C_out, 8)
    R = _pick_rows_per_tile(H, max_rows_per_tile)
    n_tiles = H // R
    W2 = 2 * W

    # ---- fold conv bias + eval-mode BatchNorm into per-channel scale/shift --------
    inv_std = 1.0 / jnp.sqrt(running_var.astype(jnp.float32) + eps)
    scale = gamma.astype(jnp.float32) * inv_std
    shift = (beta.astype(jnp.float32)
             + (bias.astype(jnp.float32) - running_mean.astype(jnp.float32)) * scale)
    ss = jnp.stack([scale, shift], axis=1)                      # (C_out, 2) f32

    # ---- K-stacked tap weights -----------------------------------------------------
    # w_taps[t, co, ci] = weight[ci, co, ky, kx],  t = 3*ky + kx
    w_taps = jnp.transpose(weight, (2, 3, 1, 0)).reshape(9, C_out, C_in)
    w_taps = jnp.pad(w_taps.astype(jnp.float32),
                     ((0, 0), (0, C_out_p - C_out), (0, C_in_p - C_in)))
    # Row blocks = output parity planes [p00, p01, p10, p11];
    # column blocks = stacked inputs [a0=x, a1=x_right, b0=x_down, b1=x_down_right].
    w_all = jnp.zeros((4 * C_out_p, 4 * C_in_p), jnp.float32)
    for plane, sh, tap in [(0, 0, 4),
                           (1, 0, 5), (1, 1, 3),
                           (2, 0, 7), (2, 2, 1),
                           (3, 0, 8), (3, 1, 6), (3, 2, 2), (3, 3, 0)]:
        w_all = w_all.at[plane * C_out_p:(plane + 1) * C_out_p,
                         sh * C_in_p:(sh + 1) * C_in_p].set(w_taps[tap])
    w_all = w_all.astype(jnp.bfloat16)

    # ---- input prep: pad channels, cast bf16, lane-upsample, add halo/boundary ----
    xb = jnp.pad(x.astype(jnp.bfloat16),
                 ((0, 0), (0, C_in_p - C_in), (0, 0), (0, 0)))
    x_up = jnp.repeat(xb, 2, axis=3)                            # (N, C_in_p, H, 2W)
    # one zero row below (bottom boundary / halo of the last tile),
    # two zero lanes on the right (right boundary of the j+1 neighbours)
    x_up = jnp.pad(x_up, ((0, 0), (0, 0), (0, 1), (0, 2)))      # (N, C_in_p, H+1, 2W+2)
    # Overlapping row tiles: tile t = rows [t*R, t*R + R] inclusive (R + 1 rows).
    x_tiles = jnp.stack([x_up[:, :, t * R:t * R + R + 1, :] for t in range(n_tiles)],
                        axis=1)                                  # (N, n_tiles, C_in_p, R+1, 2W+2)

    kernel = _make_convtr_kernel(R, W, C_in_p, C_out, C_out_p)

    out4w = pl.pallas_call(
        kernel,
        out_shape=jax.ShapeDtypeStruct((N, C_out, H, 4 * W), x.dtype),
        grid_spec=pltpu.PrefetchScalarGridSpec(
            num_scalar_prefetch=0,
            grid=(N, n_tiles),
            in_specs=[
                pl.BlockSpec((1, 1, C_in_p, R + 1, W2 + 2), lambda n, t: (n, t, 0, 0, 0)),
                pl.BlockSpec((4 * C_out_p, 4 * C_in_p), lambda n, t: (0, 0)),
                pl.BlockSpec((C_out, 2), lambda n, t: (0, 0)),
            ],
            out_specs=pl.BlockSpec((1, C_out, R, 4 * W), lambda n, t: (n, 0, t, 0)),
        ),
        compiler_params=pltpu.CompilerParams(
            dimension_semantics=("parallel", "parallel"),
            vmem_limit_bytes=32 * 1024 * 1024),
    )(x_tiles, w_all, ss)

    # (N, C_out, H, 4W) -> (N, C_out, 2H, 2W): contiguous split of the last dim = free.
    return out4w.reshape(N, C_out, 2 * H, 2 * W)


def convtr_ref_numpy(x, weight, bias, gamma, beta, running_mean, running_var, eps=1e-5):
    """Independent float64 scatter-form reference of the PyTorch module."""
    x64 = np.asarray(x, np.float64)
    w64 = np.asarray(weight, np.float64)           # (C_in, C_out, 3, 3)
    N, C_in, H, W = x64.shape
    C_out = w64.shape[1]
    Ho, Wo = 2 * H, 2 * W
    out = np.zeros((N, C_out, Ho, Wo), np.float64)
    for ky in range(3):
        for kx in range(3):
            contrib = np.einsum('nchw,co->nohw', x64, w64[:, :, ky, kx])
            oy = 2 * np.arange(H) - 1 + ky
            ox = 2 * np.arange(W) - 1 + kx
            my = (oy >= 0) & (oy < Ho)
            mx = (ox >= 0) & (ox < Wo)
            out[:, :, oy[my][:, None], ox[mx][None, :]] += contrib[:, :, my][:, :, :, mx]
    out += np.asarray(bias, np.float64)[None, :, None, None]
    inv_std = 1.0 / np.sqrt(np.asarray(running_var, np.float64) + eps)
    sc = np.asarray(gamma, np.float64) * inv_std
    out = (out - np.asarray(running_mean, np.float64)[None, :, None, None]) * sc[None, :, None, None] \
        + np.asarray(beta, np.float64)[None, :, None, None]
    return np.maximum(out, 0.0)


if __name__ == "__main__":
    key = jax.random.PRNGKey(0)
    k_x, k_w, k_b, k_g, k_be, k_m, k_v = jax.random.split(key, 7)

    N, C_in, C_out, H, W = 2, 4, 3, 16, 16

    def snap_bf16(a):
        # Snap values to the bf16 grid so the check is insensitive to the bf16 MXU
        # operands (products stay exact; accumulation is f32).
        return a.astype(jnp.bfloat16).astype(jnp.float32)

    x = snap_bf16(jax.random.normal(k_x, (N, C_in, H, W), dtype=jnp.float32))
    bound = 1.0 / (C_in * 9) ** 0.5
    weight = snap_bf16(jax.random.uniform(k_w, (C_in, C_out, 3, 3), jnp.float32, -bound, bound))
    bias = snap_bf16(jax.random.uniform(k_b, (C_out,), jnp.float32, -bound, bound))
    gamma = snap_bf16(jax.random.uniform(k_g, (C_out,), jnp.float32, 0.5, 1.5))
    beta = snap_bf16(0.1 * jax.random.normal(k_be, (C_out,), dtype=jnp.float32))
    running_mean = snap_bf16(0.1 * jax.random.normal(k_m, (C_out,), dtype=jnp.float32))
    running_var = snap_bf16(jax.random.uniform(k_v, (C_out,), jnp.float32, 0.5, 1.5))

    ref = convtr_ref_numpy(x, weight, bias, gamma, beta, running_mean, running_var)

    # Config A: whole-image row tile (n_tiles = 1).
    out_a = jax.block_until_ready(
        convtr_pallas(x, weight, bias, gamma, beta, running_mean, running_var))
    assert out_a.shape == (N, C_out, 2 * H, 2 * W), out_a.shape
    err_a = float(np.max(np.abs(np.asarray(out_a) - ref)))
    assert np.allclose(np.asarray(out_a), ref, atol=1e-4, rtol=1e-4), err_a

    # Config B: spatial row tiling (R = 8 -> 2 row tiles) to exercise the halo path.
    out_b = jax.block_until_ready(
        convtr_pallas(x, weight, bias, gamma, beta, running_mean, running_var,
                      max_rows_per_tile=8))
    err_b = float(np.max(np.abs(np.asarray(out_b) - ref)))
    assert np.allclose(np.asarray(out_b), ref, atol=1e-4, rtol=1e-4), err_b

    print("KERNEL_OK")
</pallas_src>

<mosaic_0001>
module attributes {stable_mosaic.version = 11 : i64} {
  func.func @kernel(%arg0: i32, %arg1: i32, %arg2: memref<1x1x8x17x34xbf16, #tpu.memory_space<vmem>>, %arg3: memref<32x32xbf16, #tpu.memory_space<vmem>>, %arg4: memref<3x2xf32, #tpu.memory_space<vmem>>, %arg5: memref<1x3x16x64xf32, #tpu.memory_space<vmem>>) attributes {dimension_semantics = [#tpu.dimension_semantics<parallel>, #tpu.dimension_semantics<parallel>], iteration_bounds = array<i64: 2, 1>, scalar_prefetch = 0 : i64, scratch_operands = 0 : i64, tpu.core_type = #tpu.core_type<tc>, window_params = [{transform_indices = @transform_0, window_bounds = array<i64: 1, 1, 8, 17, 34>}, {pipeline_mode = #tpu.pipeline_mode<synchronous>, transform_indices = @transform_1, window_bounds = array<i64: 32, 32>}, {pipeline_mode = #tpu.pipeline_mode<synchronous>, transform_indices = @transform_2, window_bounds = array<i64: 3, 2>}, {transform_indices = @transform_3, window_bounds = array<i64: 1, 3, 16, 64>}]} {
    %c0 = arith.constant 0 : index
    %c0_0 = arith.constant 0 : index
    %0 = vector.load %arg3[%c0, %c0_0] : memref<32x32xbf16, #tpu.memory_space<vmem>>, vector<32x32xbf16>
    %c0_1 = arith.constant 0 : index
    %c0_2 = arith.constant 0 : index
    %1 = vector.load %arg4[%c0_1, %c0_2] : memref<3x2xf32, #tpu.memory_space<vmem>>, vector<3x1xf32>
    %c0_3 = arith.constant 0 : index
    %c1 = arith.constant 1 : index
    %2 = vector.load %arg4[%c0_3, %c1] : memref<3x2xf32, #tpu.memory_space<vmem>>, vector<3x1xf32>
    %3 = tpu.iota {dimensions = array<i32: 1>} : vector<1x32xi32>
    %c1_i32 = arith.constant 1 : i32
    %4 = vector.broadcast %c1_i32 : i32 to vector<1x32xi32>
    %5 = arith.andi %3, %4 : vector<1x32xi32>
    %c0_i32 = arith.constant 0 : i32
    %6 = vector.broadcast %c0_i32 : i32 to vector<1x32xi32>
    %7 = arith.cmpi eq, %5, %6 : vector<1x32xi32>
    %c0_4 = arith.constant 0 : index
    %c0_5 = arith.constant 0 : index
    %c0_6 = arith.constant 0 : index
    %c0_7 = arith.constant 0 : index
    %c0_8 = arith.constant 0 : index
    %8 = vector.load %arg2[%c0_4, %c0_5, %c0_6, %c0_7, %c0_8] : memref<1x1x8x17x34xbf16, #tpu.memory_space<vmem>>, vector<1x1x8x1x34xbf16>
    %9 = vector.shape_cast %8 : vector<1x1x8x1x34xbf16> to vector<8x34xbf16>
    %c0_9 = arith.constant 0 : index
    %c0_10 = arith.constant 0 : index
    %c0_11 = arith.constant 0 : index
    %c1_12 = arith.constant 1 : index
    %c0_13 = arith.constant 0 : index
    %10 = vector.load %arg2[%c0_9, %c0_10, %c0_11, %c1_12, %c0_13] : memref<1x1x8x17x34xbf16, #tpu.memory_space<vmem>>, vector<1x1x8x1x34xbf16>
    %11 = vector.shape_cast %10 : vector<1x1x8x1x34xbf16> to vector<8x34xbf16>
    %12 = vector.extract_strided_slice %9 {offsets = [0, 0], sizes = [8, 32], strides = [1, 1]} : vector<8x34xbf16> to vector<8x32xbf16>
    %13 = vector.extract_strided_slice %9 {offsets = [0, 2], sizes = [8, 32], strides = [1, 1]} : vector<8x34xbf16> to vector<8x32xbf16>
    %14 = vector.extract_strided_slice %11 {offsets = [0, 0], sizes = [8, 32], strides = [1, 1]} : vector<8x34xbf16> to vector<8x32xbf16>
    %15 = vector.extract_strided_slice %11 {offsets = [0, 2], sizes = [8, 32], strides = [1, 1]} : vector<8x34xbf16> to vector<8x32xbf16>
    %16 = tpu.concatenate %12, %13, %14, %15 in 0 : vector<8x32xbf16>, vector<8x32xbf16>, vector<8x32xbf16>, vector<8x32xbf16> -> vector<32x32xbf16>
    %cst = arith.constant dense<0.000000e+00> : vector<32x32xf32>
    %17 = tpu.matmul %0, %16, %cst {dimension_numbers = #tpu.dot_dimension_numbers<[1], [0], [0], [1], [0, 0, 1, 1], [], []>} : vector<32x32xbf16>, vector<32x32xbf16>, vector<32x32xf32> -> vector<32x32xf32>
    %18 = vector.extract_strided_slice %17 {offsets = [0, 0], sizes = [3, 32], strides = [1, 1]} : vector<32x32xf32> to vector<3x32xf32>
    %19 = vector.extract_strided_slice %17 {offsets = [8, 0], sizes = [3, 32], strides = [1, 1]} : vector<32x32xf32> to vector<3x32xf32>
    %20 = vector.shape_cast %7 : vector<1x32xi1> to vector<1x32xi1>
    %21 = vector.broadcast %20 : vector<1x32xi1> to vector<3x32xi1>
    %22 = arith.select %21, %18, %19 : vector<3x32xi1>, vector<3x32xf32>
    %23 = vector.extract_strided_slice %17 {offsets = [16, 0], sizes = [3, 32], strides = [1, 1]} : vector<32x32xf32> to vector<3x32xf32>
    %24 = vector.extract_strided_slice %17 {offsets = [24, 0], sizes = [3, 32], strides = [1, 1]} : vector<32x32xf32> to vector<3x32xf32>
    %25 = vector.shape_cast %7 : vector<1x32xi1> to vector<1x32xi1>
    %26 = vector.broadcast %25 : vector<1x32xi1> to vector<3x32xi1>
    %27 = arith.select %26, %23, %24 : vector<3x32xi1>, vector<3x32xf32>
    %28 = vector.broadcast %1 : vector<3x1xf32> to vector<3x32xf32>
    %29 = arith.mulf %22, %28 : vector<3x32xf32>
    %30 = vector.broadcast %2 : vector<3x1xf32> to vector<3x32xf32>
    %31 = arith.addf %29, %30 : vector<3x32xf32>
    %cst_14 = arith.constant 0.000000e+00 : f32
    %32 = vector.broadcast %cst_14 : f32 to vector<3x32xf32>
    %33 = arith.maximumf %31, %32 : vector<3x32xf32>
    %c0_15 = arith.constant 0 : index
    %c0_16 = arith.constant 0 : index
    %c0_17 = arith.constant 0 : index
    %c0_18 = arith.constant 0 : index
    %34 = vector.load %arg5[%c0_15, %c0_16, %c0_17, %c0_18] : memref<1x3x16x64xf32, #tpu.memory_space<vmem>>, vector<1x3x1x32xf32>
    %35 = vector.shape_cast %34 : vector<1x3x1x32xf32> to vector<3x32xf32>
    %36 = vector.shape_cast %33 : vector<3x32xf32> to vector<1x3x1x32xf32>
    tpu.vector_store %arg5[%c0_15, %c0_16, %c0_17, %c0_18], %36 {strides = array<i32>} : memref<1x3x16x64xf32, #tpu.memory_space<vmem>>, vector<1x3x1x32xf32>,
    %37 = vector.broadcast %1 : vector<3x1xf32> to vector<3x32xf32>
    %38 = arith.mulf %27, %37 : vector<3x32xf32>
    %39 = vector.broadcast %2 : vector<3x1xf32> to vector<3x32xf32>
    %40 = arith.addf %38, %39 : vector<3x32xf32>
    %cst_19 = arith.constant 0.000000e+00 : f32
    %41 = vector.broadcast %cst_19 : f32 to vector<3x32xf32>
    %42 = arith.maximumf %40, %41 : vector<3x32xf32>
    %c0_20 = arith.constant 0 : index
    %c0_21 = arith.constant 0 : index
    %c0_22 = arith.constant 0 : index
    %c32 = arith.constant 32 : index
    %43 = vector.load %arg5[%c0_20, %c0_21, %c0_22, %c32] : memref<1x3x16x64xf32, #tpu.memory_space<vmem>>, vector<1x3x1x32xf32>
    %44 = vector.shape_cast %43 : vector<1x3x1x32xf32> to vector<3x32xf32>
    %45 = vector.shape_cast %42 : vector<3x32xf32> to vector<1x3x1x32xf32>
    tpu.vector_store %arg5[%c0_20, %c0_21, %c0_22, %c32], %45 {strides = array<i32>} : memref<1x3x16x64xf32, #tpu.memory_space<vmem>>, vector<1x3x1x32xf32>,
    %c0_23 = arith.constant 0 : index
    %c0_24 = arith.constant 0 : index
    %c0_25 = arith.constant 0 : index
    %c1_26 = arith.constant 1 : index
    %c0_27 = arith.constant 0 : index
    %46 = vector.load %arg2[%c0_23, %c0_24, %c0_25, %c1_26, %c0_27] : memref<1x1x8x17x34xbf16, #tpu.memory_space<vmem>>, vector<1x1x8x1x34xbf16>
    %47 = vector.shape_cast %46 : vector<1x1x8x1x34xbf16> to vector<8x34xbf16>
    %c0_28 = arith.constant 0 : index
    %c0_29 = arith.constant 0 : index
    %c0_30 = arith.constant 0 : index
    %c2 = arith.constant 2 : index
    %c0_31 = arith.constant 0 : index
    %48 = vector.load %arg2[%c0_28, %c0_29, %c0_30, %c2, %c0_31] : memref<1x1x8x17x34xbf16, #tpu.memory_space<vmem>>, vector<1x1x8x1x34xbf16>
    %49 = vector.shape_cast %48 : vector<1x1x8x1x34xbf16> to vector<8x34xbf16>
    %50 = vector.extract_strided_slice %47 {offsets = [0, 0], sizes = [8, 32], strides = [1, 1]} : vector<8x34xbf16> to vector<8x32xbf16>
    %51 = vector.extract_strided_slice %47 {offsets = [0, 2], sizes = [8, 32], strides = [1, 1]} : vector<8x34xbf16> to vector<8x32xbf16>
    %52 = vector.extract_strided_slice %49 {offsets = [0, 0], sizes = [8, 32], strides = [1, 1]} : vector<8x34xbf16> to vector<8x32xbf16>
    %53 = vector.extract_strided_slice %49 {offsets = [0, 2], sizes = [8, 32], strides = [1, 1]} : vector<8x34xbf16> to vector<8x32xbf16>
    %54 = tpu.concatenate %50, %51, %52, %53 in 0 : vector<8x32xbf16>, vector<8x32xbf16>, vector<8x32xbf16>, vector<8x32xbf16> -> vector<32x32xbf16>
    %cst_32 = arith.constant dense<0.000000e+00> : vector<32x32xf32>
    %55 = tpu.matmul %0, %54, %cst_32 {dimension_numbers = #tpu.dot_dimension_numbers<[1], [0], [0], [1], [0, 0, 1, 1], [], []>} : vector<32x32xbf16>, vector<32x32xbf16>, vector<32x32xf32> -> vector<32x32xf32>
    %56 = vector.extract_strided_slice %55 {offsets = [0, 0], sizes = [3, 32], strides = [1, 1]} : vector<32x32xf32> to vector<3x32xf32>
    %57 = vector.extract_strided_slice %55 {offsets = [8, 0], sizes = [3, 32], strides = [1, 1]} : vector<32x32xf32> to vector<3x32xf32>
    %58 = vector.shape_cast %7 : vector<1x32xi1> to vector<1x32xi1>
    %59 = vector.broadcast %58 : vector<1x32xi1> to vector<3x32xi1>
    %60 = arith.select %59, %56, %57 : vector<3x32xi1>, vector<3x32xf32>
    %61 = vector.extract_strided_slice %55 {offsets = [16, 0], sizes = [3, 32], strides = [1, 1]} : vector<32x32xf32> to vector<3x32xf32>
    %62 = vector.extract_strided_slice %55 {offsets = [24, 0], sizes = [3, 32], strides = [1, 1]} : vector<32x32xf32> to vector<3x32xf32>
    %63 = vector.shape_cast %7 : vector<1x32xi1> to vector<1x32xi1>
    %64 = vector.broadcast %63 : vector<1x32xi1> to vector<3x32xi1>
    %65 = arith.select %64, %61, %62 : vector<3x32xi1>, vector<3x32xf32>
    %66 = vector.broadcast %1 : vector<3x1xf32> to vector<3x32xf32>
    %67 = arith.mulf %60, %66 : vector<3x32xf32>
    %68 = vector.broadcast %2 : vector<3x1xf32> to vector<3x32xf32>
    %69 = arith.addf %67, %68 : vector<3x32xf32>
    %cst_33 = arith.constant 0.000000e+00 : f32
    %70 = vector.broadcast %cst_33 : f32 to vector<3x32xf32>
    %71 = arith.maximumf %69, %70 : vector<3x32xf32>
    %c0_34 = arith.constant 0 : index
    %c0_35 = arith.constant 0 : index
    %c1_36 = arith.constant 1 : index
    %c0_37 = arith.constant 0 : index
    %72 = vector.load %arg5[%c0_34, %c0_35, %c1_36, %c0_37] : memref<1x3x16x64xf32, #tpu.memory_space<vmem>>, vector<1x3x1x32xf32>
    %73 = vector.shape_cast %72 : vector<1x3x1x32xf32> to vector<3x32xf32>
    %74 = vector.shape_cast %71 : vector<3x32xf32> to vector<1x3x1x32xf32>
    tpu.vector_store %arg5[%c0_34, %c0_35, %c1_36, %c0_37], %74 {strides = array<i32>} : memref<1x3x16x64xf32, #tpu.memory_space<vmem>>, vector<1x3x1x32xf32>,
    %75 = vector.broadcast %1 : vector<3x1xf32> to vector<3x32xf32>
    %76 = arith.mulf %65, %75 : vector<3x32xf32>
    %77 = vector.broadcast %2 : vector<3x1xf32> to vector<3x32xf32>
    %78 = arith.addf %76, %77 : vector<3x32xf32>
    %cst_38 = arith.constant 0.000000e+00 : f32
    %79 = vector.broadcast %cst_38 : f32 to vector<3x32xf32>
    %80 = arith.maximumf %78, %79 : vector<3x32xf32>
    %c0_39 = arith.constant 0 : index
    %c0_40 = arith.constant 0 : index
    %c1_41 = arith.constant 1 : index
    %c32_42 = arith.constant 32 : index
    %81 = vector.load %arg5[%c0_39, %c0_40, %c1_41, %c32_42] : memref<1x3x16x64xf32, #tpu.memory_space<vmem>>, vector<1x3x1x32xf32>
    %82 = vector.shape_cast %81 : vector<1x3x1x32xf32> to vector<3x32xf32>
    %83 = vector.shape_cast %80 : vector<3x32xf32> to vector<1x3x1x32xf32>
    tpu.vector_store %arg5[%c0_39, %c0_40, %c1_41, %c32_42], %83 {strides = array<i32>} : memref<1x3x16x64xf32, #tpu.memory_space<vmem>>, vector<1x3x1x32xf32>,
    %c0_43 = arith.constant 0 : index
    %c0_44 = arith.constant 0 : index
    %c0_45 = arith.constant 0 : index
    %c2_46 = arith.constant 2 : index
    %c0_47 = arith.constant 0 : index
    %84 = vector.load %arg2[%c0_43, %c0_44, %c0_45, %c2_46, %c0_47] : memref<1x1x8x17x34xbf16, #tpu.memory_space<vmem>>, vector<1x1x8x1x34xbf16>
    %85 = vector.shape_cast %84 : vector<1x1x8x1x34xbf16> to vector<8x34xbf16>
    %c0_48 = arith.constant 0 : index
    %c0_49 = arith.constant 0 : index
    %c0_50 = arith.constant 0 : index
    %c3 = arith.constant 3 : index
    %c0_51 = arith.constant 0 : index
    %86 = vector.load %arg2[%c0_48, %c0_49, %c0_50, %c3, %c0_51] : memref<1x1x8x17x34xbf16, #tpu.memory_space<vmem>>, vector<1x1x8x1x34xbf16>
    %87 = vector.shape_cast %86 : vector<1x1x8x1x34xbf16> to vector<8x34xbf16>
    %88 = vector.extract_strided_slice %85 {offsets = [0, 0], sizes = [8, 32], strides = [1, 1]} : vector<8x34xbf16> to vector<8x32xbf16>
    %89 = vector.extract_strided_slice %85 {offsets = [0, 2], sizes = [8, 32], strides = [1, 1]} : vector<8x34xbf16> to vector<8x32xbf16>
    %90 = vector.extract_strided_slice %87 {offsets = [0, 0], sizes = [8, 32], strides = [1, 1]} : vector<8x34xbf16> to vector<8x32xbf16>
    %91 = vector.extract_strided_slice %87 {offsets = [0, 2], sizes = [8, 32], strides = [1, 1]} : vector<8x34xbf16> to vector<8x32xbf16>
    %92 = tpu.concatenate %88, %89, %90, %91 in 0 : vector<8x32xbf16>, vector<8x32xbf16>, vector<8x32xbf16>, vector<8x32xbf16> -> vector<32x32xbf16>
    %cst_52 = arith.constant dense<0.000000e+00> : vector<32x32xf32>
    %93 = tpu.matmul %0, %92, %cst_52 {dimension_numbers = #tpu.dot_dimension_numbers<[1], [0], [0], [1], [0, 0, 1, 1], [], []>} : vector<32x32xbf16>, vector<32x32xbf16>, vector<32x32xf32> -> vector<32x32xf32>
    %94 = vector.extract_strided_slice %93 {offsets = [0, 0], sizes = [3, 32], strides = [1, 1]} : vector<32x32xf32> to vector<3x32xf32>
    %95 = vector.extract_strided_slice %93 {offsets = [8, 0], sizes = [3, 32], strides = [1, 1]} : vector<32x32xf32> to vector<3x32xf32>
    %96 = vector.shape_cast %7 : vector<1x32xi1> to vector<1x32xi1>
    %97 = vector.broadcast %96 : vector<1x32xi1> to vector<3x32xi1>
    %98 = arith.select %97, %94, %95 : vector<3x32xi1>, vector<3x32xf32>
    %99 = vector.extract_strided_slice %93 {offsets = [16, 0], sizes = [3, 32], strides = [1, 1]} : vector<32x32xf32> to vector<3x32xf32>
    %100 = vector.extract_strided_slice %93 {offsets = [24, 0], sizes = [3, 32], strides = [1, 1]} : vector<32x32xf32> to vector<3x32xf32>
    %101 = vector.shape_cast %7 : vector<1x32xi1> to vector<1x32xi1>
    %102 = vector.broadcast %101 : vector<1x32xi1> to vector<3x32xi1>
    %103 = arith.select %102, %99, %100 : vector<3x32xi1>, vector<3x32xf32>
    %104 = vector.broadcast %1 : vector<3x1xf32> to vector<3x32xf32>
    %105 = arith.mulf %98, %104 : vector<3x32xf32>
    %106 = vector.broadcast %2 : vector<3x1xf32> to vector<3x32xf32>
    %107 = arith.addf %105, %106 : vector<3x32xf32>
    %cst_53 = arith.constant 0.000000e+00 : f32
    %108 = vector.broadcast %cst_53 : f32 to vector<3x32xf32>
    %109 = arith.maximumf %107, %108 : vector<3x32xf32>
    %c0_54 = arith.constant 0 : index
    %c0_55 = arith.constant 0 : index
    %c2_56 = arith.constant 2 : index
    %c0_57 = arith.constant 0 : index
    %110 = vector.load %arg5[%c0_54, %c0_55, %c2_56, %c0_57] : memref<1x3x16x64xf32, #tpu.memory_space<vmem>>, vector<1x3x1x32xf32>
    %111 = vector.shape_cast %110 : vector<1x3x1x32xf32> to vector<3x32xf32>
    %112 = vector.shape_cast %109 : vector<3x32xf32> to vector<1x3x1x32xf32>
    tpu.vector_store %arg5[%c0_54, %c0_55, %c2_56, %c0_57], %112 {strides = array<i32>} : memref<1x3x16x64xf32, #tpu.memory_space<vmem>>, vector<1x3x1x32xf32>,
    %113 = vector.broadcast %1 : vector<3x1xf32> to vector<3x32xf32>
    %114 = arith.mulf %103, %113 : vector<3x32xf32>
    %115 = vector.broadcast %2 : vector<3x1xf32> to vector<3x32xf32>
    %116 = arith.addf %114, %115 : vector<3x32xf32>
    %cst_58 = arith.constant 0.000000e+00 : f32
    %117 = vector.broadcast %cst_58 : f32 to vector<3x32xf32>
    %118 = arith.maximumf %116, %117 : vector<3x32xf32>
    %c0_59 = arith.constant 0 : index
    %c0_60 = arith.constant 0 : index
    %c2_61 = arith.constant 2 : index
    %c32_62 = arith.constant 32 : index
    %119 = vector.load %arg5[%c0_59, %c0_60, %c2_61, %c32_62] : memref<1x3x16x64xf32, #tpu.memory_space<vmem>>, vector<1x3x1x32xf32>
    %120 = vector.shape_cast %119 : vector<1x3x1x32xf32> to vector<3x32xf32>
    %121 = vector.shape_cast %118 : vector<3x32xf32> to vector<1x3x1x32xf32>
    tpu.vector_store %arg5[%c0_59, %c0_60, %c2_61, %c32_62], %121 {strides = array<i32>} : memref<1x3x16x64xf32, #tpu.memory_space<vmem>>, vector<1x3x1x32xf32>,
    %c0_63 = arith.constant 0 : index
    %c0_64 = arith.constant 0 : index
    %c0_65 = arith.constant 0 : index
    %c3_66 = arith.constant 3 : index
    %c0_67 = arith.constant 0 : index
    %122 = vector.load %arg2[%c0_63, %c0_64, %c0_65, %c3_66, %c0_67] : memref<1x1x8x17x34xbf16, #tpu.memory_space<vmem>>, vector<1x1x8x1x34xbf16>
    %123 = vector.shape_cast %122 : vector<1x1x8x1x34xbf16> to vector<8x34xbf16>
    %c0_68 = arith.constant 0 : index
    %c0_69 = arith.constant 0 : index
    %c0_70 = arith.constant 0 : index
    %c4 = arith.constant 4 : index
    %c0_71 = arith.constant 0 : index
    %124 = vector.load %arg2[%c0_68, %c0_69, %c0_70, %c4, %c0_71] : memref<1x1x8x17x34xbf16, #tpu.memory_space<vmem>>, vector<1x1x8x1x34xbf16>
    %125 = vector.shape_cast %124 : vector<1x1x8x1x34xbf16> to vector<8x34xbf16>
    %126 = vector.extract_strided_slice %123 {offsets = [0, 0], sizes = [8, 32], strides = [1, 1]} : vector<8x34xbf16> to vector<8x32xbf16>
    %127 = vector.extract_strided_slice %123 {offsets = [0, 2], sizes = [8, 32], strides = [1, 1]} : vector<8x34xbf16> to vector<8x32xbf16>
    %128 = vector.extract_strided_slice %125 {offsets = [0, 0], sizes = [8, 32], strides = [1, 1]} : vector<8x34xbf16> to vector<8x32xbf16>
    %129 = vector.extract_strided_slice %125 {offsets = [0, 2], sizes = [8, 32], strides = [1, 1]} : vector<8x34xbf16> to vector<8x32xbf16>
    %130 = tpu.concatenate %126, %127, %128, %129 in 0 : vector<8x32xbf16>, vector<8x32xbf16>, vector<8x32xbf16>, vector<8x32xbf16> -> vector<32x32xbf16>
    %cst_72 = arith.constant dense<0.000000e+00> : vector<32x32xf32>
    %131 = tpu.matmul %0, %130, %cst_72 {dimension_numbers = #tpu.dot_dimension_numbers<[1], [0], [0], [1], [0, 0, 1, 1], [], []>} : vector<32x32xbf16>, vector<32x32xbf16>, vector<32x32xf32> -> vector<32x32xf32>
    %132 = vector.extract_strided_slice %131 {offsets = [0, 0], sizes = [3, 32], strides = [1, 1]} : vector<32x32xf32> to vector<3x32xf32>
    %133 = vector.extract_strided_slice %131 {offsets = [8, 0], sizes = [3, 32], strides = [1, 1]} : vector<32x32xf32> to vector<3x32xf32>
    %134 = vector.shape_cast %7 : vector<1x32xi1> to vector<1x32xi1>
    %135 = vector.broadcast %134 : vector<1x32xi1> to vector<3x32xi1>
    %136 = arith.select %135, %132, %133 : vector<3x32xi1>, vector<3x32xf32>
    %137 = vector.extract_strided_slice %131 {offsets = [16, 0], sizes = [3, 32], strides = [1, 1]} : vector<32x32xf32> to vector<3x32xf32>
    %138 = vector.extract_strided_slice %131 {offsets = [24, 0], sizes = [3, 32], strides = [1, 1]} : vector<32x32xf32> to vector<3x32xf32>
    %139 = vector.shape_cast %7 : vector<1x32xi1> to vector<1x32xi1>
    %140 = vector.broadcast %139 : vector<1x32xi1> to vector<3x32xi1>
    %141 = arith.select %140, %137, %138 : vector<3x32xi1>, vector<3x32xf32>
    %142 = vector.broadcast %1 : vector<3x1xf32> to vector<3x32xf32>
    %143 = arith.mulf %136, %142 : vector<3x32xf32>
    %144 = vector.broadcast %2 : vector<3x1xf32> to vector<3x32xf32>
    %145 = arith.addf %143, %144 : vector<3x32xf32>
    %cst_73 = arith.constant 0.000000e+00 : f32
    %146 = vector.broadcast %cst_73 : f32 to vector<3x32xf32>
    %147 = arith.maximumf %145, %146 : vector<3x32xf32>
    %c0_74 = arith.constant 0 : index
    %c0_75 = arith.constant 0 : index
    %c3_76 = arith.constant 3 : index
    %c0_77 = arith.constant 0 : index
    %148 = vector.load %arg5[%c0_74, %c0_75, %c3_76, %c0_77] : memref<1x3x16x64xf32, #tpu.memory_space<vmem>>, vector<1x3x1x32xf32>
    %149 = vector.shape_cast %148 : vector<1x3x1x32xf32> to vector<3x32xf32>
    %150 = vector.shape_cast %147 : vector<3x32xf32> to vector<1x3x1x32xf32>
    tpu.vector_store %arg5[%c0_74, %c0_75, %c3_76, %c0_77], %150 {strides = array<i32>} : memref<1x3x16x64xf32, #tpu.memory_space<vmem>>, vector<1x3x1x32xf32>,
    %151 = vector.broadcast %1 : vector<3x1xf32> to vector<3x32xf32>
    %152 = arith.mulf %141, %151 : vector<3x32xf32>
    %153 = vector.broadcast %2 : vector<3x1xf32> to vector<3x32xf32>
    %154 = arith.addf %152, %153 : vector<3x32xf32>
    %cst_78 = arith.constant 0.000000e+00 : f32
    %155 = vector.broadcast %cst_78 : f32 to vector<3x32xf32>
    %156 = arith.maximumf %154, %155 : vector<3x32xf32>
    %c0_79 = arith.constant 0 : index
    %c0_80 = arith.constant 0 : index
    %c3_81 = arith.constant 3 : index
    %c32_82 = arith.constant 32 : index
    %157 = vector.load %arg5[%c0_79, %c0_80, %c3_81, %c32_82] : memref<1x3x16x64xf32, #tpu.memory_space<vmem>>, vector<1x3x1x32xf32>
    %158 = vector.shape_cast %157 : vector<1x3x1x32xf32> to vector<3x32xf32>
    %159 = vector.shape_cast %156 : vector<3x32xf32> to vector<1x3x1x32xf32>
    tpu.vector_store %arg5[%c0_79, %c0_80, %c3_81, %c32_82], %159 {strides = array<i32>} : memref<1x3x16x64xf32, #tpu.memory_space<vmem>>, vector<1x3x1x32xf32>,
    %c0_83 = arith.constant 0 : index
    %c0_84 = arith.constant 0 : index
    %c0_85 = arith.constant 0 : index
    %c4_86 = arith.constant 4 : index
    %c0_87 = arith.constant 0 : index
    %160 = vector.load %arg2[%c0_83, %c0_84, %c0_85, %c4_86, %c0_87] : memref<1x1x8x17x34xbf16, #tpu.memory_space<vmem>>, vector<1x1x8x1x34xbf16>
    %161 = vector.shape_cast %160 : vector<1x1x8x1x34xbf16> to vector<8x34xbf16>
    %c0_88 = arith.constant 0 : index
    %c0_89 = arith.constant 0 : index
    %c0_90 = arith.constant 0 : index
    %c5 = arith.constant 5 : index
    %c0_91 = arith.constant 0 : index
    %162 = vector.load %arg2[%c0_88, %c0_89, %c0_90, %c5, %c0_91] : memref<1x1x8x17x34xbf16, #tpu.memory_space<vmem>>, vector<1x1x8x1x34xbf16>
    %163 = vector.shape_cast %162 : vector<1x1x8x1x34xbf16> to vector<8x34xbf16>
    %164 = vector.extract_strided_slice %161 {offsets = [0, 0], sizes = [8, 32], strides = [1, 1]} : vector<8x34xbf16> to vector<8x32xbf16>
    %165 = vector.extract_strided_slice %161 {offsets = [0, 2], sizes = [8, 32], strides = [1, 1]} : vector<8x34xbf16> to vector<8x32xbf16>
    %166 = vector.extract_strided_slice %163 {offsets = [0, 0], sizes = [8, 32], strides = [1, 1]} : vector<8x34xbf16> to vector<8x32xbf16>
    %167 = vector.extract_strided_slice %163 {offsets = [0, 2], sizes = [8, 32], strides = [1, 1]} : vector<8x34xbf16> to vector<8x32xbf16>
    %168 = tpu.concatenate %164, %165, %166, %167 in 0 : vector<8x32xbf16>, vector<8x32xbf16>, vector<8x32xbf16>, vector<8x32xbf16> -> vector<32x32xbf16>
    %cst_92 = arith.constant dense<0.000000e+00> : vector<32x32xf32>
    %169 = tpu.matmul %0, %168, %cst_92 {dimension_numbers = #tpu.dot_dimension_numbers<[1], [0], [0], [1], [0, 0, 1, 1], [], []>} : vector<32x32xbf16>, vector<32x32xbf16>, vector<32x32xf32> -> vector<32x32xf32>
    %170 = vector.extract_strided_slice %169 {offsets = [0, 0], sizes = [3, 32], strides = [1, 1]} : vector<32x32xf32> to vector<3x32xf32>
    %171 = vector.extract_strided_slice %169 {offsets = [8, 0], sizes = [3, 32], strides = [1, 1]} : vector<32x32xf32> to vector<3x32xf32>
    %172 = vector.shape_cast %7 : vector<1x32xi1> to vector<1x32xi1>
    %173 = vector.broadcast %172 : vector<1x32xi1> to vector<3x32xi1>
    %174 = arith.select %173, %170, %171 : vector<3x32xi1>, vector<3x32xf32>
    %175 = vector.extract_strided_slice %169 {offsets = [16, 0], sizes = [3, 32], strides = [1, 1]} : vector<32x32xf32> to vector<3x32xf32>
    %176 = vector.extract_strided_slice %169 {offsets = [24, 0], sizes = [3, 32], strides = [1, 1]} : vector<32x32xf32> to vector<3x32xf32>
    %177 = vector.shape_cast %7 : vector<1x32xi1> to vector<1x32xi1>
    %178 = vector.broadcast %177 : vector<1x32xi1> to vector<3x32xi1>
    %179 = arith.select %178, %175, %176 : vector<3x32xi1>, vector<3x32xf32>
    %180 = vector.broadcast %1 : vector<3x1xf32> to vector<3x32xf32>
    %181 = arith.mulf %174, %180 : vector<3x32xf32>
    %182 = vector.broadcast %2 : vector<3x1xf32> to vector<3x32xf32>
    %183 = arith.addf %181, %182 : vector<3x32xf32>
    %cst_93 = arith.constant 0.000000e+00 : f32
    %184 = vector.broadcast %cst_93 : f32 to vector<3x32xf32>
    %185 = arith.maximumf %183, %184 : vector<3x32xf32>
    %c0_94 = arith.constant 0 : index
    %c0_95 = arith.constant 0 : index
    %c4_96 = arith.constant 4 : index
    %c0_97 = arith.constant 0 : index
    %186 = vector.load %arg5[%c0_94, %c0_95, %c4_96, %c0_97] : memref<1x3x16x64xf32, #tpu.memory_space<vmem>>, vector<1x3x1x32xf32>
    %187 = vector.shape_cast %186 : vector<1x3x1x32xf32> to vector<3x32xf32>
    %188 = vector.shape_cast %185 : vector<3x32xf32> to vector<1x3x1x32xf32>
    tpu.vector_store %arg5[%c0_94, %c0_95, %c4_96, %c0_97], %188 {strides = array<i32>} : memref<1x3x16x64xf32, #tpu.memory_space<vmem>>, vector<1x3x1x32xf32>,
    %189 = vector.broadcast %1 : vector<3x1xf32> to vector<3x32xf32>
    %190 = arith.mulf %179, %189 : vector<3x32xf32>
    %191 = vector.broadcast %2 : vector<3x1xf32> to vector<3x32xf32>
    %192 = arith.addf %190, %191 : vector<3x32xf32>
    %cst_98 = arith.constant 0.000000e+00 : f32
    %193 = vector.broadcast %cst_98 : f32 to vector<3x32xf32>
    %194 = arith.maximumf %192, %193 : vector<3x32xf32>
    %c0_99 = arith.constant 0 : index
    %c0_100 = arith.constant 0 : index
    %c4_101 = arith.constant 4 : index
    %c32_102 = arith.constant 32 : index
    %195 = vector.load %arg5[%c0_99, %c0_100, %c4_101, %c32_102] : memref<1x3x16x64xf32, #tpu.memory_space<vmem>>, vector<1x3x1x32xf32>
    %196 = vector.shape_cast %195 : vector<1x3x1x32xf32> to vector<3x32xf32>
    %197 = vector.shape_cast %194 : vector<3x32xf32> to vector<1x3x1x32xf32>
    tpu.vector_store %arg5[%c0_99, %c0_100, %c4_101, %c32_102], %197 {strides = array<i32>} : memref<1x3x16x64xf32, #tpu.memory_space<vmem>>, vector<1x3x1x32xf32>,
    %c0_103 = arith.constant 0 : index
    %c0_104 = arith.constant 0 : index
    %c0_105 = arith.constant 0 : index
    %c5_106 = arith.constant 5 : index
    %c0_107 = arith.constant 0 : index
    %198 = vector.load %arg2[%c0_103, %c0_104, %c0_105, %c5_106, %c0_107] : memref<1x1x8x17x34xbf16, #tpu.memory_space<vmem>>, vector<1x1x8x1x34xbf16>
    %199 = vector.shape_cast %198 : vector<1x1x8x1x34xbf16> to vector<8x34xbf16>
    %c0_108 = arith.constant 0 : index
    %c0_109 = arith.constant 0 : index
    %c0_110 = arith.constant 0 : index
    %c6 = arith.constant 6 : index
    %c0_111 = arith.constant 0 : index
    %200 = vector.load %arg2[%c0_108, %c0_109, %c0_110, %c6, %c0_111] : memref<1x1x8x17x34xbf16, #tpu.memory_space<vmem>>, vector<1x1x8x1x34xbf16>
    %201 = vector.shape_cast %200 : vector<1x1x8x1x34xbf16> to vector<8x34xbf16>
    %202 = vector.extract_strided_slice %199 {offsets = [0, 0], sizes = [8, 32], strides = [1, 1]} : vector<8x34xbf16> to vector<8x32xbf16>
    %203 = vector.extract_strided_slice %199 {offsets = [0, 2], sizes = [8, 32], strides = [1, 1]} : vector<8x34xbf16> to vector<8x32xbf16>
    %204 = vector.extract_strided_slice %201 {offsets = [0, 0], sizes = [8, 32], strides = [1, 1]} : vector<8x34xbf16> to vector<8x32xbf16>
    %205 = vector.extract_strided_slice %201 {offsets = [0, 2], sizes = [8, 32], strides = [1, 1]} : vector<8x34xbf16> to vector<8x32xbf16>
    %206 = tpu.concatenate %202, %203, %204, %205 in 0 : vector<8x32xbf16>, vector<8x32xbf16>, vector<8x32xbf16>, vector<8x32xbf16> -> vector<32x32xbf16>
    %cst_112 = arith.constant dense<0.000000e+00> : vector<32x32xf32>
    %207 = tpu.matmul %0, %206, %cst_112 {dimension_numbers = #tpu.dot_dimension_numbers<[1], [0], [0], [1], [0, 0, 1, 1], [], []>} : vector<32x32xbf16>, vector<32x32xbf16>, vector<32x32xf32> -> vector<32x32xf32>
    %208 = vector.extract_strided_slice %207 {offsets = [0, 0], sizes = [3, 32], strides = [1, 1]} : vector<32x32xf32> to vector<3x32xf32>
    %209 = vector.extract_strided_slice %207 {offsets = [8, 0], sizes = [3, 32], strides = [1, 1]} : vector<32x32xf32> to vector<3x32xf32>
    %210 = vector.shape_cast %7 : vector<1x32xi1> to vector<1x32xi1>
    %211 = vector.broadcast %210 : vector<1x32xi1> to vector<3x32xi1>
    %212 = arith.select %211, %208, %209 : vector<3x32xi1>, vector<3x32xf32>
    %213 = vector.extract_strided_slice %207 {offsets = [16, 0], sizes = [3, 32], strides = [1, 1]} : vector<32x32xf32> to vector<3x32xf32>
    %214 = vector.extract_strided_slice %207 {offsets = [24, 0], sizes = [3, 32], strides = [1, 1]} : vector<32x32xf32> to vector<3x32xf32>
    %215 = vector.shape_cast %7 : vector<1x32xi1> to vector<1x32xi1>
    %216 = vector.broadcast %215 : vector<1x32xi1> to vector<3x32xi1>
    %217 = arith.select %216, %213, %214 : vector<3x32xi1>, vector<3x32xf32>
    %218 = vector.broadcast %1 : vector<3x1xf32> to vector<3x32xf32>
    %219 = arith.mulf %212, %218 : vector<3x32xf32>
    %220 = vector.broadcast %2 : vector<3x1xf32> to vector<3x32xf32>
    %221 = arith.addf %219, %220 : vector<3x32xf32>
    %cst_113 = arith.constant 0.000000e+00 : f32
    %222 = vector.broadcast %cst_113 : f32 to vector<3x32xf32>
    %223 = arith.maximumf %221, %222 : vector<3x32xf32>
    %c0_114 = arith.constant 0 : index
    %c0_115 = arith.constant 0 : index
    %c5_116 = arith.constant 5 : index
    %c0_117 = arith.constant 0 : index
    %224 = vector.load %arg5[%c0_114, %c0_115, %c5_116, %c0_117] : memref<1x3x16x64xf32, #tpu.memory_space<vmem>>, vector<1x3x1x32xf32>
    %225 = vector.shape_cast %224 : vector<1x3x1x32xf32> to vector<3x32xf32>
    %226 = vector.shape_cast %223 : vector<3x32xf32> to vector<1x3x1x32xf32>
    tpu.vector_store %arg5[%c0_114, %c0_115, %c5_116, %c0_117], %226 {strides = array<i32>} : memref<1x3x16x64xf32, #tpu.memory_space<vmem>>, vector<1x3x1x32xf32>,
    %227 = vector.broadcast %1 : vector<3x1xf32> to vector<3x32xf32>
    %228 = arith.mulf %217, %227 : vector<3x32xf32>
    %229 = vector.broadcast %2 : vector<3x1xf32> to vector<3x32xf32>
    %230 = arith.addf %228, %229 : vector<3x32xf32>
    %cst_118 = arith.constant 0.000000e+00 : f32
    %231 = vector.broadcast %cst_118 : f32 to vector<3x32xf32>
    %232 = arith.maximumf %230, %231 : vector<3x32xf32>
    %c0_119 = arith.constant 0 : index
    %c0_120 = arith.constant 0 : index
    %c5_121 = arith.constant 5 : index
    %c32_122 = arith.constant 32 : index
    %233 = vector.load %arg5[%c0_119, %c0_120, %c5_121, %c32_122] : memref<1x3x16x64xf32, #tpu.memory_space<vmem>>, vector<1x3x1x32xf32>
    %234 = vector.shape_cast %233 : vector<1x3x1x32xf32> to vector<3x32xf32>
    %235 = vector.shape_cast %232 : vector<3x32xf32> to vector<1x3x1x32xf32>
    tpu.vector_store %arg5[%c0_119, %c0_120, %c5_121, %c32_122], %235 {strides = array<i32>} : memref<1x3x16x64xf32, #tpu.memory_space<vmem>>, vector<1x3x1x32xf32>,
    %c0_123 = arith.constant 0 : index
    %c0_124 = arith.constant 0 : index
    %c0_125 = arith.constant 0 : index
    %c6_126 = arith.constant 6 : index
    %c0_127 = arith.constant 0 : index
    %236 = vector.load %arg2[%c0_123, %c0_124, %c0_125, %c6_126, %c0_127] : memref<1x1x8x17x34xbf16, #tpu.memory_space<vmem>>, vector<1x1x8x1x34xbf16>
    %237 = vector.shape_cast %236 : vector<1x1x8x1x34xbf16> to vector<8x34xbf16>
    %c0_128 = arith.constant 0 : index
    %c0_129 = arith.constant 0 : index
    %c0_130 = arith.constant 0 : index
    %c7 = arith.constant 7 : index
    %c0_131 = arith.constant 0 : index
    %238 = vector.load %arg2[%c0_128, %c0_129, %c0_130, %c7, %c0_131] : memref<1x1x8x17x34xbf16, #tpu.memory_space<vmem>>, vector<1x1x8x1x34xbf16>
    %239 = vector.shape_cast %238 : vector<1x1x8x1x34xbf16> to vector<8x34xbf16>
    %240 = vector.extract_strided_slice %237 {offsets = [0, 0], sizes = [8, 32], strides = [1, 1]} : vector<8x34xbf16> to vector<8x32xbf16>
    %241 = vector.extract_strided_slice %237 {offsets = [0, 2], sizes = [8, 32], strides = [1, 1]} : vector<8x34xbf16> to vector<8x32xbf16>
    %242 = vector.extract_strided_slice %239 {offsets = [0, 0], sizes = [8, 32], strides = [1, 1]} : vector<8x34xbf16> to vector<8x32xbf16>
    %243 = vector.extract_strided_slice %239 {offsets = [0, 2], sizes = [8, 32], strides = [1, 1]} : vector<8x34xbf16> to vector<8x32xbf16>
    %244 = tpu.concatenate %240, %241, %242, %243 in 0 : vector<8x32xbf16>, vector<8x32xbf16>, vector<8x32xbf16>, vector<8x32xbf16> -> vector<32x32xbf16>
    %cst_132 = arith.constant dense<0.000000e+00> : vector<32x32xf32>
    %245 = tpu.matmul %0, %244, %cst_132 {dimension_numbers = #tpu.dot_dimension_numbers<[1], [0], [0], [1], [0, 0, 1, 1], [], []>} : vector<32x32xbf16>, vector<32x32xbf16>, vector<32x32xf32> -> vector<32x32xf32>
    %246 = vector.extract_strided_slice %245 {offsets = [0, 0], sizes = [3, 32], strides = [1, 1]} : vector<32x32xf32> to vector<3x32xf32>
    %247 = vector.extract_strided_slice %245 {offsets = [8, 0], sizes = [3, 32], strides = [1, 1]} : vector<32x32xf32> to vector<3x32xf32>
    %248 = vector.shape_cast %7 : vector<1x32xi1> to vector<1x32xi1>
    %249 = vector.broadcast %248 : vector<1x32xi1> to vector<3x32xi1>
    %250 = arith.select %249, %246, %247 : vector<3x32xi1>, vector<3x32xf32>
    %251 = vector.extract_strided_slice %245 {offsets = [16, 0], sizes = [3, 32], strides = [1, 1]} : vector<32x32xf32> to vector<3x32xf32>
    %252 = vector.extract_strided_slice %245 {offsets = [24, 0], sizes = [3, 32], strides = [1, 1]} : vector<32x32xf32> to vector<3x32xf32>
    %253 = vector.shape_cast %7 : vector<1x32xi1> to vector<1x32xi1>
    %254 = vector.broadcast %253 : vector<1x32xi1> to vector<3x32xi1>
    %255 = arith.select %254, %251, %252 : vector<3x32xi1>, vector<3x32xf32>
    %256 = vector.broadcast %1 : vector<3x1xf32> to vector<3x32xf32>
    %257 = arith.mulf %250, %256 : vector<3x32xf32>
    %258 = vector.broadcast %2 : vector<3x1xf32> to vector<3x32xf32>
    %259 = arith.addf %257, %258 : vector<3x32xf32>
    %cst_133 = arith.constant 0.000000e+00 : f32
    %260 = vector.broadcast %cst_133 : f32 to vector<3x32xf32>
    %261 = arith.maximumf %259, %260 : vector<3x32xf32>
    %c0_134 = arith.constant 0 : index
    %c0_135 = arith.constant 0 : index
    %c6_136 = arith.constant 6 : index
    %c0_137 = arith.constant 0 : index
    %262 = vector.load %arg5[%c0_134, %c0_135, %c6_136, %c0_137] : memref<1x3x16x64xf32, #tpu.memory_space<vmem>>, vector<1x3x1x32xf32>
    %263 = vector.shape_cast %262 : vector<1x3x1x32xf32> to vector<3x32xf32>
    %264 = vector.shape_cast %261 : vector<3x32xf32> to vector<1x3x1x32xf32>
    tpu.vector_store %arg5[%c0_134, %c0_135, %c6_136, %c0_137], %264 {strides = array<i32>} : memref<1x3x16x64xf32, #tpu.memory_space<vmem>>, vector<1x3x1x32xf32>,
    %265 = vector.broadcast %1 : vector<3x1xf32> to vector<3x32xf32>
    %266 = arith.mulf %255, %265 : vector<3x32xf32>
    %267 = vector.broadcast %2 : vector<3x1xf32> to vector<3x32xf32>
    %268 = arith.addf %266, %267 : vector<3x32xf32>
    %cst_138 = arith.constant 0.000000e+00 : f32
    %269 = vector.broadcast %cst_138 : f32 to vector<3x32xf32>
    %270 = arith.maximumf %268, %269 : vector<3x32xf32>
    %c0_139 = arith.constant 0 : index
    %c0_140 = arith.constant 0 : index
    %c6_141 = arith.constant 6 : index
    %c32_142 = arith.constant 32 : index
    %271 = vector.load %arg5[%c0_139, %c0_140, %c6_141, %c32_142] : memref<1x3x16x64xf32, #tpu.memory_space<vmem>>, vector<1x3x1x32xf32>
    %272 = vector.shape_cast %271 : vector<1x3x1x32xf32> to vector<3x32xf32>
    %273 = vector.shape_cast %270 : vector<3x32xf32> to vector<1x3x1x32xf32>
    tpu.vector_store %arg5[%c0_139, %c0_140, %c6_141, %c32_142], %273 {strides = array<i32>} : memref<1x3x16x64xf32, #tpu.memory_space<vmem>>, vector<1x3x1x32xf32>,
    %c0_143 = arith.constant 0 : index
    %c0_144 = arith.constant 0 : index
    %c0_145 = arith.constant 0 : index
    %c7_146 = arith.constant 7 : index
    %c0_147 = arith.constant 0 : index
    %274 = vector.load %arg2[%c0_143, %c0_144, %c0_145, %c7_146, %c0_147] : memref<1x1x8x17x34xbf16, #tpu.memory_space<vmem>>, vector<1x1x8x1x34xbf16>
    %275 = vector.shape_cast %274 : vector<1x1x8x1x34xbf16> to vector<8x34xbf16>
    %c0_148 = arith.constant 0 : index
    %c0_149 = arith.constant 0 : index
    %c0_150 = arith.constant 0 : index
    %c8 = arith.constant 8 : index
    %c0_151 = arith.constant 0 : index
    %276 = vector.load %arg2[%c0_148, %c0_149, %c0_150, %c8, %c0_151] : memref<1x1x8x17x34xbf16, #tpu.memory_space<vmem>>, vector<1x1x8x1x34xbf16>
    %277 = vector.shape_cast %276 : vector<1x1x8x1x34xbf16> to vector<8x34xbf16>
    %278 = vector.extract_strided_slice %275 {offsets = [0, 0], sizes = [8, 32], strides = [1, 1]} : vector<8x34xbf16> to vector<8x32xbf16>
    %279 = vector.extract_strided_slice %275 {offsets = [0, 2], sizes = [8, 32], strides = [1, 1]} : vector<8x34xbf16> to vector<8x32xbf16>
    %280 = vector.extract_strided_slice %277 {offsets = [0, 0], sizes = [8, 32], strides = [1, 1]} : vector<8x34xbf16> to vector<8x32xbf16>
    %281 = vector.extract_strided_slice %277 {offsets = [0, 2], sizes = [8, 32], strides = [1, 1]} : vector<8x34xbf16> to vector<8x32xbf16>
    %282 = tpu.concatenate %278, %279, %280, %281 in 0 : vector<8x32xbf16>, vector<8x32xbf16>, vector<8x32xbf16>, vector<8x32xbf16> -> vector<32x32xbf16>
    %cst_152 = arith.constant dense<0.000000e+00> : vector<32x32xf32>
    %283 = tpu.matmul %0, %282, %cst_152 {dimension_numbers = #tpu.dot_dimension_numbers<[1], [0], [0], [1], [0, 0, 1, 1], [], []>} : vector<32x32xbf16>, vector<32x32xbf16>, vector<32x32xf32> -> vector<32x32xf32>
    %284 = vector.extract_strided_slice %283 {offsets = [0, 0], sizes = [3, 32], strides = [1, 1]} : vector<32x32xf32> to vector<3x32xf32>
    %285 = vector.extract_strided_slice %283 {offsets = [8, 0], sizes = [3, 32], strides = [1, 1]} : vector<32x32xf32> to vector<3x32xf32>
    %286 = vector.shape_cast %7 : vector<1x32xi1> to vector<1x32xi1>
    %287 = vector.broadcast %286 : vector<1x32xi1> to vector<3x32xi1>
    %288 = arith.select %287, %284, %285 : vector<3x32xi1>, vector<3x32xf32>
    %289 = vector.extract_strided_slice %283 {offsets = [16, 0], sizes = [3, 32], strides = [1, 1]} : vector<32x32xf32> to vector<3x32xf32>
    %290 = vector.extract_strided_slice %283 {offsets = [24, 0], sizes = [3, 32], strides = [1, 1]} : vector<32x32xf32> to vector<3x32xf32>
    %291 = vector.shape_cast %7 : vector<1x32xi1> to vector<1x32xi1>
    %292 = vector.broadcast %291 : vector<1x32xi1> to vector<3x32xi1>
    %293 = arith.select %292, %289, %290 : vector<3x32xi1>, vector<3x32xf32>
    %294 = vector.broadcast %1 : vector<3x1xf32> to vector<3x32xf32>
    %295 = arith.mulf %288, %294 : vector<3x32xf32>
    %296 = vector.broadcast %2 : vector<3x1xf32> to vector<3x32xf32>
    %297 = arith.addf %295, %296 : vector<3x32xf32>
    %cst_153 = arith.constant 0.000000e+00 : f32
    %298 = vector.broadcast %cst_153 : f32 to vector<3x32xf32>
    %299 = arith.maximumf %297, %298 : vector<3x32xf32>
    %c0_154 = arith.constant 0 : index
    %c0_155 = arith.constant 0 : index
    %c7_156 = arith.constant 7 : index
    %c0_157 = arith.constant 0 : index
    %300 = vector.load %arg5[%c0_154, %c0_155, %c7_156, %c0_157] : memref<1x3x16x64xf32, #tpu.memory_space<vmem>>, vector<1x3x1x32xf32>
    %301 = vector.shape_cast %300 : vector<1x3x1x32xf32> to vector<3x32xf32>
    %302 = vector.shape_cast %299 : vector<3x32xf32> to vector<1x3x1x32xf32>
    tpu.vector_store %arg5[%c0_154, %c0_155, %c7_156, %c0_157], %302 {strides = array<i32>} : memref<1x3x16x64xf32, #tpu.memory_space<vmem>>, vector<1x3x1x32xf32>,
    %303 = vector.broadcast %1 : vector<3x1xf32> to vector<3x32xf32>
    %304 = arith.mulf %293, %303 : vector<3x32xf32>
    %305 = vector.broadcast %2 : vector<3x1xf32> to vector<3x32xf32>
    %306 = arith.addf %304, %305 : vector<3x32xf32>
    %cst_158 = arith.constant 0.000000e+00 : f32
    %307 = vector.broadcast %cst_158 : f32 to vector<3x32xf32>
    %308 = arith.maximumf %306, %307 : vector<3x32xf32>
    %c0_159 = arith.constant 0 : index
    %c0_160 = arith.constant 0 : index
    %c7_161 = arith.constant 7 : index
    %c32_162 = arith.constant 32 : index
    %309 = vector.load %arg5[%c0_159, %c0_160, %c7_161, %c32_162] : memref<1x3x16x64xf32, #tpu.memory_space<vmem>>, vector<1x3x1x32xf32>
    %310 = vector.shape_cast %309 : vector<1x3x1x32xf32> to vector<3x32xf32>
    %311 = vector.shape_cast %308 : vector<3x32xf32> to vector<1x3x1x32xf32>
    tpu.vector_store %arg5[%c0_159, %c0_160, %c7_161, %c32_162], %311 {strides = array<i32>} : memref<1x3x16x64xf32, #tpu.memory_space<vmem>>, vector<1x3x1x32xf32>,
    %c0_163 = arith.constant 0 : index
    %c0_164 = arith.constant 0 : index
    %c0_165 = arith.constant 0 : index
    %c8_166 = arith.constant 8 : index
    %c0_167 = arith.constant 0 : index
    %312 = vector.load %arg2[%c0_163, %c0_164, %c0_165, %c8_166, %c0_167] : memref<1x1x8x17x34xbf16, #tpu.memory_space<vmem>>, vector<1x1x8x1x34xbf16>
    %313 = vector.shape_cast %312 : vector<1x1x8x1x34xbf16> to vector<8x34xbf16>
    %c0_168 = arith.constant 0 : index
    %c0_169 = arith.constant 0 : index
    %c0_170 = arith.constant 0 : index
    %c9 = arith.constant 9 : index
    %c0_171 = arith.constant 0 : index
    %314 = vector.load %arg2[%c0_168, %c0_169, %c0_170, %c9, %c0_171] : memref<1x1x8x17x34xbf16, #tpu.memory_space<vmem>>, vector<1x1x8x1x34xbf16>
    %315 = vector.shape_cast %314 : vector<1x1x8x1x34xbf16> to vector<8x34xbf16>
    %316 = vector.extract_strided_slice %313 {offsets = [0, 0], sizes = [8, 32], strides = [1, 1]} : vector<8x34xbf16> to vector<8x32xbf16>
    %317 = vector.extract_strided_slice %313 {offsets = [0, 2], sizes = [8, 32], strides = [1, 1]} : vector<8x34xbf16> to vector<8x32xbf16>
    %318 = vector.extract_strided_slice %315 {offsets = [0, 0], sizes = [8, 32], strides = [1, 1]} : vector<8x34xbf16> to vector<8x32xbf16>
    %319 = vector.extract_strided_slice %315 {offsets = [0, 2], sizes = [8, 32], strides = [1, 1]} : vector<8x34xbf16> to vector<8x32xbf16>
    %320 = tpu.concatenate %316, %317, %318, %319 in 0 : vector<8x32xbf16>, vector<8x32xbf16>, vector<8x32xbf16>, vector<8x32xbf16> -> vector<32x32xbf16>
    %cst_172 = arith.constant dense<0.000000e+00> : vector<32x32xf32>
    %321 = tpu.matmul %0, %320, %cst_172 {dimension_numbers = #tpu.dot_dimension_numbers<[1], [0], [0], [1], [0, 0, 1, 1], [], []>} : vector<32x32xbf16>, vector<32x32xbf16>, vector<32x32xf32> -> vector<32x32xf32>
    %322 = vector.extract_strided_slice %321 {offsets = [0, 0], sizes = [3, 32], strides = [1, 1]} : vector<32x32xf32> to vector<3x32xf32>
    %323 = vector.extract_strided_slice %321 {offsets = [8, 0], sizes = [3, 32], strides = [1, 1]} : vector<32x32xf32> to vector<3x32xf32>
    %324 = vector.shape_cast %7 : vector<1x32xi1> to vector<1x32xi1>
    %325 = vector.broadcast %324 : vector<1x32xi1> to vector<3x32xi1>
    %326 = arith.select %325, %322, %323 : vector<3x32xi1>, vector<3x32xf32>
    %327 = vector.extract_strided_slice %321 {offsets = [16, 0], sizes = [3, 32], strides = [1, 1]} : vector<32x32xf32> to vector<3x32xf32>
    %328 = vector.extract_strided_slice %321 {offsets = [24, 0], sizes = [3, 32], strides = [1, 1]} : vector<32x32xf32> to vector<3x32xf32>
    %329 = vector.shape_cast %7 : vector<1x32xi1> to vector<1x32xi1>
    %330 = vector.broadcast %329 : vector<1x32xi1> to vector<3x32xi1>
    %331 = arith.select %330, %327, %328 : vector<3x32xi1>, vector<3x32xf32>
    %332 = vector.broadcast %1 : vector<3x1xf32> to vector<3x32xf32>
    %333 = arith.mulf %326, %332 : vector<3x32xf32>
    %334 = vector.broadcast %2 : vector<3x1xf32> to vector<3x32xf32>
    %335 = arith.addf %333, %334 : vector<3x32xf32>
    %cst_173 = arith.constant 0.000000e+00 : f32
    %336 = vector.broadcast %cst_173 : f32 to vector<3x32xf32>
    %337 = arith.maximumf %335, %336 : vector<3x32xf32>
    %c0_174 = arith.constant 0 : index
    %c0_175 = arith.constant 0 : index
    %c8_176 = arith.constant 8 : index
    %c0_177 = arith.constant 0 : index
    %338 = vector.load %arg5[%c0_174, %c0_175, %c8_176, %c0_177] : memref<1x3x16x64xf32, #tpu.memory_space<vmem>>, vector<1x3x1x32xf32>
    %339 = vector.shape_cast %338 : vector<1x3x1x32xf32> to vector<3x32xf32>
    %340 = vector.shape_cast %337 : vector<3x32xf32> to vector<1x3x1x32xf32>
    tpu.vector_store %arg5[%c0_174, %c0_175, %c8_176, %c0_177], %340 {strides = array<i32>} : memref<1x3x16x64xf32, #tpu.memory_space<vmem>>, vector<1x3x1x32xf32>,
    %341 = vector.broadcast %1 : vector<3x1xf32> to vector<3x32xf32>
    %342 = arith.mulf %331, %341 : vector<3x32xf32>
    %343 = vector.broadcast %2 : vector<3x1xf32> to vector<3x32xf32>
    %344 = arith.addf %342, %343 : vector<3x32xf32>
    %cst_178 = arith.constant 0.000000e+00 : f32
    %345 = vector.broadcast %cst_178 : f32 to vector<3x32xf32>
    %346 = arith.maximumf %344, %345 : vector<3x32xf32>
    %c0_179 = arith.constant 0 : index
    %c0_180 = arith.constant 0 : index
    %c8_181 = arith.constant 8 : index
    %c32_182 = arith.constant 32 : index
    %347 = vector.load %arg5[%c0_179, %c0_180, %c8_181, %c32_182] : memref<1x3x16x64xf32, #tpu.memory_space<vmem>>, vector<1x3x1x32xf32>
    %348 = vector.shape_cast %347 : vector<1x3x1x32xf32> to vector<3x32xf32>
    %349 = vector.shape_cast %346 : vector<3x32xf32> to vector<1x3x1x32xf32>
    tpu.vector_store %arg5[%c0_179, %c0_180, %c8_181, %c32_182], %349 {strides = array<i32>} : memref<1x3x16x64xf32, #tpu.memory_space<vmem>>, vector<1x3x1x32xf32>,
    %c0_183 = arith.constant 0 : index
    %c0_184 = arith.constant 0 : index
    %c0_185 = arith.constant 0 : index
    %c9_186 = arith.constant 9 : index
    %c0_187 = arith.constant 0 : index
    %350 = vector.load %arg2[%c0_183, %c0_184, %c0_185, %c9_186, %c0_187] : memref<1x1x8x17x34xbf16, #tpu.memory_space<vmem>>, vector<1x1x8x1x34xbf16>
    %351 = vector.shape_cast %350 : vector<1x1x8x1x34xbf16> to vector<8x34xbf16>
    %c0_188 = arith.constant 0 : index
    %c0_189 = arith.constant 0 : index
    %c0_190 = arith.constant 0 : index
    %c10 = arith.constant 10 : index
    %c0_191 = arith.constant 0 : index
    %352 = vector.load %arg2[%c0_188, %c0_189, %c0_190, %c10, %c0_191] : memref<1x1x8x17x34xbf16, #tpu.memory_space<vmem>>, vector<1x1x8x1x34xbf16>
    %353 = vector.shape_cast %352 : vector<1x1x8x1x34xbf16> to vector<8x34xbf16>
    %354 = vector.extract_strided_slice %351 {offsets = [0, 0], sizes = [8, 32], strides = [1, 1]} : vector<8x34xbf16> to vector<8x32xbf16>
    %355 = vector.extract_strided_slice %351 {offsets = [0, 2], sizes = [8, 32], strides = [1, 1]} : vector<8x34xbf16> to vector<8x32xbf16>
    %356 = vector.extract_strided_slice %353 {offsets = [0, 0], sizes = [8, 32], strides = [1, 1]} : vector<8x34xbf16> to vector<8x32xbf16>
    %357 = vector.extract_strided_slice %353 {offsets = [0, 2], sizes = [8, 32], strides = [1, 1]} : vector<8x34xbf16> to vector<8x32xbf16>
    %358 = tpu.concatenate %354, %355, %356, %357 in 0 : vector<8x32xbf16>, vector<8x32xbf16>, vector<8x32xbf16>, vector<8x32xbf16> -> vector<32x32xbf16>
    %cst_192 = arith.constant dense<0.000000e+00> : vector<32x32xf32>
    %359 = tpu.matmul %0, %358, %cst_192 {dimension_numbers = #tpu.dot_dimension_numbers<[1], [0], [0], [1], [0, 0, 1, 1], [], []>} : vector<32x32xbf16>, vector<32x32xbf16>, vector<32x32xf32> -> vector<32x32xf32>
    %360 = vector.extract_strided_slice %359 {offsets = [0, 0], sizes = [3, 32], strides = [1, 1]} : vector<32x32xf32> to vector<3x32xf32>
    %361 = vector.extract_strided_slice %359 {offsets = [8, 0], sizes = [3, 32], strides = [1, 1]} : vector<32x32xf32> to vector<3x32xf32>
    %362 = vector.shape_cast %7 : vector<1x32xi1> to vector<1x32xi1>
    %363 = vector.broadcast %362 : vector<1x32xi1> to vector<3x32xi1>
    %364 = arith.select %363, %360, %361 : vector<3x32xi1>, vector<3x32xf32>
    %365 = vector.extract_strided_slice %359 {offsets = [16, 0], sizes = [3, 32], strides = [1, 1]} : vector<32x32xf32> to vector<3x32xf32>
    %366 = vector.extract_strided_slice %359 {offsets = [24, 0], sizes = [3, 32], strides = [1, 1]} : vector<32x32xf32> to vector<3x32xf32>
    %367 = vector.shape_cast %7 : vector<1x32xi1> to vector<1x32xi1>
    %368 = vector.broadcast %367 : vector<1x32xi1> to vector<3x32xi1>
    %369 = arith.select %368, %365, %366 : vector<3x32xi1>, vector<3x32xf32>
    %370 = vector.broadcast %1 : vector<3x1xf32> to vector<3x32xf32>
    %371 = arith.mulf %364, %370 : vector<3x32xf32>
    %372 = vector.broadcast %2 : vector<3x1xf32> to vector<3x32xf32>
    %373 = arith.addf %371, %372 : vector<3x32xf32>
    %cst_193 = arith.constant 0.000000e+00 : f32
    %374 = vector.broadcast %cst_193 : f32 to vector<3x32xf32>
    %375 = arith.maximumf %373, %374 : vector<3x32xf32>
    %c0_194 = arith.constant 0 : index
    %c0_195 = arith.constant 0 : index
    %c9_196 = arith.constant 9 : index
    %c0_197 = arith.constant 0 : index
    %376 = vector.load %arg5[%c0_194, %c0_195, %c9_196, %c0_197] : memref<1x3x16x64xf32, #tpu.memory_space<vmem>>, vector<1x3x1x32xf32>
    %377 = vector.shape_cast %376 : vector<1x3x1x32xf32> to vector<3x32xf32>
    %378 = vector.shape_cast %375 : vector<3x32xf32> to vector<1x3x1x32xf32>
    tpu.vector_store %arg5[%c0_194, %c0_195, %c9_196, %c0_197], %378 {strides = array<i32>} : memref<1x3x16x64xf32, #tpu.memory_space<vmem>>, vector<1x3x1x32xf32>,
    %379 = vector.broadcast %1 : vector<3x1xf32> to vector<3x32xf32>
    %380 = arith.mulf %369, %379 : vector<3x32xf32>
    %381 = vector.broadcast %2 : vector<3x1xf32> to vector<3x32xf32>
    %382 = arith.addf %380, %381 : vector<3x32xf32>
    %cst_198 = arith.constant 0.000000e+00 : f32
    %383 = vector.broadcast %cst_198 : f32 to vector<3x32xf32>
    %384 = arith.maximumf %382, %383 : vector<3x32xf32>
    %c0_199 = arith.constant 0 : index
    %c0_200 = arith.constant 0 : index
    %c9_201 = arith.constant 9 : index
    %c32_202 = arith.constant 32 : index
    %385 = vector.load %arg5[%c0_199, %c0_200, %c9_201, %c32_202] : memref<1x3x16x64xf32, #tpu.memory_space<vmem>>, vector<1x3x1x32xf32>
    %386 = vector.shape_cast %385 : vector<1x3x1x32xf32> to vector<3x32xf32>
    %387 = vector.shape_cast %384 : vector<3x32xf32> to vector<1x3x1x32xf32>
    tpu.vector_store %arg5[%c0_199, %c0_200, %c9_201, %c32_202], %387 {strides = array<i32>} : memref<1x3x16x64xf32, #tpu.memory_space<vmem>>, vector<1x3x1x32xf32>,
    %c0_203 = arith.constant 0 : index
    %c0_204 = arith.constant 0 : index
    %c0_205 = arith.constant 0 : index
    %c10_206 = arith.constant 10 : index
    %c0_207 = arith.constant 0 : index
    %388 = vector.load %arg2[%c0_203, %c0_204, %c0_205, %c10_206, %c0_207] : memref<1x1x8x17x34xbf16, #tpu.memory_space<vmem>>, vector<1x1x8x1x34xbf16>
    %389 = vector.shape_cast %388 : vector<1x1x8x1x34xbf16> to vector<8x34xbf16>
    %c0_208 = arith.constant 0 : index
    %c0_209 = arith.constant 0 : index
    %c0_210 = arith.constant 0 : index
    %c11 = arith.constant 11 : index
    %c0_211 = arith.constant 0 : index
    %390 = vector.load %arg2[%c0_208, %c0_209, %c0_210, %c11, %c0_211] : memref<1x1x8x17x34xbf16, #tpu.memory_space<vmem>>, vector<1x1x8x1x34xbf16>
    %391 = vector.shape_cast %390 : vector<1x1x8x1x34xbf16> to vector<8x34xbf16>
    %392 = vector.extract_strided_slice %389 {offsets = [0, 0], sizes = [8, 32], strides = [1, 1]} : vector<8x34xbf16> to vector<8x32xbf16>
    %393 = vector.extract_strided_slice %389 {offsets = [0, 2], sizes = [8, 32], strides = [1, 1]} : vector<8x34xbf16> to vector<8x32xbf16>
    %394 = vector.extract_strided_slice %391 {offsets = [0, 0], sizes = [8, 32], strides = [1, 1]} : vector<8x34xbf16> to vector<8x32xbf16>
    %395 = vector.extract_strided_slice %391 {offsets = [0, 2], sizes = [8, 32], strides = [1, 1]} : vector<8x34xbf16> to vector<8x32xbf16>
    %396 = tpu.concatenate %392, %393, %394, %395 in 0 : vector<8x32xbf16>, vector<8x32xbf16>, vector<8x32xbf16>, vector<8x32xbf16> -> vector<32x32xbf16>
    %cst_212 = arith.constant dense<0.000000e+00> : vector<32x32xf32>
    %397 = tpu.matmul %0, %396, %cst_212 {dimension_numbers = #tpu.dot_dimension_numbers<[1], [0], [0], [1], [0, 0, 1, 1], [], []>} : vector<32x32xbf16>, vector<32x32xbf16>, vector<32x32xf32> -> vector<32x32xf32>
    %398 = vector.extract_strided_slice %397 {offsets = [0, 0], sizes = [3, 32], strides = [1, 1]} : vector<32x32xf32> to vector<3x32xf32>
    %399 = vector.extract_strided_slice %397 {offsets = [8, 0], sizes = [3, 32], strides = [1, 1]} : vector<32x32xf32> to vector<3x32xf32>
    %400 = vector.shape_cast %7 : vector<1x32xi1> to vector<1x32xi1>
    %401 = vector.broadcast %400 : vector<1x32xi1> to vector<3x32xi1>
    %402 = arith.select %401, %398, %399 : vector<3x32xi1>, vector<3x32xf32>
    %403 = vector.extract_strided_slice %397 {offsets = [16, 0], sizes = [3, 32], strides = [1, 1]} : vector<32x32xf32> to vector<3x32xf32>
    %404 = vector.extract_strided_slice %397 {offsets = [24, 0], sizes = [3, 32], strides = [1, 1]} : vector<32x32xf32> to vector<3x32xf32>
    %405 = vector.shape_cast %7 : vector<1x32xi1> to vector<1x32xi1>
    %406 = vector.broadcast %405 : vector<1x32xi1> to vector<3x32xi1>
    %407 = arith.select %406, %403, %404 : vector<3x32xi1>, vector<3x32xf32>
    %408 = vector.broadcast %1 : vector<3x1xf32> to vector<3x32xf32>
    %409 = arith.mulf %402, %408 : vector<3x32xf32>
    %410 = vector.broadcast %2 : vector<3x1xf32> to vector<3x32xf32>
    %411 = arith.addf %409, %410 : vector<3x32xf32>
    %cst_213 = arith.constant 0.000000e+00 : f32
    %412 = vector.broadcast %cst_213 : f32 to vector<3x32xf32>
    %413 = arith.maximumf %411, %412 : vector<3x32xf32>
    %c0_214 = arith.constant 0 : index
    %c0_215 = arith.constant 0 : index
    %c10_216 = arith.constant 10 : index
    %c0_217 = arith.constant 0 : index
    %414 = vector.load %arg5[%c0_214, %c0_215, %c10_216, %c0_217] : memref<1x3x16x64xf32, #tpu.memory_space<vmem>>, vector<1x3x1x32xf32>
    %415 = vector.shape_cast %414 : vector<1x3x1x32xf32> to vector<3x32xf32>
    %416 = vector.shape_cast %413 : vector<3x32xf32> to vector<1x3x1x32xf32>
    tpu.vector_store %arg5[%c0_214, %c0_215, %c10_216, %c0_217], %416 {strides = array<i32>} : memref<1x3x16x64xf32, #tpu.memory_space<vmem>>, vector<1x3x1x32xf32>,
    %417 = vector.broadcast %1 : vector<3x1xf32> to vector<3x32xf32>
    %418 = arith.mulf %407, %417 : vector<3x32xf32>
    %419 = vector.broadcast %2 : vector<3x1xf32> to vector<3x32xf32>
    %420 = arith.addf %418, %419 : vector<3x32xf32>
    %cst_218 = arith.constant 0.000000e+00 : f32
    %421 = vector.broadcast %cst_218 : f32 to vector<3x32xf32>
    %422 = arith.maximumf %420, %421 : vector<3x32xf32>
    %c0_219 = arith.constant 0 : index
    %c0_220 = arith.constant 0 : index
    %c10_221 = arith.constant 10 : index
    %c32_222 = arith.constant 32 : index
    %423 = vector.load %arg5[%c0_219, %c0_220, %c10_221, %c32_222] : memref<1x3x16x64xf32, #tpu.memory_space<vmem>>, vector<1x3x1x32xf32>
    %424 = vector.shape_cast %423 : vector<1x3x1x32xf32> to vector<3x32xf32>
    %425 = vector.shape_cast %422 : vector<3x32xf32> to vector<1x3x1x32xf32>
    tpu.vector_store %arg5[%c0_219, %c0_220, %c10_221, %c32_222], %425 {strides = array<i32>} : memref<1x3x16x64xf32, #tpu.memory_space<vmem>>, vector<1x3x1x32xf32>,
    %c0_223 = arith.constant 0 : index
    %c0_224 = arith.constant 0 : index
    %c0_225 = arith.constant 0 : index
    %c11_226 = arith.constant 11 : index
    %c0_227 = arith.constant 0 : index
    %426 = vector.load %arg2[%c0_223, %c0_224, %c0_225, %c11_226, %c0_227] : memref<1x1x8x17x34xbf16, #tpu.memory_space<vmem>>, vector<1x1x8x1x34xbf16>
    %427 = vector.shape_cast %426 : vector<1x1x8x1x34xbf16> to vector<8x34xbf16>
    %c0_228 = arith.constant 0 : index
    %c0_229 = arith.constant 0 : index
    %c0_230 = arith.constant 0 : index
    %c12 = arith.constant 12 : index
    %c0_231 = arith.constant 0 : index
    %428 = vector.load %arg2[%c0_228, %c0_229, %c0_230, %c12, %c0_231] : memref<1x1x8x17x34xbf16, #tpu.memory_space<vmem>>, vector<1x1x8x1x34xbf16>
    %429 = vector.shape_cast %428 : vector<1x1x8x1x34xbf16> to vector<8x34xbf16>
    %430 = vector.extract_strided_slice %427 {offsets = [0, 0], sizes = [8, 32], strides = [1, 1]} : vector<8x34xbf16> to vector<8x32xbf16>
    %431 = vector.extract_strided_slice %427 {offsets = [0, 2], sizes = [8, 32], strides = [1, 1]} : vector<8x34xbf16> to vector<8x32xbf16>
    %432 = vector.extract_strided_slice %429 {offsets = [0, 0], sizes = [8, 32], strides = [1, 1]} : vector<8x34xbf16> to vector<8x32xbf16>
    %433 = vector.extract_strided_slice %429 {offsets = [0, 2], sizes = [8, 32], strides = [1, 1]} : vector<8x34xbf16> to vector<8x32xbf16>
    %434 = tpu.concatenate %430, %431, %432, %433 in 0 : vector<8x32xbf16>, vector<8x32xbf16>, vector<8x32xbf16>, vector<8x32xbf16> -> vector<32x32xbf16>
    %cst_232 = arith.constant dense<0.000000e+00> : vector<32x32xf32>
    %435 = tpu.matmul %0, %434, %cst_232 {dimension_numbers = #tpu.dot_dimension_numbers<[1], [0], [0], [1], [0, 0, 1, 1], [], []>} : vector<32x32xbf16>, vector<32x32xbf16>, vector<32x32xf32> -> vector<32x32xf32>
    %436 = vector.extract_strided_slice %435 {offsets = [0, 0], sizes = [3, 32], strides = [1, 1]} : vector<32x32xf32> to vector<3x32xf32>
    %437 = vector.extract_strided_slice %435 {offsets = [8, 0], sizes = [3, 32], strides = [1, 1]} : vector<32x32xf32> to vector<3x32xf32>
    %438 = vector.shape_cast %7 : vector<1x32xi1> to vector<1x32xi1>
    %439 = vector.broadcast %438 : vector<1x32xi1> to vector<3x32xi1>
    %440 = arith.select %439, %436, %437 : vector<3x32xi1>, vector<3x32xf32>
    %441 = vector.extract_strided_slice %435 {offsets = [16, 0], sizes = [3, 32], strides = [1, 1]} : vector<32x32xf32> to vector<3x32xf32>
    %442 = vector.extract_strided_slice %435 {offsets = [24, 0], sizes = [3, 32], strides = [1, 1]} : vector<32x32xf32> to vector<3x32xf32>
    %443 = vector.shape_cast %7 : vector<1x32xi1> to vector<1x32xi1>
    %444 = vector.broadcast %443 : vector<1x32xi1> to vector<3x32xi1>
    %445 = arith.select %444, %441, %442 : vector<3x32xi1>, vector<3x32xf32>
    %446 = vector.broadcast %1 : vector<3x1xf32> to vector<3x32xf32>
    %447 = arith.mulf %440, %446 : vector<3x32xf32>
    %448 = vector.broadcast %2 : vector<3x1xf32> to vector<3x32xf32>
    %449 = arith.addf %447, %448 : vector<3x32xf32>
    %cst_233 = arith.constant 0.000000e+00 : f32
    %450 = vector.broadcast %cst_233 : f32 to vector<3x32xf32>
    %451 = arith.maximumf %449, %450 : vector<3x32xf32>
    %c0_234 = arith.constant 0 : index
    %c0_235 = arith.constant 0 : index
    %c11_236 = arith.constant 11 : index
    %c0_237 = arith.constant 0 : index
    %452 = vector.load %arg5[%c0_234, %c0_235, %c11_236, %c0_237] : memref<1x3x16x64xf32, #tpu.memory_space<vmem>>, vector<1x3x1x32xf32>
    %453 = vector.shape_cast %452 : vector<1x3x1x32xf32> to vector<3x32xf32>
    %454 = vector.shape_cast %451 : vector<3x32xf32> to vector<1x3x1x32xf32>
    tpu.vector_store %arg5[%c0_234, %c0_235, %c11_236, %c0_237], %454 {strides = array<i32>} : memref<1x3x16x64xf32, #tpu.memory_space<vmem>>, vector<1x3x1x32xf32>,
    %455 = vector.broadcast %1 : vector<3x1xf32> to vector<3x32xf32>
    %456 = arith.mulf %445, %455 : vector<3x32xf32>
    %457 = vector.broadcast %2 : vector<3x1xf32> to vector<3x32xf32>
    %458 = arith.addf %456, %457 : vector<3x32xf32>
    %cst_238 = arith.constant 0.000000e+00 : f32
    %459 = vector.broadcast %cst_238 : f32 to vector<3x32xf32>
    %460 = arith.maximumf %458, %459 : vector<3x32xf32>
    %c0_239 = arith.constant 0 : index
    %c0_240 = arith.constant 0 : index
    %c11_241 = arith.constant 11 : index
    %c32_242 = arith.constant 32 : index
    %461 = vector.load %arg5[%c0_239, %c0_240, %c11_241, %c32_242] : memref<1x3x16x64xf32, #tpu.memory_space<vmem>>, vector<1x3x1x32xf32>
    %462 = vector.shape_cast %461 : vector<1x3x1x32xf32> to vector<3x32xf32>
    %463 = vector.shape_cast %460 : vector<3x32xf32> to vector<1x3x1x32xf32>
    tpu.vector_store %arg5[%c0_239, %c0_240, %c11_241, %c32_242], %463 {strides = array<i32>} : memref<1x3x16x64xf32, #tpu.memory_space<vmem>>, vector<1x3x1x32xf32>,
    %c0_243 = arith.constant 0 : index
    %c0_244 = arith.constant 0 : index
    %c0_245 = arith.constant 0 : index
    %c12_246 = arith.constant 12 : index
    %c0_247 = arith.constant 0 : index
    %464 = vector.load %arg2[%c0_243, %c0_244, %c0_245, %c12_246, %c0_247] : memref<1x1x8x17x34xbf16, #tpu.memory_space<vmem>>, vector<1x1x8x1x34xbf16>
    %465 = vector.shape_cast %464 : vector<1x1x8x1x34xbf16> to vector<8x34xbf16>
    %c0_248 = arith.constant 0 : index
    %c0_249 = arith.constant 0 : index
    %c0_250 = arith.constant 0 : index
    %c13 = arith.constant 13 : index
    %c0_251 = arith.constant 0 : index
    %466 = vector.load %arg2[%c0_248, %c0_249, %c0_250, %c13, %c0_251] : memref<1x1x8x17x34xbf16, #tpu.memory_space<vmem>>, vector<1x1x8x1x34xbf16>
    %467 = vector.shape_cast %466 : vector<1x1x8x1x34xbf16> to vector<8x34xbf16>
    %468 = vector.extract_strided_slice %465 {offsets = [0, 0], sizes = [8, 32], strides = [1, 1]} : vector<8x34xbf16> to vector<8x32xbf16>
    %469 = vector.extract_strided_slice %465 {offsets = [0, 2], sizes = [8, 32], strides = [1, 1]} : vector<8x34xbf16> to vector<8x32xbf16>
    %470 = vector.extract_strided_slice %467 {offsets = [0, 0], sizes = [8, 32], strides = [1, 1]} : vector<8x34xbf16> to vector<8x32xbf16>
    %471 = vector.extract_strided_slice %467 {offsets = [0, 2], sizes = [8, 32], strides = [1, 1]} : vector<8x34xbf16> to vector<8x32xbf16>
    %472 = tpu.concatenate %468, %469, %470, %471 in 0 : vector<8x32xbf16>, vector<8x32xbf16>, vector<8x32xbf16>, vector<8x32xbf16> -> vector<32x32xbf16>
    %cst_252 = arith.constant dense<0.000000e+00> : vector<32x32xf32>
    %473 = tpu.matmul %0, %472, %cst_252 {dimension_numbers = #tpu.dot_dimension_numbers<[1], [0], [0], [1], [0, 0, 1, 1], [], []>} : vector<32x32xbf16>, vector<32x32xbf16>, vector<32x32xf32> -> vector<32x32xf32>
    %474 = vector.extract_strided_slice %473 {offsets = [0, 0], sizes = [3, 32], strides = [1, 1]} : vector<32x32xf32> to vector<3x32xf32>
    %475 = vector.extract_strided_slice %473 {offsets = [8, 0], sizes = [3, 32], strides = [1, 1]} : vector<32x32xf32> to vector<3x32xf32>
    %476 = vector.shape_cast %7 : vector<1x32xi1> to vector<1x32xi1>
    %477 = vector.broadcast %476 : vector<1x32xi1> to vector<3x32xi1>
    %478 = arith.select %477, %474, %475 : vector<3x32xi1>, vector<3x32xf32>
    %479 = vector.extract_strided_slice %473 {offsets = [16, 0], sizes = [3, 32], strides = [1, 1]} : vector<32x32xf32> to vector<3x32xf32>
    %480 = vector.extract_strided_slice %473 {offsets = [24, 0], sizes = [3, 32], strides = [1, 1]} : vector<32x32xf32> to vector<3x32xf32>
    %481 = vector.shape_cast %7 : vector<1x32xi1> to vector<1x32xi1>
    %482 = vector.broadcast %481 : vector<1x32xi1> to vector<3x32xi1>
    %483 = arith.select %482, %479, %480 : vector<3x32xi1>, vector<3x32xf32>
    %484 = vector.broadcast %1 : vector<3x1xf32> to vector<3x32xf32>
    %485 = arith.mulf %478, %484 : vector<3x32xf32>
    %486 = vector.broadcast %2 : vector<3x1xf32> to vector<3x32xf32>
    %487 = arith.addf %485, %486 : vector<3x32xf32>
    %cst_253 = arith.constant 0.000000e+00 : f32
    %488 = vector.broadcast %cst_253 : f32 to vector<3x32xf32>
    %489 = arith.maximumf %487, %488 : vector<3x32xf32>
    %c0_254 = arith.constant 0 : index
    %c0_255 = arith.constant 0 : index
    %c12_256 = arith.constant 12 : index
    %c0_257 = arith.constant 0 : index
    %490 = vector.load %arg5[%c0_254, %c0_255, %c12_256, %c0_257] : memref<1x3x16x64xf32, #tpu.memory_space<vmem>>, vector<1x3x1x32xf32>
    %491 = vector.shape_cast %490 : vector<1x3x1x32xf32> to vector<3x32xf32>
    %492 = vector.shape_cast %489 : vector<3x32xf32> to vector<1x3x1x32xf32>
    tpu.vector_store %arg5[%c0_254, %c0_255, %c12_256, %c0_257], %492 {strides = array<i32>} : memref<1x3x16x64xf32, #tpu.memory_space<vmem>>, vector<1x3x1x32xf32>,
    %493 = vector.broadcast %1 : vector<3x1xf32> to vector<3x32xf32>
    %494 = arith.mulf %483, %493 : vector<3x32xf32>
    %495 = vector.broadcast %2 : vector<3x1xf32> to vector<3x32xf32>
    %496 = arith.addf %494, %495 : vector<3x32xf32>
    %cst_258 = arith.constant 0.000000e+00 : f32
    %497 = vector.broadcast %cst_258 : f32 to vector<3x32xf32>
    %498 = arith.maximumf %496, %497 : vector<3x32xf32>
    %c0_259 = arith.constant 0 : index
    %c0_260 = arith.constant 0 : index
    %c12_261 = arith.constant 12 : index
    %c32_262 = arith.constant 32 : index
    %499 = vector.load %arg5[%c0_259, %c0_260, %c12_261, %c32_262] : memref<1x3x16x64xf32, #tpu.memory_space<vmem>>, vector<1x3x1x32xf32>
    %500 = vector.shape_cast %499 : vector<1x3x1x32xf32> to vector<3x32xf32>
    %501 = vector.shape_cast %498 : vector<3x32xf32> to vector<1x3x1x32xf32>
    tpu.vector_store %arg5[%c0_259, %c0_260, %c12_261, %c32_262], %501 {strides = array<i32>} : memref<1x3x16x64xf32, #tpu.memory_space<vmem>>, vector<1x3x1x32xf32>,
    %c0_263 = arith.constant 0 : index
    %c0_264 = arith.constant 0 : index
    %c0_265 = arith.constant 0 : index
    %c13_266 = arith.constant 13 : index
    %c0_267 = arith.constant 0 : index
    %502 = vector.load %arg2[%c0_263, %c0_264, %c0_265, %c13_266, %c0_267] : memref<1x1x8x17x34xbf16, #tpu.memory_space<vmem>>, vector<1x1x8x1x34xbf16>
    %503 = vector.shape_cast %502 : vector<1x1x8x1x34xbf16> to vector<8x34xbf16>
    %c0_268 = arith.constant 0 : index
    %c0_269 = arith.constant 0 : index
    %c0_270 = arith.constant 0 : index
    %c14 = arith.constant 14 : index
    %c0_271 = arith.constant 0 : index
    %504 = vector.load %arg2[%c0_268, %c0_269, %c0_270, %c14, %c0_271] : memref<1x1x8x17x34xbf16, #tpu.memory_space<vmem>>, vector<1x1x8x1x34xbf16>
    %505 = vector.shape_cast %504 : vector<1x1x8x1x34xbf16> to vector<8x34xbf16>
    %506 = vector.extract_strided_slice %503 {offsets = [0, 0], sizes = [8, 32], strides = [1, 1]} : vector<8x34xbf16> to vector<8x32xbf16>
    %507 = vector.extract_strided_slice %503 {offsets = [0, 2], sizes = [8, 32], strides = [1, 1]} : vector<8x34xbf16> to vector<8x32xbf16>
    %508 = vector.extract_strided_slice %505 {offsets = [0, 0], sizes = [8, 32], strides = [1, 1]} : vector<8x34xbf16> to vector<8x32xbf16>
    %509 = vector.extract_strided_slice %505 {offsets = [0, 2], sizes = [8, 32], strides = [1, 1]} : vector<8x34xbf16> to vector<8x32xbf16>
    %510 = tpu.concatenate %506, %507, %508, %509 in 0 : vector<8x32xbf16>, vector<8x32xbf16>, vector<8x32xbf16>, vector<8x32xbf16> -> vector<32x32xbf16>
    %cst_272 = arith.constant dense<0.000000e+00> : vector<32x32xf32>
    %511 = tpu.matmul %0, %510, %cst_272 {dimension_numbers = #tpu.dot_dimension_numbers<[1], [0], [0], [1], [0, 0, 1, 1], [], []>} : vector<32x32xbf16>, vector<32x32xbf16>, vector<32x32xf32> -> vector<32x32xf32>
    %512 = vector.extract_strided_slice %511 {offsets = [0, 0], sizes = [3, 32], strides = [1, 1]} : vector<32x32xf32> to vector<3x32xf32>
    %513 = vector.extract_strided_slice %511 {offsets = [8, 0], sizes = [3, 32], strides = [1, 1]} : vector<32x32xf32> to vector<3x32xf32>
    %514 = vector.shape_cast %7 : vector<1x32xi1> to vector<1x32xi1>
    %515 = vector.broadcast %514 : vector<1x32xi1> to vector<3x32xi1>
    %516 = arith.select %515, %512, %513 : vector<3x32xi1>, vector<3x32xf32>
    %517 = vector.extract_strided_slice %511 {offsets = [16, 0], sizes = [3, 32], strides = [1, 1]} : vector<32x32xf32> to vector<3x32xf32>
    %518 = vector.extract_strided_slice %511 {offsets = [24, 0], sizes = [3, 32], strides = [1, 1]} : vector<32x32xf32> to vector<3x32xf32>
    %519 = vector.shape_cast %7 : vector<1x32xi1> to vector<1x32xi1>
    %520 = vector.broadcast %519 : vector<1x32xi1> to vector<3x32xi1>
    %521 = arith.select %520, %517, %518 : vector<3x32xi1>, vector<3x32xf32>
    %522 = vector.broadcast %1 : vector<3x1xf32> to vector<3x32xf32>
    %523 = arith.mulf %516, %522 : vector<3x32xf32>
    %524 = vector.broadcast %2 : vector<3x1xf32> to vector<3x32xf32>
    %525 = arith.addf %523, %524 : vector<3x32xf32>
    %cst_273 = arith.constant 0.000000e+00 : f32
    %526 = vector.broadcast %cst_273 : f32 to vector<3x32xf32>
    %527 = arith.maximumf %525, %526 : vector<3x32xf32>
    %c0_274 = arith.constant 0 : index
    %c0_275 = arith.constant 0 : index
    %c13_276 = arith.constant 13 : index
    %c0_277 = arith.constant 0 : index
    %528 = vector.load %arg5[%c0_274, %c0_275, %c13_276, %c0_277] : memref<1x3x16x64xf32, #tpu.memory_space<vmem>>, vector<1x3x1x32xf32>
    %529 = vector.shape_cast %528 : vector<1x3x1x32xf32> to vector<3x32xf32>
    %530 = vector.shape_cast %527 : vector<3x32xf32> to vector<1x3x1x32xf32>
    tpu.vector_store %arg5[%c0_274, %c0_275, %c13_276, %c0_277], %530 {strides = array<i32>} : memref<1x3x16x64xf32, #tpu.memory_space<vmem>>, vector<1x3x1x32xf32>,
    %531 = vector.broadcast %1 : vector<3x1xf32> to vector<3x32xf32>
    %532 = arith.mulf %521, %531 : vector<3x32xf32>
    %533 = vector.broadcast %2 : vector<3x1xf32> to vector<3x32xf32>
    %534 = arith.addf %532, %533 : vector<3x32xf32>
    %cst_278 = arith.constant 0.000000e+00 : f32
    %535 = vector.broadcast %cst_278 : f32 to vector<3x32xf32>
    %536 = arith.maximumf %534, %535 : vector<3x32xf32>
    %c0_279 = arith.constant 0 : index
    %c0_280 = arith.constant 0 : index
    %c13_281 = arith.constant 13 : index
    %c32_282 = arith.constant 32 : index
    %537 = vector.load %arg5[%c0_279, %c0_280, %c13_281, %c32_282] : memref<1x3x16x64xf32, #tpu.memory_space<vmem>>, vector<1x3x1x32xf32>
    %538 = vector.shape_cast %537 : vector<1x3x1x32xf32> to vector<3x32xf32>
    %539 = vector.shape_cast %536 : vector<3x32xf32> to vector<1x3x1x32xf32>
    tpu.vector_store %arg5[%c0_279, %c0_280, %c13_281, %c32_282], %539 {strides = array<i32>} : memref<1x3x16x64xf32, #tpu.memory_space<vmem>>, vector<1x3x1x32xf32>,
    %c0_283 = arith.constant 0 : index
    %c0_284 = arith.constant 0 : index
    %c0_285 = arith.constant 0 : index
    %c14_286 = arith.constant 14 : index
    %c0_287 = arith.constant 0 : index
    %540 = vector.load %arg2[%c0_283, %c0_284, %c0_285, %c14_286, %c0_287] : memref<1x1x8x17x34xbf16, #tpu.memory_space<vmem>>, vector<1x1x8x1x34xbf16>
    %541 = vector.shape_cast %540 : vector<1x1x8x1x34xbf16> to vector<8x34xbf16>
    %c0_288 = arith.constant 0 : index
    %c0_289 = arith.constant 0 : index
    %c0_290 = arith.constant 0 : index
    %c15 = arith.constant 15 : index
    %c0_291 = arith.constant 0 : index
    %542 = vector.load %arg2[%c0_288, %c0_289, %c0_290, %c15, %c0_291] : memref<1x1x8x17x34xbf16, #tpu.memory_space<vmem>>, vector<1x1x8x1x34xbf16>
    %543 = vector.shape_cast %542 : vector<1x1x8x1x34xbf16> to vector<8x34xbf16>
    %544 = vector.extract_strided_slice %541 {offsets = [0, 0], sizes = [8, 32], strides = [1, 1]} : vector<8x34xbf16> to vector<8x32xbf16>
    %545 = vector.extract_strided_slice %541 {offsets = [0, 2], sizes = [8, 32], strides = [1, 1]} : vector<8x34xbf16> to vector<8x32xbf16>
    %546 = vector.extract_strided_slice %543 {offsets = [0, 0], sizes = [8, 32], strides = [1, 1]} : vector<8x34xbf16> to vector<8x32xbf16>
    %547 = vector.extract_strided_slice %543 {offsets = [0, 2], sizes = [8, 32], strides = [1, 1]} : vector<8x34xbf16> to vector<8x32xbf16>
    %548 = tpu.concatenate %544, %545, %546, %547 in 0 : vector<8x32xbf16>, vector<8x32xbf16>, vector<8x32xbf16>, vector<8x32xbf16> -> vector<32x32xbf16>
    %cst_292 = arith.constant dense<0.000000e+00> : vector<32x32xf32>
    %549 = tpu.matmul %0, %548, %cst_292 {dimension_numbers = #tpu.dot_dimension_numbers<[1], [0], [0], [1], [0, 0, 1, 1], [], []>} : vector<32x32xbf16>, vector<32x32xbf16>, vector<32x32xf32> -> vector<32x32xf32>
    %550 = vector.extract_strided_slice %549 {offsets = [0, 0], sizes = [3, 32], strides = [1, 1]} : vector<32x32xf32> to vector<3x32xf32>
    %551 = vector.extract_strided_slice %549 {offsets = [8, 0], sizes = [3, 32], strides = [1, 1]} : vector<32x32xf32> to vector<3x32xf32>
    %552 = vector.shape_cast %7 : vector<1x32xi1> to vector<1x32xi1>
    %553 = vector.broadcast %552 : vector<1x32xi1> to vector<3x32xi1>
    %554 = arith.select %553, %550, %551 : vector<3x32xi1>, vector<3x32xf32>
    %555 = vector.extract_strided_slice %549 {offsets = [16, 0], sizes = [3, 32], strides = [1, 1]} : vector<32x32xf32> to vector<3x32xf32>
    %556 = vector.extract_strided_slice %549 {offsets = [24, 0], sizes = [3, 32], strides = [1, 1]} : vector<32x32xf32> to vector<3x32xf32>
    %557 = vector.shape_cast %7 : vector<1x32xi1> to vector<1x32xi1>
    %558 = vector.broadcast %557 : vector<1x32xi1> to vector<3x32xi1>
    %559 = arith.select %558, %555, %556 : vector<3x32xi1>, vector<3x32xf32>
    %560 = vector.broadcast %1 : vector<3x1xf32> to vector<3x32xf32>
    %561 = arith.mulf %554, %560 : vector<3x32xf32>
    %562 = vector.broadcast %2 : vector<3x1xf32> to vector<3x32xf32>
    %563 = arith.addf %561, %562 : vector<3x32xf32>
    %cst_293 = arith.constant 0.000000e+00 : f32
    %564 = vector.broadcast %cst_293 : f32 to vector<3x32xf32>
    %565 = arith.maximumf %563, %564 : vector<3x32xf32>
    %c0_294 = arith.constant 0 : index
    %c0_295 = arith.constant 0 : index
    %c14_296 = arith.constant 14 : index
    %c0_297 = arith.constant 0 : index
    %566 = vector.load %arg5[%c0_294, %c0_295, %c14_296, %c0_297] : memref<1x3x16x64xf32, #tpu.memory_space<vmem>>, vector<1x3x1x32xf32>
    %567 = vector.shape_cast %566 : vector<1x3x1x32xf32> to vector<3x32xf32>
    %568 = vector.shape_cast %565 : vector<3x32xf32> to vector<1x3x1x32xf32>
    tpu.vector_store %arg5[%c0_294, %c0_295, %c14_296, %c0_297], %568 {strides = array<i32>} : memref<1x3x16x64xf32, #tpu.memory_space<vmem>>, vector<1x3x1x32xf32>,
    %569 = vector.broadcast %1 : vector<3x1xf32> to vector<3x32xf32>
    %570 = arith.mulf %559, %569 : vector<3x32xf32>
    %571 = vector.broadcast %2 : vector<3x1xf32> to vector<3x32xf32>
    %572 = arith.addf %570, %571 : vector<3x32xf32>
    %cst_298 = arith.constant 0.000000e+00 : f32
    %573 = vector.broadcast %cst_298 : f32 to vector<3x32xf32>
    %574 = arith.maximumf %572, %573 : vector<3x32xf32>
    %c0_299 = arith.constant 0 : index
    %c0_300 = arith.constant 0 : index
    %c14_301 = arith.constant 14 : index
    %c32_302 = arith.constant 32 : index
    %575 = vector.load %arg5[%c0_299, %c0_300, %c14_301, %c32_302] : memref<1x3x16x64xf32, #tpu.memory_space<vmem>>, vector<1x3x1x32xf32>
    %576 = vector.shape_cast %575 : vector<1x3x1x32xf32> to vector<3x32xf32>
    %577 = vector.shape_cast %574 : vector<3x32xf32> to vector<1x3x1x32xf32>
    tpu.vector_store %arg5[%c0_299, %c0_300, %c14_301, %c32_302], %577 {strides = array<i32>} : memref<1x3x16x64xf32, #tpu.memory_space<vmem>>, vector<1x3x1x32xf32>,
    %c0_303 = arith.constant 0 : index
    %c0_304 = arith.constant 0 : index
    %c0_305 = arith.constant 0 : index
    %c15_306 = arith.constant 15 : index
    %c0_307 = arith.constant 0 : index
    %578 = vector.load %arg2[%c0_303, %c0_304, %c0_305, %c15_306, %c0_307] : memref<1x1x8x17x34xbf16, #tpu.memory_space<vmem>>, vector<1x1x8x1x34xbf16>
    %579 = vector.shape_cast %578 : vector<1x1x8x1x34xbf16> to vector<8x34xbf16>
    %c0_308 = arith.constant 0 : index
    %c0_309 = arith.constant 0 : index
    %c0_310 = arith.constant 0 : index
    %c16 = arith.constant 16 : index
    %c0_311 = arith.constant 0 : index
    %580 = vector.load %arg2[%c0_308, %c0_309, %c0_310, %c16, %c0_311] : memref<1x1x8x17x34xbf16, #tpu.memory_space<vmem>>, vector<1x1x8x1x34xbf16>
    %581 = vector.shape_cast %580 : vector<1x1x8x1x34xbf16> to vector<8x34xbf16>
    %582 = vector.extract_strided_slice %579 {offsets = [0, 0], sizes = [8, 32], strides = [1, 1]} : vector<8x34xbf16> to vector<8x32xbf16>
    %583 = vector.extract_strided_slice %579 {offsets = [0, 2], sizes = [8, 32], strides = [1, 1]} : vector<8x34xbf16> to vector<8x32xbf16>
    %584 = vector.extract_strided_slice %581 {offsets = [0, 0], sizes = [8, 32], strides = [1, 1]} : vector<8x34xbf16> to vector<8x32xbf16>
    %585 = vector.extract_strided_slice %581 {offsets = [0, 2], sizes = [8, 32], strides = [1, 1]} : vector<8x34xbf16> to vector<8x32xbf16>
    %586 = tpu.concatenate %582, %583, %584, %585 in 0 : vector<8x32xbf16>, vector<8x32xbf16>, vector<8x32xbf16>, vector<8x32xbf16> -> vector<32x32xbf16>
    %cst_312 = arith.constant dense<0.000000e+00> : vector<32x32xf32>
    %587 = tpu.matmul %0, %586, %cst_312 {dimension_numbers = #tpu.dot_dimension_numbers<[1], [0], [0], [1], [0, 0, 1, 1], [], []>} : vector<32x32xbf16>, vector<32x32xbf16>, vector<32x32xf32> -> vector<32x32xf32>
    %588 = vector.extract_strided_slice %587 {offsets = [0, 0], sizes = [3, 32], strides = [1, 1]} : vector<32x32xf32> to vector<3x32xf32>
    %589 = vector.extract_strided_slice %587 {offsets = [8, 0], sizes = [3, 32], strides = [1, 1]} : vector<32x32xf32> to vector<3x32xf32>
    %590 = vector.shape_cast %7 : vector<1x32xi1> to vector<1x32xi1>
    %591 = vector.broadcast %590 : vector<1x32xi1> to vector<3x32xi1>
    %592 = arith.select %591, %588, %589 : vector<3x32xi1>, vector<3x32xf32>
    %593 = vector.extract_strided_slice %587 {offsets = [16, 0], sizes = [3, 32], strides = [1, 1]} : vector<32x32xf32> to vector<3x32xf32>
    %594 = vector.extract_strided_slice %587 {offsets = [24, 0], sizes = [3, 32], strides = [1, 1]} : vector<32x32xf32> to vector<3x32xf32>
    %595 = vector.shape_cast %7 : vector<1x32xi1> to vector<1x32xi1>
    %596 = vector.broadcast %595 : vector<1x32xi1> to vector<3x32xi1>
    %597 = arith.select %596, %593, %594 : vector<3x32xi1>, vector<3x32xf32>
    %598 = vector.broadcast %1 : vector<3x1xf32> to vector<3x32xf32>
    %599 = arith.mulf %592, %598 : vector<3x32xf32>
    %600 = vector.broadcast %2 : vector<3x1xf32> to vector<3x32xf32>
    %601 = arith.addf %599, %600 : vector<3x32xf32>
    %cst_313 = arith.constant 0.000000e+00 : f32
    %602 = vector.broadcast %cst_313 : f32 to vector<3x32xf32>
    %603 = arith.maximumf %601, %602 : vector<3x32xf32>
    %c0_314 = arith.constant 0 : index
    %c0_315 = arith.constant 0 : index
    %c15_316 = arith.constant 15 : index
    %c0_317 = arith.constant 0 : index
    %604 = vector.load %arg5[%c0_314, %c0_315, %c15_316, %c0_317] : memref<1x3x16x64xf32, #tpu.memory_space<vmem>>, vector<1x3x1x32xf32>
    %605 = vector.shape_cast %604 : vector<1x3x1x32xf32> to vector<3x32xf32>
    %606 = vector.shape_cast %603 : vector<3x32xf32> to vector<1x3x1x32xf32>
    tpu.vector_store %arg5[%c0_314, %c0_315, %c15_316, %c0_317], %606 {strides = array<i32>} : memref<1x3x16x64xf32, #tpu.memory_space<vmem>>, vector<1x3x1x32xf32>,
    %607 = vector.broadcast %1 : vector<3x1xf32> to vector<3x32xf32>
    %608 = arith.mulf %597, %607 : vector<3x32xf32>
    %609 = vector.broadcast %2 : vector<3x1xf32> to vector<3x32xf32>
    %610 = arith.addf %608, %609 : vector<3x32xf32>
    %cst_318 = arith.constant 0.000000e+00 : f32
    %611 = vector.broadcast %cst_318 : f32 to vector<3x32xf32>
    %612 = arith.maximumf %610, %611 : vector<3x32xf32>
    %c0_319 = arith.constant 0 : index
    %c0_320 = arith.constant 0 : index
    %c15_321 = arith.constant 15 : index
    %c32_322 = arith.constant 32 : index
    %613 = vector.load %arg5[%c0_319, %c0_320, %c15_321, %c32_322] : memref<1x3x16x64xf32, #tpu.memory_space<vmem>>, vector<1x3x1x32xf32>
    %614 = vector.shape_cast %613 : vector<1x3x1x32xf32> to vector<3x32xf32>
    %615 = vector.shape_cast %612 : vector<3x32xf32> to vector<1x3x1x32xf32>
    tpu.vector_store %arg5[%c0_319, %c0_320, %c15_321, %c32_322], %615 {strides = array<i32>} : memref<1x3x16x64xf32, #tpu.memory_space<vmem>>, vector<1x3x1x32xf32>,
    return
  }
  func.func @transform_0(%arg0: i32, %arg1: i32) -> (i32, i32, i32, i32, i32) {
    %c0_i32 = arith.constant 0 : i32
    %c0_i32_0 = arith.constant 0 : i32
    %c0_i32_1 = arith.constant 0 : i32
    %c0_i32_2 = arith.constant 0 : i32
    return %arg0, %arg1, %c0_i32, %c0_i32_0, %c0_i32_1 : i32, i32, i32, i32, i32
  }
  func.func @transform_1(%arg0: i32, %arg1: i32) -> (i32, i32) {
    %c0_i32 = arith.constant 0 : i32
    %c0_i32_0 = arith.constant 0 : i32
    %c0_i32_1 = arith.constant 0 : i32
    return %c0_i32, %c0_i32_0 : i32, i32
  }
  func.func @transform_2(%arg0: i32, %arg1: i32) -> (i32, i32) {
    %c0_i32 = arith.constant 0 : i32
    %c0_i32_0 = arith.constant 0 : i32
    %c0_i32_1 = arith.constant 0 : i32
    return %c0_i32, %c0_i32_0 : i32, i32
  }
  func.func @transform_3(%arg0: i32, %arg1: i32) -> (i32, i32, i32, i32) {
    %c0_i32 = arith.constant 0 : i32
    %c0_i32_0 = arith.constant 0 : i32
    %c0_i32_1 = arith.constant 0 : i32
    return %arg0, %c0_i32, %arg1, %c0_i32_0 : i32, i32, i32, i32
  }
}

</mosaic_0001>

<llo_original>
// kernel: convtr_pallas.1
$region0: #{convtr_pallas.1}
  #allocation0 [shape = 'u32[]', space=smem, size = 0x4, offset = 0x4, fixed_abs, tag = 'smem constant byte address 0x4 - core index']
  #allocation1 [shape = 'u32[72,128]{1,0:T(1,128)}', space=vmem, size = 0x9000, scoped, tag = 'internal scratch']
  %s0 = inlined_call_operand.vmem [shape: bf16[2,1,8,17,34], index: 0, kind: input, shape index: {}]
  %s1 = inlined_call_operand.vmem [shape: bf16[32,32], index: 1, kind: input, shape index: {}]
  %s2 = inlined_call_operand.vmem [shape: f32[3,2], index: 2, kind: input, shape index: {}]
  %s3 = inlined_call_operand.vmem [shape: f32[2,3,16,64], index: 3, kind: output, shape index: {}]
  %s4 = sld [smem:[#allocation0]]
  $region45: #{convtr_pallas.1} parent=0
    _
  %s6 = ssub.s32 1, %s4
  %s7 = scalar_select 0, %s6, %s4
  loop: start=0, step=1, limit=4
  $region2: #{convtr_pallas.1} parent=0 // loop_pre_header
    _
  $region3: #{convtr_pallas.1} parent=0 // loop_header
    %s9 = sphi 0, %s13
    %p10 = scmp.ge.s32.totalorder %s9, 4
    %s16 = sphi 0, %s28
    %s17 = sphi 0, %s24
    %s18 = sphi 0, %s16
    %s19 = sphi 0, %s17
    %s20 = sphi 0, %s18
    %s21 = sphi 0, %s19
    %s33 = sphi 0, %s35
    %s36 = sphi 0, %s33
    %s37 = sphi 0, %s36
    %s53 = sphi 0, %s37
    %s57 = sphi 0, %s57
    %s59 = sphi 0, %s57
    %s60 = sphi 0, %s59
    %s74 = sphi 0, %s60
    %s78 = sphi 0, %s78
    %s80 = sphi 0, %s78
    %s81 = sphi 0, %s80
    %s95 = sphi 0, %s81
    %s103 = sphi 0, %s105
    %s106 = sphi 0, %s103
    %s107 = sphi 0, %s106
    %s123 = sphi 0, %s107
  $region4: #{convtr_pallas.1} parent=0 // loop_header_branch
    %12 = sbr.rel (%p10) target = $region8
  $region5: #{convtr_pallas.1} parent=0 // loop_body
    %s14 = ssub.s32 %s9, 1
    %s15 = ssub.s32 %s9, 2
    %s22 = sadd.s32 1, %s17
    %p23 = scmp.ge.s32.totalorder %s22, 1
    %s24 = scalar_select %p23, 0, %s22
    %s25 = sadd.s32 1, %s16
    %s26 = scalar_select %p23, %s25, %s16
    %p27 = scmp.ge.s32.totalorder %s26, 2
    %s28 = scalar_select %p27, 0, %s26
    %s29 = ssub.s32 %s16, %s28
    %s30 = ssub.s32 %s17, %s24
    %s31 = sor.u32 %s29, %s30
    %p32 = scmp.eq.s32.totalorder %s31, 0
    %s34 = sadd.s32 %s33, 1
    %s35 = scalar_select %p32, %s33, %s34
    %p38 = pneg %p32
    %p39 = scmp.eq.s32.totalorder %s9, 1
    %p40 = por %p38, %p39
    %p41 = scmp.ne.s32.totalorder %s33, %s36
    %p42 = scmp.eq.s32.totalorder %s9, 0
    %p43 = por %p41, %p42
    %p44 = scmp.ne.s32.totalorder %s33, %s36
    %p45 = scmp.eq.s32.totalorder %s14, 1
    %p46 = por %p44, %p45
    %p47 = scmp.ne.s32.totalorder %s36, %s37
    %p48 = scmp.eq.s32.totalorder %s14, 0
    %p49 = por %p47, %p48
    %p50 = scmp.ne.s32.totalorder %s36, %s37
    %p51 = scmp.eq.s32.totalorder %s15, 1
    %p52 = por %p50, %p51
    %p54 = scmp.ne.s32.totalorder %s37, %s53
    %p55 = scmp.eq.s32.totalorder %s15, 0
    %p56 = por %p54, %p55
    %s58 = sadd.s32 %s57, 1
    %p61 = scmp.eq.s32.totalorder %s9, 1
    %p62 = scmp.ne.s32.totalorder %s57, %s59
    %p63 = scmp.eq.s32.totalorder %s9, 0
    %p64 = por %p62, %p63
    %p65 = scmp.ne.s32.totalorder %s57, %s59
    %p66 = scmp.eq.s32.totalorder %s14, 1
    %p67 = por %p65, %p66
    %p68 = scmp.ne.s32.totalorder %s59, %s60
    %p69 = scmp.eq.s32.totalorder %s14, 0
    %p70 = por %p68, %p69
    %p71 = scmp.ne.s32.totalorder %s59, %s60
    %p72 = scmp.eq.s32.totalorder %s15, 1
    %p73 = por %p71, %p72
    %p75 = scmp.ne.s32.totalorder %s60, %s74
    %p76 = scmp.eq.s32.totalorder %s15, 0
    %p77 = por %p75, %p76
    %s79 = sadd.s32 %s78, 1
    %p82 = scmp.eq.s32.totalorder %s9, 1
    %p83 = scmp.ne.s32.totalorder %s78, %s80
    %p84 = scmp.eq.s32.totalorder %s9, 0
    %p85 = por %p83, %p84
    %p86 = scmp.ne.s32.totalorder %s78, %s80
    %p87 = scmp.eq.s32.totalorder %s14, 1
    %p88 = por %p86, %p87
    %p89 = scmp.ne.s32.totalorder %s80, %s81
    %p90 = scmp.eq.s32.totalorder %s14, 0
    %p91 = por %p89, %p90
    %p92 = scmp.ne.s32.totalorder %s80, %s81
    %p93 = scmp.eq.s32.totalorder %s15, 1
    %p94 = por %p92, %p93
    %p96 = scmp.ne.s32.totalorder %s81, %s95
    %p97 = scmp.eq.s32.totalorder %s15, 0
    %p98 = por %p96, %p97
    %s99 = ssub.s32 %s16, %s28
    %s100 = ssub.s32 %s17, %s24
    %s101 = sor.u32 %s99, %s100
    %p102 = scmp.eq.s32.totalorder %s101, 0
    %s104 = sadd.s32 %s103, 1
    %s105 = scalar_select %p102, %s103, %s104
    %p108 = pneg %p102
    %p109 = scmp.eq.s32.totalorder %s9, 1
    %p110 = por %p108, %p109
    %p111 = scmp.ne.s32.totalorder %s103, %s106
    %p112 = scmp.eq.s32.totalorder %s9, 0
    %p113 = por %p111, %p112
    %p114 = scmp.ne.s32.totalorder %s103, %s106
    %p115 = scmp.eq.s32.totalorder %s14, 1
    %p116 = por %p114, %p115
    %p117 = scmp.ne.s32.totalorder %s106, %s107
    %p118 = scmp.eq.s32.totalorder %s14, 0
    %p119 = por %p117, %p118
    %p120 = scmp.ne.s32.totalorder %s106, %s107
    %p121 = scmp.eq.s32.totalorder %s15, 1
    %p122 = por %p120, %p121
    %p124 = scmp.ne.s32.totalorder %s107, %s123
    %p125 = scmp.eq.s32.totalorder %s15, 0
    %p126 = por %p124, %p125
    %p127 = scmp.le.s32.totalorder 1, %s9
    %p128 = scmp.lt.s32.totalorder %s9, 3
    %p129 = pnand %p127, %p128
    %p130 = pneg %p129
    // Predicated region
    $region9: #{convtr_pallas.1} parent=5 // pred_check
      _
    $region10: #{convtr_pallas.1} parent=5 // pred_check_branch
      %132 = sbr.rel (%p129) target = $region12
    $region11: #{convtr_pallas.1} parent=5 // pred_region
      %s133 = ssub.s32 %s9, 1
      // Predicated region
      $region13: #{convtr_pallas.1} parent=11 // pred_check
        %p134 = pneg %p70
      $region14: #{convtr_pallas.1} parent=11 // pred_check_branch
        %136 = sbr.rel (%p134) target = $region16
      $region15: #{convtr_pallas.1} parent=11 // pred_region
        _
      $region16: #{convtr_pallas.1} parent=11 // pred_fallthru
        _
      // Predicated region
      $region17: #{convtr_pallas.1} parent=11 // pred_check
        %p137 = pneg %p91
      $region18: #{convtr_pallas.1} parent=11 // pred_check_branch
        %139 = sbr.rel (%p137) target = $region20
      $region19: #{convtr_pallas.1} parent=11 // pred_region
        _
      $region20: #{convtr_pallas.1} parent=11 // pred_fallthru
        _
    $region12: #{convtr_pallas.1} parent=5 // pred_fallthru
      _
    %p140 = scmp.lt.s32.totalorder %s9, 2
    // Predicated region
    $region21: #{convtr_pallas.1} parent=5 // pred_check
      %p141 = pneg %p140
    $region22: #{convtr_pallas.1} parent=5 // pred_check_branch
      %143 = sbr.rel (%p141) target = $region24
    $region23: #{convtr_pallas.1} parent=5 // pred_region
      // Predicated region
      $region25: #{convtr_pallas.1} parent=23 // pred_check
        %p144 = pneg %p43
      $region26: #{convtr_pallas.1} parent=23 // pred_check_branch
        %146 = sbr.rel (%p144) target = $region28
      $region27: #{convtr_pallas.1} parent=23 // pred_region
        %p147 = scmp.lt.s32.totalorder %s16, 1
        %s148 = scalar_select %p147, %s16, 1
        %p149 = scmp.lt.s32.totalorder %s17, 0
        %s150 = scalar_select %p149, %s17, 0
        %s151 = smul.addr %s150, 24
        %s152 = smul.addr %s148, 24
        %s153 = sadd.s32 %s151, %s152
        %s154 = smul.addr %s153, 4
        %s155 = scalar_lea.vmem %s0, %s154
      $region28: #{convtr_pallas.1} parent=23 // pred_fallthru
        _
    $region24: #{convtr_pallas.1} parent=5 // pred_fallthru
      _
    %p156 = scmp.le.s32.totalorder 1, %s9
    %p157 = scmp.lt.s32.totalorder %s9, 3
    %p158 = pnand %p156, %p157
    %p159 = pneg %p158
    // Predicated region
    $region29: #{convtr_pallas.1} parent=5 // pred_check
      _
    $region30: #{convtr_pallas.1} parent=5 // pred_check_branch
      %161 = sbr.rel (%p158) target = $region32
    $region31: #{convtr_pallas.1} parent=5 // pred_region
      %s162 = ssub.s32 %s9, 1
      %p163 = scmp.lt.s32.totalorder %s18, 1
      %s164 = scalar_select %p163, %s18, 1
      %p165 = scmp.lt.s32.totalorder %s19, 0
      %s166 = scalar_select %p165, %s19, 0
      %s167 = smul.addr %s166, 24
      %s168 = smul.addr %s164, 24
      %s169 = sadd.s32 %s167, %s168
      %s170 = smul.addr %s169, 4
      %s171 = scalar_lea.vmem %s0, %s170
      %p172 = pneg %p49
      %p173 = pneg %p46
      %p174 = pneg %p70
      %p175 = pneg %p67
      %p176 = pneg %p91
      %p177 = pneg %p88
      %p178 = pneg %p119
      %p179 = pneg %p116
      %s180 = smul.u32 2, %s19
      %p181 = scmp.lt.s32.totalorder %s18, 1
      %s182 = scalar_select %p181, %s18, 1
      %p183 = scmp.lt.s32.totalorder %s180, 1
      %s184 = scalar_select %p183, %s180, 1
      %s185 = smul.addr %s182, 6
      %s186 = sadd.s32 %s184, %s185
      %s187 = smul.addr %s186, 8
      %s188 = scalar_lea.vmem %s3, %s187
      %p189 = scmp.lt.s32.totalorder %s18, 1
      %s190 = scalar_select %p189, %s18, 1
      %p191 = scmp.lt.s32.totalorder %s19, 0
      %s192 = scalar_select %p191, %s19, 0
      %s193 = smul.addr %s192, 24
      %s194 = smul.addr %s190, 24
      %s195 = sadd.s32 %s193, %s194
      %s196 = smul.addr %s195, 4
      %s197 = scalar_lea.vmem %s0, %s196
      %s198 = smul.u32 2, %s19
      %p199 = scmp.lt.s32.totalorder %s18, 1
      %s200 = scalar_select %p199, %s18, 1
      %p201 = scmp.lt.s32.totalorder %s198, 1
      %s202 = scalar_select %p201, %s198, 1
      %s203 = smul.addr %s200, 6
      %s204 = sadd.s32 %s202, %s203
      %s205 = smul.addr %s204, 8
      %s206 = scalar_lea.vmem %s3, %s205
      %s207 = smul.u32 2, %s19
      %v209 = vld [vmem:[%s1] sm:$0xf]
      %v210 = vld [vmem:[%s1 + $0x4] sm:$0xf]
      %v211 = vld [vmem:[%s1 + $0x8] sm:$0xf]
      %v212 = vld [vmem:[%s1 + $0xc] sm:$0xf]
      %v213 = vld [vmem:[%s2] sm:$0x7]
      %v214 = vlaneseq
      %v215 = vand.u32 %v214, 127
      %v216 = vand.u32 %v215, 1
      %vm217 = vcmp.eq.s32.totalorder %v216, 0
      %v218 = vld [vmem:[%s197] sm:$0x1]
      %v219 = vld [vmem:[%s197 + $0xc] sm:$0x1]
      %v220 = vld [vmem:[%s197 + $0x18] sm:$0x1]
      %v221 = vld [vmem:[%s197 + $0x24] sm:$0x1]
      %v222 = vld [vmem:[%s197 + $0x30] sm:$0x1]
      %v223 = vld [vmem:[%s197 + $0x3c] sm:$0x1]
      %v224 = vld [vmem:[%s197 + $0x48] sm:$0x1]
      %v225 = vld [vmem:[%s197 + $0x54] sm:$0x1]
      %v234 = vunpack.c.l.b16 %v218
      %v235 = vunpack.c.l.b16 %v219
      %v236 = vunpack.c.l.b16 %v220
      %v237 = vunpack.c.l.b16 %v221
      %v238 = vunpack.c.l.b16 %v222
      %v239 = vunpack.c.l.b16 %v223
      %v240 = vunpack.c.l.b16 %v224
      %v241 = vunpack.c.l.b16 %v225
      %v242 = vpack.c.b16 %v234, %v234
      %v243 = vpack.c.b16 %v235, %v235
      %v244 = vpack.c.b16 %v236, %v236
      %v245 = vpack.c.b16 %v237, %v237
      %v246 = vpack.c.b16 %v238, %v238
      %v247 = vpack.c.b16 %v239, %v239
      %v248 = vpack.c.b16 %v240, %v240
      %v249 = vpack.c.b16 %v241, %v241
      %v250 = vunpack.c.l.b16 %v242
      %v251 = vunpack.c.l.b16 %v243
      %v252 = vunpack.c.l.b16 %v244
      %v253 = vunpack.c.l.b16 %v245
      %v254 = vunpack.c.l.b16 %v246
      %v255 = vunpack.c.l.b16 %v247
      %v256 = vunpack.c.l.b16 %v248
      %v257 = vunpack.c.l.b16 %v249
      %v258 = vrot.slane %v251, 7
      %vm259 = vcmask 1041409
      %v260 = vsel %vm259, %v258, %v250
      %v261 = vrot.slane %v252, 6
      %vm262 = vcmask 1042434
      %v263 = vsel %vm262, %v261, %v260
      %v264 = vrot.slane %v253, 5
      %vm265 = vcmask 1043459
      %v266 = vsel %vm265, %v264, %v263
      %v267 = vrot.slane %v254, 4
      %vm268 = vcmask 1044484
      %v269 = vsel %vm268, %v267, %v266
      %v270 = vrot.slane %v255, 3
      %vm271 = vcmask 1045509
      %v272 = vsel %vm271, %v270, %v269
      %v273 = vrot.slane %v256, 2
      %vm274 = vcmask 1046534
      %v275 = vsel %vm274, %v273, %v272
      %v276 = vrot.slane %v257, 1
      %vm277 = vcmask 1047559
      %v278 = vsel %vm277, %v276, %v275
      %v279 = vpack.c.b16 %v278, %v278
      %v280 = vunpack.c.h.b16 %v242
      %v281 = vunpack.c.h.b16 %v243
      %v282 = vunpack.c.h.b16 %v244
      %v283 = vunpack.c.h.b16 %v245
      %v284 = vunpack.c.h.b16 %v246
      %v285 = vunpack.c.h.b16 %v247
      %v286 = vunpack.c.h.b16 %v248
      %v287 = vunpack.c.h.b16 %v249
      %v288 = vrot.slane %v281, 7
      %v289 = vsel %vm259, %v288, %v280
      %v290 = vrot.slane %v282, 6
      %v291 = vsel %vm262, %v290, %v289
      %v292 = vrot.slane %v283, 5
      %v293 = vsel %vm265, %v292, %v291
      %v294 = vrot.slane %v284, 4
      %v295 = vsel %vm268, %v294, %v293
      %v296 = vrot.slane %v285, 3
      %v297 = vsel %vm271, %v296, %v295
      %v298 = vrot.slane %v286, 2
      %v299 = vsel %vm274, %v298, %v297
      %v300 = vrot.slane %v287, 1
      %v301 = vsel %vm277, %v300, %v299
      %v302 = vpack.c.b16 %v301, %v301
      %303 = vrot.lane.b32.xlu0 %v302, 126
      %v304 = vpop.permute.xlu0 %303
      %v305 = vrot.slane %v250, 1
      %v306 = vsel %vm259, %v251, %v305
      %v307 = vrot.slane %v252, 7
      %v308 = vsel %vm262, %v307, %v306
      %v309 = vrot.slane %v253, 6
      %v310 = vsel %vm265, %v309, %v308
      %v311 = vrot.slane %v254, 5
      %v312 = vsel %vm268, %v311, %v310
      %v313 = vrot.slane %v255, 4
      %v314 = vsel %vm271, %v313, %v312
      %v315 = vrot.slane %v256, 3
      %v316 = vsel %vm274, %v315, %v314
      %v317 = vrot.slane %v257, 2
      %v318 = vsel %vm277, %v317, %v316
      %v319 = vpack.c.b16 %v318, %v318
      %320 = vrot.lane.b32.xlu0 %v319, 126
      %v321 = vpop.permute.xlu0 %320
      %vm322 = vcmask 1043456
      %v325 = vsel %vm322, %v279, %v304
      %v329 = vsel %vm322, %v319, %v321
      %v335 = vunpack.c.l.b16 %v209
      %v336 = vunpack.c.l.b16 %v210
      %v337 = vunpack.c.l.b16 %v211
      %v338 = vunpack.c.l.b16 %v212
      %v339 = vpack.c.b16 %v336, %v335
      %v340 = vpack.c.b16 %v338, %v337
      %vm341 = vcmask 261120
      %v343 = vsel %vm341, %v339, 0
      %v346 = vsel %vm341, %v340, 0
      %348 = vmatpush.bf16.msra.mxu0 0
      %349 = vmatpush.bf16.msra.mxu0 0
      %350 = vmatpush.bf16.msra.mxu0 0
      %351 = vmatpush.bf16.msra.mxu0 0
      %352 = vmatpush.bf16.msra.mxu0 0
      %353 = vmatpush.bf16.msra.mxu0 0
      %354 = vmatpush.bf16.msra.mxu0 %v329
      %355 = vmatpush.bf16.msra.mxu0 %v325
      %356 = vmatmul.bf16.gmra.mxu0 %v343
      %v357 = vpop.f32.mrf.mxu0
      %v358 = vadd.f32 0.0, %v357
      %v359 = vpop.f32.mrf.mxu0
      %v360 = vadd.f32 0.0, %v359
      %361 = vmatmul.bf16.gmra.mxu0 %v346
      %v362 = vpop.f32.mrf.mxu0
      %v363 = vadd.f32 0.0, %v362
      %v364 = vpop.f32.mrf.mxu0
      %v365 = vadd.f32 0.0, %v364
      %366 = vdwg.mxu0
      %v367 = vsel %vm217, 1, 0
      %vm368 = vcmp.eq.s32.totalorder %v367, 1
      %v369 = vsel %vm368, %v358, %v360
      %v370 = vsel %vm368, %v363, %v365
      %372 = vset.pattern.permute.xlu0 0
      %373 = vperm.xlu0 %372, %v213
      %v374 = vpop.permute.xlu0 %373
      %v376 = vmul.f32 %v369, %v374
      %377 = vset.pattern.permute.xlu0 1
      %378 = vperm.xlu0 %377, %v213
      %v379 = vpop.permute.xlu0 %378
      %v381 = vadd.f32 %v376, %v379
      %v382 = vmax.f32 %v381, 0.0
      %v384 = vrot.slane %v382, 1
      %v385 = vrot.slane %v382, 2
      %vm388 = vcmask 253952
      %389 = vst.msk [vmem:[%s206] sm:$0x1] %vm388, %v382
      %390 = vst.msk [vmem:[%s206 + $0x10] sm:$0x1] %vm388, %v384
      %391 = vst.msk [vmem:[%s206 + $0x20] sm:$0x1] %vm388, %v385
      %v392 = vmul.f32 %v370, %v374
      %v393 = vadd.f32 %v392, %v379
      %v394 = vmax.f32 %v393, 0.0
      %v396 = vrot.slane %v394, 1
      %v397 = vrot.slane %v394, 2
      %v398 = vperm.slane %v394, 0
      %v399 = vperm.slane %v396, 0
      %v400 = vperm.slane %v397, 0
      %401 = vrot.lane.b32.xlu0 %v398, 32
      %v402 = vpop.permute.xlu0 %401
      %403 = vrot.lane.b32.xlu0 %v399, 32
      %v404 = vpop.permute.xlu0 %403
      %405 = vrot.lane.b32.xlu0 %v400, 32
      %v406 = vpop.permute.xlu0 %405
      %vm410 = vcmask 516352
      %411 = vst.msk [vmem:[%s206] sm:$0x1] %vm410, %v402
      %412 = vst.msk [vmem:[%s206 + $0x10] sm:$0x1] %vm410, %v404
      %413 = vst.msk [vmem:[%s206 + $0x20] sm:$0x1] %vm410, %v406
      %v414 = vld [vmem:[%s197] sm:$0x1]
      %v415 = vld [vmem:[%s197 + $0xc] sm:$0x1]
      %v416 = vld [vmem:[%s197 + $0x18] sm:$0x1]
      %v417 = vld [vmem:[%s197 + $0x24] sm:$0x1]
      %v418 = vld [vmem:[%s197 + $0x30] sm:$0x1]
      %v419 = vld [vmem:[%s197 + $0x3c] sm:$0x1]
      %v420 = vld [vmem:[%s197 + $0x48] sm:$0x1]
      %v421 = vld [vmem:[%s197 + $0x54] sm:$0x1]
      %v422 = vld [vmem:[%s197] sm:$0x2]
      %v423 = vld [vmem:[%s197 + $0xc] sm:$0x2]
      %v424 = vld [vmem:[%s197 + $0x18] sm:$0x2]
      %v425 = vld [vmem:[%s197 + $0x24] sm:$0x2]
      %v426 = vld [vmem:[%s197 + $0x30] sm:$0x2]
      %v427 = vld [vmem:[%s197 + $0x3c] sm:$0x2]
      %v428 = vld [vmem:[%s197 + $0x48] sm:$0x2]
      %v429 = vld [vmem:[%s197 + $0x54] sm:$0x2]
      %v438 = vunpack.c.l.b16 %v414
      %v439 = vunpack.c.l.b16 %v415
      %v440 = vunpack.c.l.b16 %v416
      %v441 = vunpack.c.l.b16 %v417
      %v442 = vunpack.c.l.b16 %v418
      %v443 = vunpack.c.l.b16 %v419
      %v444 = vunpack.c.l.b16 %v420
      %v445 = vunpack.c.l.b16 %v421
      %v446 = vpack.c.b16 %v438, %v438
      %v447 = vpack.c.b16 %v439, %v439
      %v448 = vpack.c.b16 %v440, %v440
      %v449 = vpack.c.b16 %v441, %v441
      %v450 = vpack.c.b16 %v442, %v442
      %v451 = vpack.c.b16 %v443, %v443
      %v452 = vpack.c.b16 %v444, %v444
      %v453 = vpack.c.b16 %v445, %v445
      %v454 = vunpack.c.l.b16 %v446
      %v455 = vunpack.c.l.b16 %v447
      %v456 = vunpack.c.l.b16 %v448
      %v457 = vunpack.c.l.b16 %v449
      %v458 = vunpack.c.l.b16 %v450
      %v459 = vunpack.c.l.b16 %v451
      %v460 = vunpack.c.l.b16 %v452
      %v461 = vunpack.c.l.b16 %v453
      %v462 = vrot.slane %v454, 1
      %v463 = vsel %vm259, %v455, %v462
      %v464 = vrot.slane %v456, 7
      %v465 = vsel %vm262, %v464, %v463
      %v466 = vrot.slane %v457, 6
      %v467 = vsel %vm265, %v466, %v465
      %v468 = vrot.slane %v458, 5
      %v469 = vsel %vm268, %v468, %v467
      %v470 = vrot.slane %v459, 4
      %v471 = vsel %vm271, %v470, %v469
      %v472 = vrot.slane %v460, 3
      %v473 = vsel %vm274, %v472, %v471
      %v474 = vrot.slane %v461, 2
      %v475 = vsel %vm277, %v474, %v473
      %v476 = vpack.c.b16 %v475, %v475
      %477 = vrot.lane.b32.xlu0 %v476, 126
      %v478 = vpop.permute.xlu0 %477
      %v487 = vunpack.c.l.b16 %v422
      %v488 = vunpack.c.l.b16 %v423
      %v489 = vunpack.c.l.b16 %v424
      %v490 = vunpack.c.l.b16 %v425
      %v491 = vunpack.c.l.b16 %v426
      %v492 = vunpack.c.l.b16 %v427
      %v493 = vunpack.c.l.b16 %v428
      %v494 = vunpack.c.l.b16 %v429
      %v495 = vpack.c.b16 %v487, %v487
      %v496 = vpack.c.b16 %v488, %v488
      %v497 = vpack.c.b16 %v489, %v489
      %v498 = vpack.c.b16 %v490, %v490
      %v499 = vpack.c.b16 %v491, %v491
      %v500 = vpack.c.b16 %v492, %v492
      %v501 = vpack.c.b16 %v493, %v493
      %v502 = vpack.c.b16 %v494, %v494
      %v503 = vunpack.c.l.b16 %v495
      %v504 = vunpack.c.l.b16 %v496
      %v505 = vunpack.c.l.b16 %v497
      %v506 = vunpack.c.l.b16 %v498
      %v507 = vunpack.c.l.b16 %v499
      %v508 = vunpack.c.l.b16 %v500
      %v509 = vunpack.c.l.b16 %v501
      %v510 = vunpack.c.l.b16 %v502
      %v511 = vrot.slane %v503, 2
      %v512 = vrot.slane %v504, 1
      %v513 = vsel %vm259, %v512, %v511
      %v514 = vsel %vm262, %v505, %v513
      %v515 = vrot.slane %v506, 7
      %v516 = vsel %vm265, %v515, %v514
      %v517 = vrot.slane %v507, 6
      %v518 = vsel %vm268, %v517, %v516
      %v519 = vrot.slane %v508, 5
      %v520 = vsel %vm271, %v519, %v518
      %v521 = vrot.slane %v509, 4
      %v522 = vsel %vm274, %v521, %v520
      %v523 = vrot.slane %v510, 3
      %v524 = vsel %vm277, %v523, %v522
      %v525 = vpack.c.b16 %v524, %v524
      %526 = vrot.lane.b32.xlu0 %v525, 126
      %v527 = vpop.permute.xlu0 %526
      %v530 = vsel %vm322, %v476, %v478
      %v534 = vsel %vm322, %v525, %v527
      %536 = vmatpush.bf16.msra.mxu0 0
      %537 = vmatpush.bf16.msra.mxu0 0
      %538 = vmatpush.bf16.msra.mxu0 0
      %539 = vmatpush.bf16.msra.mxu0 0
      %540 = vmatpush.bf16.msra.mxu0 0
      %541 = vmatpush.bf16.msra.mxu0 0
      %542 = vmatpush.bf16.msra.mxu0 %v534
      %543 = vmatpush.bf16.msra.mxu0 %v530
      %544 = vmatmul.bf16.gmra.mxu0 %v343
      %v545 = vpop.f32.mrf.mxu0
      %v546 = vadd.f32 0.0, %v545
      %v547 = vpop.f32.mrf.mxu0
      %v548 = vadd.f32 0.0, %v547
      %549 = vmatmul.bf16.gmra.mxu0 %v346
      %v550 = vpop.f32.mrf.mxu0
      %v551 = vadd.f32 0.0, %v550
      %v552 = vpop.f32.mrf.mxu0
      %v553 = vadd.f32 0.0, %v552
      %554 = vdwg.mxu0
      %v555 = vsel %vm368, %v546, %v548
      %v556 = vsel %vm368, %v551, %v553
      %v557 = vmul.f32 %v555, %v374
      %v558 = vadd.f32 %v557, %v379
      %v559 = vmax.f32 %v558, 0.0
      %v561 = vrot.slane %v559, 1
      %v562 = vrot.slane %v559, 2
      %565 = vst.msk [vmem:[%s206 + $0x1] sm:$0x1] %vm388, %v559
      %566 = vst.msk [vmem:[%s206 + $0x11] sm:$0x1] %vm388, %v561
      %567 = vst.msk [vmem:[%s206 + $0x21] sm:$0x1] %vm388, %v562
      %v568 = vmul.f32 %v556, %v374
      %v569 = vadd.f32 %v568, %v379
      %v570 = vmax.f32 %v569, 0.0
      %v572 = vrot.slane %v570, 1
      %v573 = vrot.slane %v570, 2
      %v574 = vperm.slane %v570, 0
      %v575 = vperm.slane %v572, 0
      %v576 = vperm.slane %v573, 0
      %577 = vrot.lane.b32.xlu0 %v574, 32
      %v578 = vpop.permute.xlu0 %577
      %579 = vrot.lane.b32.xlu0 %v575, 32
      %v580 = vpop.permute.xlu0 %579
      %581 = vrot.lane.b32.xlu0 %v576, 32
      %v582 = vpop.permute.xlu0 %581
      %586 = vst.msk [vmem:[%s206 + $0x1] sm:$0x1] %vm410, %v578
      %587 = vst.msk [vmem:[%s206 + $0x11] sm:$0x1] %vm410, %v580
      %588 = vst.msk [vmem:[%s206 + $0x21] sm:$0x1] %vm410, %v582
      %v589 = vld [vmem:[%s197] sm:$0x2]
      %v590 = vld [vmem:[%s197 + $0xc] sm:$0x2]
      %v591 = vld [vmem:[%s197 + $0x18] sm:$0x2]
      %v592 = vld [vmem:[%s197 + $0x24] sm:$0x2]
      %v593 = vld [vmem:[%s197 + $0x30] sm:$0x2]
      %v594 = vld [vmem:[%s197 + $0x3c] sm:$0x2]
      %v595 = vld [vmem:[%s197 + $0x48] sm:$0x2]
      %v596 = vld [vmem:[%s197 + $0x54] sm:$0x2]
      %v605 = vunpack.c.l.b16 %v589
      %v606 = vunpack.c.l.b16 %v590
      %v607 = vunpack.c.l.b16 %v591
      %v608 = vunpack.c.l.b16 %v592
      %v609 = vunpack.c.l.b16 %v593
      %v610 = vunpack.c.l.b16 %v594
      %v611 = vunpack.c.l.b16 %v595
      %v612 = vunpack.c.l.b16 %v596
      %v613 = vpack.c.b16 %v605, %v605
      %v614 = vpack.c.b16 %v606, %v606
      %v615 = vpack.c.b16 %v607, %v607
      %v616 = vpack.c.b16 %v608, %v608
      %v617 = vpack.c.b16 %v609, %v609
      %v618 = vpack.c.b16 %v610, %v610
      %v619 = vpack.c.b16 %v611, %v611
      %v620 = vpack.c.b16 %v612, %v612
      %v621 = vunpack.c.l.b16 %v613
      %v622 = vunpack.c.l.b16 %v614
      %v623 = vunpack.c.l.b16 %v615
      %v624 = vunpack.c.l.b16 %v616
      %v625 = vunpack.c.l.b16 %v617
      %v626 = vunpack.c.l.b16 %v618
      %v627 = vunpack.c.l.b16 %v619
      %v628 = vunpack.c.l.b16 %v620
      %v629 = vrot.slane %v621, 2
      %v630 = vrot.slane %v622, 1
      %v631 = vsel %vm259, %v630, %v629
      %v632 = vsel %vm262, %v623, %v631
      %v633 = vrot.slane %v624, 7
      %v634 = vsel %vm265, %v633, %v632
      %v635 = vrot.slane %v625, 6
      %v636 = vsel %vm268, %v635, %v634
      %v637 = vrot.slane %v626, 5
      %v638 = vsel %vm271, %v637, %v636
      %v639 = vrot.slane %v627, 4
      %v640 = vsel %vm274, %v639, %v638
      %v641 = vrot.slane %v628, 3
      %v642 = vsel %vm277, %v641, %v640
      %v643 = vpack.c.b16 %v642, %v642
      %644 = vrot.lane.b32.xlu0 %v643, 126
      %v645 = vpop.permute.xlu0 %644
      %v646 = vrot.slane %v621, 3
      %v647 = vrot.slane %v622, 2
      %v648 = vsel %vm259, %v647, %v646
      %v649 = vrot.slane %v623, 1
      %v650 = vsel %vm262, %v649, %v648
      %v651 = vsel %vm265, %v624, %v650
      %v652 = vrot.slane %v625, 7
      %v653 = vsel %vm268, %v652, %v651
      %v654 = vrot.slane %v626, 6
      %v655 = vsel %vm271, %v654, %v653
      %v656 = vrot.slane %v627, 5
      %v657 = vsel %vm274, %v656, %v655
      %v658 = vrot.slane %v628, 4
      %v659 = vsel %vm277, %v658, %v657
      %v660 = vpack.c.b16 %v659, %v659
      %661 = vrot.lane.b32.xlu0 %v660, 126
      %v662 = vpop.permute.xlu0 %661
      %v665 = vsel %vm322, %v643, %v645
      %v669 = vsel %vm322, %v660, %v662
      %671 = vmatpush.bf16.msra.mxu0 0
      %672 = vmatpush.bf16.msra.mxu0 0
      %673 = vmatpush.bf16.msra.mxu0 0
      %674 = vmatpush.bf16.msra.mxu0 0
      %675 = vmatpush.bf16.msra.mxu0 0
      %676 = vmatpush.bf16.msra.mxu0 0
      %677 = vmatpush.bf16.msra.mxu0 %v669
      %678 = vmatpush.bf16.msra.mxu0 %v665
      %679 = vmatmul.bf16.gmra.mxu0 %v343
      %v680 = vpop.f32.mrf.mxu0
      %v681 = vadd.f32 0.0, %v680
      %v682 = vpop.f32.mrf.mxu0
      %v683 = vadd.f32 0.0, %v682
      %684 = vmatmul.bf16.gmra.mxu0 %v346
      %v685 = vpop.f32.mrf.mxu0
      %v686 = vadd.f32 0.0, %v685
      %v687 = vpop.f32.mrf.mxu0
      %v688 = vadd.f32 0.0, %v687
      %689 = vdwg.mxu0
      %v690 = vsel %vm368, %v681, %v683
      %v691 = vsel %vm368, %v686, %v688
      %v692 = vmul.f32 %v690, %v374
      %v693 = vadd.f32 %v692, %v379
      %v694 = vmax.f32 %v693, 0.0
      %v696 = vrot.slane %v694, 1
      %v697 = vrot.slane %v694, 2
      %700 = vst.msk [vmem:[%s206 + $0x2] sm:$0x1] %vm388, %v694
      %701 = vst.msk [vmem:[%s206 + $0x12] sm:$0x1] %vm388, %v696
      %702 = vst.msk [vmem:[%s206 + $0x22] sm:$0x1] %vm388, %v697
      %v703 = vmul.f32 %v691, %v374
      %v704 = vadd.f32 %v703, %v379
      %v705 = vmax.f32 %v704, 0.0
      %v707 = vrot.slane %v705, 1
      %v708 = vrot.slane %v705, 2
      %v709 = vperm.slane %v705, 0
      %v710 = vperm.slane %v707, 0
      %v711 = vperm.slane %v708, 0
      %712 = vrot.lane.b32.xlu0 %v709, 32
      %v713 = vpop.permute.xlu0 %712
      %714 = vrot.lane.b32.xlu0 %v710, 32
      %v715 = vpop.permute.xlu0 %714
      %716 = vrot.lane.b32.xlu0 %v711, 32
      %v717 = vpop.permute.xlu0 %716
      %721 = vst.msk [vmem:[%s206 + $0x2] sm:$0x1] %vm410, %v713
      %722 = vst.msk [vmem:[%s206 + $0x12] sm:$0x1] %vm410, %v715
      %723 = vst.msk [vmem:[%s206 + $0x22] sm:$0x1] %vm410, %v717
      %v724 = vld [vmem:[%s197] sm:$0x2]
      %v725 = vld [vmem:[%s197 + $0xc] sm:$0x2]
      %v726 = vld [vmem:[%s197 + $0x18] sm:$0x2]
      %v727 = vld [vmem:[%s197 + $0x24] sm:$0x2]
      %v728 = vld [vmem:[%s197 + $0x30] sm:$0x2]
      %v729 = vld [vmem:[%s197 + $0x3c] sm:$0x2]
      %v730 = vld [vmem:[%s197 + $0x48] sm:$0x2]
      %v731 = vld [vmem:[%s197 + $0x54] sm:$0x2]
      %v732 = vld [vmem:[%s197] sm:$0x4]
      %v733 = vld [vmem:[%s197 + $0xc] sm:$0x4]
      %v734 = vld [vmem:[%s197 + $0x18] sm:$0x4]
      %v735 = vld [vmem:[%s197 + $0x24] sm:$0x4]
      %v736 = vld [vmem:[%s197 + $0x30] sm:$0x4]
      %v737 = vld [vmem:[%s197 + $0x3c] sm:$0x4]
      %v738 = vld [vmem:[%s197 + $0x48] sm:$0x4]
      %v739 = vld [vmem:[%s197 + $0x54] sm:$0x4]
      %v748 = vunpack.c.l.b16 %v724
      %v749 = vunpack.c.l.b16 %v725
      %v750 = vunpack.c.l.b16 %v726
      %v751 = vunpack.c.l.b16 %v727
      %v752 = vunpack.c.l.b16 %v728
      %v753 = vunpack.c.l.b16 %v729
      %v754 = vunpack.c.l.b16 %v730
      %v755 = vunpack.c.l.b16 %v731
      %v756 = vpack.c.b16 %v748, %v748
      %v757 = vpack.c.b16 %v749, %v749
      %v758 = vpack.c.b16 %v750, %v750
      %v759 = vpack.c.b16 %v751, %v751
      %v760 = vpack.c.b16 %v752, %v752
      %v761 = vpack.c.b16 %v753, %v753
      %v762 = vpack.c.b16 %v754, %v754
      %v763 = vpack.c.b16 %v755, %v755
      %v764 = vunpack.c.l.b16 %v756
      %v765 = vunpack.c.l.b16 %v757
      %v766 = vunpack.c.l.b16 %v758
      %v767 = vunpack.c.l.b16 %v759
      %v768 = vunpack.c.l.b16 %v760
      %v769 = vunpack.c.l.b16 %v761
      %v770 = vunpack.c.l.b16 %v762
      %v771 = vunpack.c.l.b16 %v763
      %v772 = vrot.slane %v764, 3
      %v773 = vrot.slane %v765, 2
      %v774 = vsel %vm259, %v773, %v772
      %v775 = vrot.slane %v766, 1
      %v776 = vsel %vm262, %v775, %v774
      %v777 = vsel %vm265, %v767, %v776
      %v778 = vrot.slane %v768, 7
      %v779 = vsel %vm268, %v778, %v777
      %v780 = vrot.slane %v769, 6
      %v781 = vsel %vm271, %v780, %v779
      %v782 = vrot.slane %v770, 5
      %v783 = vsel %vm274, %v782, %v781
      %v784 = vrot.slane %v771, 4
      %v785 = vsel %vm277, %v784, %v783
      %v786 = vpack.c.b16 %v785, %v785
      %787 = vrot.lane.b32.xlu0 %v786, 126
      %v788 = vpop.permute.xlu0 %787
      %v797 = vunpack.c.l.b16 %v732
      %v798 = vunpack.c.l.b16 %v733
      %v799 = vunpack.c.l.b16 %v734
      %v800 = vunpack.c.l.b16 %v735
      %v801 = vunpack.c.l.b16 %v736
      %v802 = vunpack.c.l.b16 %v737
      %v803 = vunpack.c.l.b16 %v738
      %v804 = vunpack.c.l.b16 %v739
      %v805 = vpack.c.b16 %v797, %v797
      %v806 = vpack.c.b16 %v798, %v798
      %v807 = vpack.c.b16 %v799, %v799
      %v808 = vpack.c.b16 %v800, %v800
      %v809 = vpack.c.b16 %v801, %v801
      %v810 = vpack.c.b16 %v802, %v802
      %v811 = vpack.c.b16 %v803, %v803
      %v812 = vpack.c.b16 %v804, %v804
      %v813 = vunpack.c.l.b16 %v805
      %v814 = vunpack.c.l.b16 %v806
      %v815 = vunpack.c.l.b16 %v807
      %v816 = vunpack.c.l.b16 %v808
      %v817 = vunpack.c.l.b16 %v809
      %v818 = vunpack.c.l.b16 %v810
      %v819 = vunpack.c.l.b16 %v811
      %v820 = vunpack.c.l.b16 %v812
      %v821 = vrot.slane %v813, 4
      %v822 = vrot.slane %v814, 3
      %v823 = vsel %vm259, %v822, %v821
      %v824 = vrot.slane %v815, 2
      %v825 = vsel %vm262, %v824, %v823
      %v826 = vrot.slane %v816, 1
      %v827 = vsel %vm265, %v826, %v825
      %v828 = vsel %vm268, %v817, %v827
      %v829 = vrot.slane %v818, 7
      %v830 = vsel %vm271, %v829, %v828
      %v831 = vrot.slane %v819, 6
      %v832 = vsel %vm274, %v831, %v830
      %v833 = vrot.slane %v820, 5
      %v834 = vsel %vm277, %v833, %v832
      %v835 = vpack.c.b16 %v834, %v834
      %836 = vrot.lane.b32.xlu0 %v835, 126
      %v837 = vpop.permute.xlu0 %836
      %v840 = vsel %vm322, %v786, %v788
      %v844 = vsel %vm322, %v835, %v837
      %846 = vmatpush.bf16.msra.mxu0 0
      %847 = vmatpush.bf16.msra.mxu0 0
      %848 = vmatpush.bf16.msra.mxu0 0
      %849 = vmatpush.bf16.msra.mxu0 0
      %850 = vmatpush.bf16.msra.mxu0 0
      %851 = vmatpush.bf16.msra.mxu0 0
      %852 = vmatpush.bf16.msra.mxu0 %v844
      %853 = vmatpush.bf16.msra.mxu0 %v840
      %854 = vmatmul.bf16.gmra.mxu0 %v343
      %v855 = vpop.f32.mrf.mxu0
      %v856 = vadd.f32 0.0, %v855
      %v857 = vpop.f32.mrf.mxu0
      %v858 = vadd.f32 0.0, %v857
      %859 = vmatmul.bf16.gmra.mxu0 %v346
      %v860 = vpop.f32.mrf.mxu0
      %v861 = vadd.f32 0.0, %v860
      %v862 = vpop.f32.mrf.mxu0
      %v863 = vadd.f32 0.0, %v862
      %864 = vdwg.mxu0
      %v865 = vsel %vm368, %v856, %v858
      %v866 = vsel %vm368, %v861, %v863
      %v867 = vmul.f32 %v865, %v374
      %v868 = vadd.f32 %v867, %v379
      %v869 = vmax.f32 %v868, 0.0
      %v871 = vrot.slane %v869, 1
      %v872 = vrot.slane %v869, 2
      %875 = vst.msk [vmem:[%s206 + $0x3] sm:$0x1] %vm388, %v869
      %876 = vst.msk [vmem:[%s206 + $0x13] sm:$0x1] %vm388, %v871
      %877 = vst.msk [vmem:[%s206 + $0x23] sm:$0x1] %vm388, %v872
      %v878 = vmul.f32 %v866, %v374
      %v879 = vadd.f32 %v878, %v379
      %v880 = vmax.f32 %v879, 0.0
      %v882 = vrot.slane %v880, 1
      %v883 = vrot.slane %v880, 2
      %v884 = vperm.slane %v880, 0
      %v885 = vperm.slane %v882, 0
      %v886 = vperm.slane %v883, 0
      %887 = vrot.lane.b32.xlu0 %v884, 32
      %v888 = vpop.permute.xlu0 %887
      %889 = vrot.lane.b32.xlu0 %v885, 32
      %v890 = vpop.permute.xlu0 %889
      %891 = vrot.lane.b32.xlu0 %v886, 32
      %v892 = vpop.permute.xlu0 %891
      %896 = vst.msk [vmem:[%s206 + $0x3] sm:$0x1] %vm410, %v888
      %897 = vst.msk [vmem:[%s206 + $0x13] sm:$0x1] %vm410, %v890
      %898 = vst.msk [vmem:[%s206 + $0x23] sm:$0x1] %vm410, %v892
      %v899 = vld [vmem:[%s197] sm:$0x4]
      %v900 = vld [vmem:[%s197 + $0xc] sm:$0x4]
      %v901 = vld [vmem:[%s197 + $0x18] sm:$0x4]
      %v902 = vld [vmem:[%s197 + $0x24] sm:$0x4]
      %v903 = vld [vmem:[%s197 + $0x30] sm:$0x4]
      %v904 = vld [vmem:[%s197 + $0x3c] sm:$0x4]
      %v905 = vld [vmem:[%s197 + $0x48] sm:$0x4]
      %v906 = vld [vmem:[%s197 + $0x54] sm:$0x4]
      %v915 = vunpack.c.l.b16 %v899
      %v916 = vunpack.c.l.b16 %v900
      %v917 = vunpack.c.l.b16 %v901
      %v918 = vunpack.c.l.b16 %v902
      %v919 = vunpack.c.l.b16 %v903
      %v920 = vunpack.c.l.b16 %v904
      %v921 = vunpack.c.l.b16 %v905
      %v922 = vunpack.c.l.b16 %v906
      %v923 = vpack.c.b16 %v915, %v915
      %v924 = vpack.c.b16 %v916, %v916
      %v925 = vpack.c.b16 %v917, %v917
      %v926 = vpack.c.b16 %v918, %v918
      %v927 = vpack.c.b16 %v919, %v919
      %v928 = vpack.c.b16 %v920, %v920
      %v929 = vpack.c.b16 %v921, %v921
      %v930 = vpack.c.b16 %v922, %v922
      %v931 = vunpack.c.l.b16 %v923
      %v932 = vunpack.c.l.b16 %v924
      %v933 = vunpack.c.l.b16 %v925
      %v934 = vunpack.c.l.b16 %v926
      %v935 = vunpack.c.l.b16 %v927
      %v936 = vunpack.c.l.b16 %v928
      %v937 = vunpack.c.l.b16 %v929
      %v938 = vunpack.c.l.b16 %v930
      %v939 = vrot.slane %v931, 4
      %v940 = vrot.slane %v932, 3
      %v941 = vsel %vm259, %v940, %v939
      %v942 = vrot.slane %v933, 2
      %v943 = vsel %vm262, %v942, %v941
      %v944 = vrot.slane %v934, 1
      %v945 = vsel %vm265, %v944, %v943
      %v946 = vsel %vm268, %v935, %v945
      %v947 = vrot.slane %v936, 7
      %v948 = vsel %vm271, %v947, %v946
      %v949 = vrot.slane %v937, 6
      %v950 = vsel %vm274, %v949, %v948
      %v951 = vrot.slane %v938, 5
      %v952 = vsel %vm277, %v951, %v950
      %v953 = vpack.c.b16 %v952, %v952
      %954 = vrot.lane.b32.xlu0 %v953, 126
      %v955 = vpop.permute.xlu0 %954
      %v956 = vrot.slane %v931, 5
      %v957 = vrot.slane %v932, 4
      %v958 = vsel %vm259, %v957, %v956
      %v959 = vrot.slane %v933, 3
      %v960 = vsel %vm262, %v959, %v958
      %v961 = vrot.slane %v934, 2
      %v962 = vsel %vm265, %v961, %v960
      %v963 = vrot.slane %v935, 1
      %v964 = vsel %vm268, %v963, %v962
      %v965 = vsel %vm271, %v936, %v964
      %v966 = vrot.slane %v937, 7
      %v967 = vsel %vm274, %v966, %v965
      %v968 = vrot.slane %v938, 6
      %v969 = vsel %vm277, %v968, %v967
      %v970 = vpack.c.b16 %v969, %v969
      %971 = vrot.lane.b32.xlu0 %v970, 126
      %v972 = vpop.permute.xlu0 %971
      %v975 = vsel %vm322, %v953, %v955
      %v979 = vsel %vm322, %v970, %v972
      %981 = vmatpush.bf16.msra.mxu0 0
      %982 = vmatpush.bf16.msra.mxu0 0
      %983 = vmatpush.bf16.msra.mxu0 0
      %984 = vmatpush.bf16.msra.mxu0 0
      %985 = vmatpush.bf16.msra.mxu0 0
      %986 = vmatpush.bf16.msra.mxu0 0
      %987 = vmatpush.bf16.msra.mxu0 %v979
      %988 = vmatpush.bf16.msra.mxu0 %v975
      %989 = vmatmul.bf16.gmra.mxu0 %v343
      %v990 = vpop.f32.mrf.mxu0
      %v991 = vadd.f32 0.0, %v990
      %v992 = vpop.f32.mrf.mxu0
      %v993 = vadd.f32 0.0, %v992
      %994 = vmatmul.bf16.gmra.mxu0 %v346
      %v995 = vpop.f32.mrf.mxu0
      %v996 = vadd.f32 0.0, %v995
      %v997 = vpop.f32.mrf.mxu0
      %v998 = vadd.f32 0.0, %v997
      %999 = vdwg.mxu0
      %v1000 = vsel %vm368, %v991, %v993
      %v1001 = vsel %vm368, %v996, %v998
      %v1002 = vmul.f32 %v1000, %v374
      %v1003 = vadd.f32 %v1002, %v379
      %v1004 = vmax.f32 %v1003, 0.0
      %v1006 = vrot.slane %v1004, 1
      %v1007 = vrot.slane %v1004, 2
      %1010 = vst.msk [vmem:[%s206 + $0x4] sm:$0x1] %vm388, %v1004
      %1011 = vst.msk [vmem:[%s206 + $0x14] sm:$0x1] %vm388, %v1006
      %1012 = vst.msk [vmem:[%s206 + $0x24] sm:$0x1] %vm388, %v1007
      %v1013 = vmul.f32 %v1001, %v374
      %v1014 = vadd.f32 %v1013, %v379
      %v1015 = vmax.f32 %v1014, 0.0
      %v1017 = vrot.slane %v1015, 1
      %v1018 = vrot.slane %v1015, 2
      %v1019 = vperm.slane %v1015, 0
      %v1020 = vperm.slane %v1017, 0
      %v1021 = vperm.slane %v1018, 0
      %1022 = vrot.lane.b32.xlu0 %v1019, 32
      %v1023 = vpop.permute.xlu0 %1022
      %1024 = vrot.lane.b32.xlu0 %v1020, 32
      %v1025 = vpop.permute.xlu0 %1024
      %1026 = vrot.lane.b32.xlu0 %v1021, 32
      %v1027 = vpop.permute.xlu0 %1026
      %1031 = vst.msk [vmem:[%s206 + $0x4] sm:$0x1] %vm410, %v1023
      %1032 = vst.msk [vmem:[%s206 + $0x14] sm:$0x1] %vm410, %v1025
      %1033 = vst.msk [vmem:[%s206 + $0x24] sm:$0x1] %vm410, %v1027
      %v1034 = vld [vmem:[%s197] sm:$0x4]
      %v1035 = vld [vmem:[%s197 + $0xc] sm:$0x4]
      %v1036 = vld [vmem:[%s197 + $0x18] sm:$0x4]
      %v1037 = vld [vmem:[%s197 + $0x24] sm:$0x4]
      %v1038 = vld [vmem:[%s197 + $0x30] sm:$0x4]
      %v1039 = vld [vmem:[%s197 + $0x3c] sm:$0x4]
      %v1040 = vld [vmem:[%s197 + $0x48] sm:$0x4]
      %v1041 = vld [vmem:[%s197 + $0x54] sm:$0x4]
      %v1042 = vld [vmem:[%s197] sm:$0x8]
      %v1043 = vld [vmem:[%s197 + $0xc] sm:$0x8]
      %v1044 = vld [vmem:[%s197 + $0x18] sm:$0x8]
      %v1045 = vld [vmem:[%s197 + $0x24] sm:$0x8]
      %v1046 = vld [vmem:[%s197 + $0x30] sm:$0x8]
      %v1047 = vld [vmem:[%s197 + $0x3c] sm:$0x8]
      %v1048 = vld [vmem:[%s197 + $0x48] sm:$0x8]
      %v1049 = vld [vmem:[%s197 + $0x54] sm:$0x8]
      %v1058 = vunpack.c.l.b16 %v1034
      %v1059 = vunpack.c.l.b16 %v1035
      %v1060 = vunpack.c.l.b16 %v1036
      %v1061 = vunpack.c.l.b16 %v1037
      %v1062 = vunpack.c.l.b16 %v1038
      %v1063 = vunpack.c.l.b16 %v1039
      %v1064 = vunpack.c.l.b16 %v1040
      %v1065 = vunpack.c.l.b16 %v1041
      %v1066 = vpack.c.b16 %v1058, %v1058
      %v1067 = vpack.c.b16 %v1059, %v1059
      %v1068 = vpack.c.b16 %v1060, %v1060
      %v1069 = vpack.c.b16 %v1061, %v1061
      %v1070 = vpack.c.b16 %v1062, %v1062
      %v1071 = vpack.c.b16 %v1063, %v1063
      %v1072 = vpack.c.b16 %v1064, %v1064
      %v1073 = vpack.c.b16 %v1065, %v1065
      %v1074 = vunpack.c.l.b16 %v1066
      %v1075 = vunpack.c.l.b16 %v1067
      %v1076 = vunpack.c.l.b16 %v1068
      %v1077 = vunpack.c.l.b16 %v1069
      %v1078 = vunpack.c.l.b16 %v1070
      %v1079 = vunpack.c.l.b16 %v1071
      %v1080 = vunpack.c.l.b16 %v1072
      %v1081 = vunpack.c.l.b16 %v1073
      %v1082 = vrot.slane %v1074, 5
      %v1083 = vrot.slane %v1075, 4
      %v1084 = vsel %vm259, %v1083, %v1082
      %v1085 = vrot.slane %v1076, 3
      %v1086 = vsel %vm262, %v1085, %v1084
      %v1087 = vrot.slane %v1077, 2
      %v1088 = vsel %vm265, %v1087, %v1086
      %v1089 = vrot.slane %v1078, 1
      %v1090 = vsel %vm268, %v1089, %v1088
      %v1091 = vsel %vm271, %v1079, %v1090
      %v1092 = vrot.slane %v1080, 7
      %v1093 = vsel %vm274, %v1092, %v1091
      %v1094 = vrot.slane %v1081, 6
      %v1095 = vsel %vm277, %v1094, %v1093
      %v1096 = vpack.c.b16 %v1095, %v1095
      %1097 = vrot.lane.b32.xlu0 %v1096, 126
      %v1098 = vpop.permute.xlu0 %1097
      %v1107 = vunpack.c.l.b16 %v1042
      %v1108 = vunpack.c.l.b16 %v1043
      %v1109 = vunpack.c.l.b16 %v1044
      %v1110 = vunpack.c.l.b16 %v1045
      %v1111 = vunpack.c.l.b16 %v1046
      %v1112 = vunpack.c.l.b16 %v1047
      %v1113 = vunpack.c.l.b16 %v1048
      %v1114 = vunpack.c.l.b16 %v1049
      %v1115 = vpack.c.b16 %v1107, %v1107
      %v1116 = vpack.c.b16 %v1108, %v1108
      %v1117 = vpack.c.b16 %v1109, %v1109
      %v1118 = vpack.c.b16 %v1110, %v1110
      %v1119 = vpack.c.b16 %v1111, %v1111
      %v1120 = vpack.c.b16 %v1112, %v1112
      %v1121 = vpack.c.b16 %v1113, %v1113
      %v1122 = vpack.c.b16 %v1114, %v1114
      %v1123 = vunpack.c.l.b16 %v1115
      %v1124 = vunpack.c.l.b16 %v1116
      %v1125 = vunpack.c.l.b16 %v1117
      %v1126 = vunpack.c.l.b16 %v1118
      %v1127 = vunpack.c.l.b16 %v1119
      %v1128 = vunpack.c.l.b16 %v1120
      %v1129 = vunpack.c.l.b16 %v1121
      %v1130 = vunpack.c.l.b16 %v1122
      %v1131 = vrot.slane %v1123, 6
      %v1132 = vrot.slane %v1124, 5
      %v1133 = vsel %vm259, %v1132, %v1131
      %v1134 = vrot.slane %v1125, 4
      %v1135 = vsel %vm262, %v1134, %v1133
      %v1136 = vrot.slane %v1126, 3
      %v1137 = vsel %vm265, %v1136, %v1135
      %v1138 = vrot.slane %v1127, 2
      %v1139 = vsel %vm268, %v1138, %v1137
      %v1140 = vrot.slane %v1128, 1
      %v1141 = vsel %vm271, %v1140, %v1139
      %v1142 = vsel %vm274, %v1129, %v1141
      %v1143 = vrot.slane %v1130, 7
      %v1144 = vsel %vm277, %v1143, %v1142
      %v1145 = vpack.c.b16 %v1144, %v1144
      %1146 = vrot.lane.b32.xlu0 %v1145, 126
      %v1147 = vpop.permute.xlu0 %1146
      %v1150 = vsel %vm322, %v1096, %v1098
      %v1154 = vsel %vm322, %v1145, %v1147
      %1156 = vmatpush.bf16.msra.mxu0 0
      %1157 = vmatpush.bf16.msra.mxu0 0
      %1158 = vmatpush.bf16.msra.mxu0 0
      %1159 = vmatpush.bf16.msra.mxu0 0
      %1160 = vmatpush.bf16.msra.mxu0 0
      %1161 = vmatpush.bf16.msra.mxu0 0
      %1162 = vmatpush.bf16.msra.mxu0 %v1154
      %1163 = vmatpush.bf16.msra.mxu0 %v1150
      %1164 = vmatmul.bf16.gmra.mxu0 %v343
      %v1165 = vpop.f32.mrf.mxu0
      %v1166 = vadd.f32 0.0, %v1165
      %v1167 = vpop.f32.mrf.mxu0
      %v1168 = vadd.f32 0.0, %v1167
      %1169 = vmatmul.bf16.gmra.mxu0 %v346
      %v1170 = vpop.f32.mrf.mxu0
      %v1171 = vadd.f32 0.0, %v1170
      %v1172 = vpop.f32.mrf.mxu0
      %v1173 = vadd.f32 0.0, %v1172
      %1174 = vdwg.mxu0
      %v1175 = vsel %vm368, %v1166, %v1168
      %v1176 = vsel %vm368, %v1171, %v1173
      %v1177 = vmul.f32 %v1175, %v374
      %v1178 = vadd.f32 %v1177, %v379
      %v1179 = vmax.f32 %v1178, 0.0
      %v1181 = vrot.slane %v1179, 1
      %v1182 = vrot.slane %v1179, 2
      %1185 = vst.msk [vmem:[%s206 + $0x5] sm:$0x1] %vm388, %v1179
      %1186 = vst.msk [vmem:[%s206 + $0x15] sm:$0x1] %vm388, %v1181
      %1187 = vst.msk [vmem:[%s206 + $0x25] sm:$0x1] %vm388, %v1182
      %v1188 = vmul.f32 %v1176, %v374
      %v1189 = vadd.f32 %v1188, %v379
      %v1190 = vmax.f32 %v1189, 0.0
      %v1192 = vrot.slane %v1190, 1
      %v1193 = vrot.slane %v1190, 2
      %v1194 = vperm.slane %v1190, 0
      %v1195 = vperm.slane %v1192, 0
      %v1196 = vperm.slane %v1193, 0
      %1197 = vrot.lane.b32.xlu0 %v1194, 32
      %v1198 = vpop.permute.xlu0 %1197
      %1199 = vrot.lane.b32.xlu0 %v1195, 32
      %v1200 = vpop.permute.xlu0 %1199
      %1201 = vrot.lane.b32.xlu0 %v1196, 32
      %v1202 = vpop.permute.xlu0 %1201
      %1206 = vst.msk [vmem:[%s206 + $0x5] sm:$0x1] %vm410, %v1198
      %1207 = vst.msk [vmem:[%s206 + $0x15] sm:$0x1] %vm410, %v1200
      %1208 = vst.msk [vmem:[%s206 + $0x25] sm:$0x1] %vm410, %v1202
      %v1209 = vld [vmem:[%s197] sm:$0x8]
      %v1210 = vld [vmem:[%s197 + $0xc] sm:$0x8]
      %v1211 = vld [vmem:[%s197 + $0x18] sm:$0x8]
      %v1212 = vld [vmem:[%s197 + $0x24] sm:$0x8]
      %v1213 = vld [vmem:[%s197 + $0x30] sm:$0x8]
      %v1214 = vld [vmem:[%s197 + $0x3c] sm:$0x8]
      %v1215 = vld [vmem:[%s197 + $0x48] sm:$0x8]
      %v1216 = vld [vmem:[%s197 + $0x54] sm:$0x8]
      %v1225 = vunpack.c.l.b16 %v1209
      %v1226 = vunpack.c.l.b16 %v1210
      %v1227 = vunpack.c.l.b16 %v1211
      %v1228 = vunpack.c.l.b16 %v1212
      %v1229 = vunpack.c.l.b16 %v1213
      %v1230 = vunpack.c.l.b16 %v1214
      %v1231 = vunpack.c.l.b16 %v1215
      %v1232 = vunpack.c.l.b16 %v1216
      %v1233 = vpack.c.b16 %v1225, %v1225
      %v1234 = vpack.c.b16 %v1226, %v1226
      %v1235 = vpack.c.b16 %v1227, %v1227
      %v1236 = vpack.c.b16 %v1228, %v1228
      %v1237 = vpack.c.b16 %v1229, %v1229
      %v1238 = vpack.c.b16 %v1230, %v1230
      %v1239 = vpack.c.b16 %v1231, %v1231
      %v1240 = vpack.c.b16 %v1232, %v1232
      %v1241 = vunpack.c.l.b16 %v1233
      %v1242 = vunpack.c.l.b16 %v1234
      %v1243 = vunpack.c.l.b16 %v1235
      %v1244 = vunpack.c.l.b16 %v1236
      %v1245 = vunpack.c.l.b16 %v1237
      %v1246 = vunpack.c.l.b16 %v1238
      %v1247 = vunpack.c.l.b16 %v1239
      %v1248 = vunpack.c.l.b16 %v1240
      %v1249 = vrot.slane %v1241, 6
      %v1250 = vrot.slane %v1242, 5
      %v1251 = vsel %vm259, %v1250, %v1249
      %v1252 = vrot.slane %v1243, 4
      %v1253 = vsel %vm262, %v1252, %v1251
      %v1254 = vrot.slane %v1244, 3
      %v1255 = vsel %vm265, %v1254, %v1253
      %v1256 = vrot.slane %v1245, 2
      %v1257 = vsel %vm268, %v1256, %v1255
      %v1258 = vrot.slane %v1246, 1
      %v1259 = vsel %vm271, %v1258, %v1257
      %v1260 = vsel %vm274, %v1247, %v1259
      %v1261 = vrot.slane %v1248, 7
      %v1262 = vsel %vm277, %v1261, %v1260
      %v1263 = vpack.c.b16 %v1262, %v1262
      %1264 = vrot.lane.b32.xlu0 %v1263, 126
      %v1265 = vpop.permute.xlu0 %1264
      %v1266 = vrot.slane %v1241, 7
      %v1267 = vrot.slane %v1242, 6
      %v1268 = vsel %vm259, %v1267, %v1266
      %v1269 = vrot.slane %v1243, 5
      %v1270 = vsel %vm262, %v1269, %v1268
      %v1271 = vrot.slane %v1244, 4
      %v1272 = vsel %vm265, %v1271, %v1270
      %v1273 = vrot.slane %v1245, 3
      %v1274 = vsel %vm268, %v1273, %v1272
      %v1275 = vrot.slane %v1246, 2
      %v1276 = vsel %vm271, %v1275, %v1274
      %v1277 = vrot.slane %v1247, 1
      %v1278 = vsel %vm274, %v1277, %v1276
      %v1279 = vsel %vm277, %v1248, %v1278
      %v1280 = vpack.c.b16 %v1279, %v1279
      %1281 = vrot.lane.b32.xlu0 %v1280, 126
      %v1282 = vpop.permute.xlu0 %1281
      %v1285 = vsel %vm322, %v1263, %v1265
      %v1289 = vsel %vm322, %v1280, %v1282
      %1291 = vmatpush.bf16.msra.mxu0 0
      %1292 = vmatpush.bf16.msra.mxu0 0
      %1293 = vmatpush.bf16.msra.mxu0 0
      %1294 = vmatpush.bf16.msra.mxu0 0
      %1295 = vmatpush.bf16.msra.mxu0 0
      %1296 = vmatpush.bf16.msra.mxu0 0
      %1297 = vmatpush.bf16.msra.mxu0 %v1289
      %1298 = vmatpush.bf16.msra.mxu0 %v1285
      %1299 = vmatmul.bf16.gmra.mxu0 %v343
      %v1300 = vpop.f32.mrf.mxu0
      %v1301 = vadd.f32 0.0, %v1300
      %v1302 = vpop.f32.mrf.mxu0
      %v1303 = vadd.f32 0.0, %v1302
      %1304 = vmatmul.bf16.gmra.mxu0 %v346
      %v1305 = vpop.f32.mrf.mxu0
      %v1306 = vadd.f32 0.0, %v1305
      %v1307 = vpop.f32.mrf.mxu0
      %v1308 = vadd.f32 0.0, %v1307
      %1309 = vdwg.mxu0
      %v1310 = vsel %vm368, %v1301, %v1303
      %v1311 = vsel %vm368, %v1306, %v1308
      %v1312 = vmul.f32 %v1310, %v374
      %v1313 = vadd.f32 %v1312, %v379
      %v1314 = vmax.f32 %v1313, 0.0
      %v1316 = vrot.slane %v1314, 1
      %v1317 = vrot.slane %v1314, 2
      %1320 = vst.msk [vmem:[%s206 + $0x6] sm:$0x1] %vm388, %v1314
      %1321 = vst.msk [vmem:[%s206 + $0x16] sm:$0x1] %vm388, %v1316
      %1322 = vst.msk [vmem:[%s206 + $0x26] sm:$0x1] %vm388, %v1317
      %v1323 = vmul.f32 %v1311, %v374
      %v1324 = vadd.f32 %v1323, %v379
      %v1325 = vmax.f32 %v1324, 0.0
      %v1327 = vrot.slane %v1325, 1
      %v1328 = vrot.slane %v1325, 2
      %v1329 = vperm.slane %v1325, 0
      %v1330 = vperm.slane %v1327, 0
      %v1331 = vperm.slane %v1328, 0
      %1332 = vrot.lane.b32.xlu0 %v1329, 32
      %v1333 = vpop.permute.xlu0 %1332
      %1334 = vrot.lane.b32.xlu0 %v1330, 32
      %v1335 = vpop.permute.xlu0 %1334
      %1336 = vrot.lane.b32.xlu0 %v1331, 32
      %v1337 = vpop.permute.xlu0 %1336
      %1341 = vst.msk [vmem:[%s206 + $0x6] sm:$0x1] %vm410, %v1333
      %1342 = vst.msk [vmem:[%s206 + $0x16] sm:$0x1] %vm410, %v1335
      %1343 = vst.msk [vmem:[%s206 + $0x26] sm:$0x1] %vm410, %v1337
      %v1344 = vld [vmem:[%s197] sm:$0x8]
      %v1345 = vld [vmem:[%s197 + $0xc] sm:$0x8]
      %v1346 = vld [vmem:[%s197 + $0x18] sm:$0x8]
      %v1347 = vld [vmem:[%s197 + $0x24] sm:$0x8]
      %v1348 = vld [vmem:[%s197 + $0x30] sm:$0x8]
      %v1349 = vld [vmem:[%s197 + $0x3c] sm:$0x8]
      %v1350 = vld [vmem:[%s197 + $0x48] sm:$0x8]
      %v1351 = vld [vmem:[%s197 + $0x54] sm:$0x8]
      %v1352 = vld [vmem:[%s197 + $0x4] sm:$0x1]
      %v1353 = vld [vmem:[%s197 + $0x10] sm:$0x1]
      %v1354 = vld [vmem:[%s197 + $0x1c] sm:$0x1]
      %v1355 = vld [vmem:[%s197 + $0x28] sm:$0x1]
      %v1356 = vld [vmem:[%s197 + $0x34] sm:$0x1]
      %v1357 = vld [vmem:[%s197 + $0x40] sm:$0x1]
      %v1358 = vld [vmem:[%s197 + $0x4c] sm:$0x1]
      %v1359 = vld [vmem:[%s197 + $0x58] sm:$0x1]
      %v1368 = vunpack.c.l.b16 %v1344
      %v1369 = vunpack.c.l.b16 %v1345
      %v1370 = vunpack.c.l.b16 %v1346
      %v1371 = vunpack.c.l.b16 %v1347
      %v1372 = vunpack.c.l.b16 %v1348
      %v1373 = vunpack.c.l.b16 %v1349
      %v1374 = vunpack.c.l.b16 %v1350
      %v1375 = vunpack.c.l.b16 %v1351
      %v1376 = vpack.c.b16 %v1368, %v1368
      %v1377 = vpack.c.b16 %v1369, %v1369
      %v1378 = vpack.c.b16 %v1370, %v1370
      %v1379 = vpack.c.b16 %v1371, %v1371
      %v1380 = vpack.c.b16 %v1372, %v1372
      %v1381 = vpack.c.b16 %v1373, %v1373
      %v1382 = vpack.c.b16 %v1374, %v1374
      %v1383 = vpack.c.b16 %v1375, %v1375
      %v1384 = vunpack.c.l.b16 %v1376
      %v1385 = vunpack.c.l.b16 %v1377
      %v1386 = vunpack.c.l.b16 %v1378
      %v1387 = vunpack.c.l.b16 %v1379
      %v1388 = vunpack.c.l.b16 %v1380
      %v1389 = vunpack.c.l.b16 %v1381
      %v1390 = vunpack.c.l.b16 %v1382
      %v1391 = vunpack.c.l.b16 %v1383
      %v1392 = vrot.slane %v1384, 7
      %v1393 = vrot.slane %v1385, 6
      %v1394 = vsel %vm259, %v1393, %v1392
      %v1395 = vrot.slane %v1386, 5
      %v1396 = vsel %vm262, %v1395, %v1394
      %v1397 = vrot.slane %v1387, 4
      %v1398 = vsel %vm265, %v1397, %v1396
      %v1399 = vrot.slane %v1388, 3
      %v1400 = vsel %vm268, %v1399, %v1398
      %v1401 = vrot.slane %v1389, 2
      %v1402 = vsel %vm271, %v1401, %v1400
      %v1403 = vrot.slane %v1390, 1
      %v1404 = vsel %vm274, %v1403, %v1402
      %v1405 = vsel %vm277, %v1391, %v1404
      %v1406 = vpack.c.b16 %v1405, %v1405
      %1407 = vrot.lane.b32.xlu0 %v1406, 126
      %v1408 = vpop.permute.xlu0 %1407
      %v1417 = vunpack.c.l.b16 %v1352
      %v1418 = vunpack.c.l.b16 %v1353
      %v1419 = vunpack.c.l.b16 %v1354
      %v1420 = vunpack.c.l.b16 %v1355
      %v1421 = vunpack.c.l.b16 %v1356
      %v1422 = vunpack.c.l.b16 %v1357
      %v1423 = vunpack.c.l.b16 %v1358
      %v1424 = vunpack.c.l.b16 %v1359
      %v1425 = vpack.c.b16 %v1417, %v1417
      %v1426 = vpack.c.b16 %v1418, %v1418
      %v1427 = vpack.c.b16 %v1419, %v1419
      %v1428 = vpack.c.b16 %v1420, %v1420
      %v1429 = vpack.c.b16 %v1421, %v1421
      %v1430 = vpack.c.b16 %v1422, %v1422
      %v1431 = vpack.c.b16 %v1423, %v1423
      %v1432 = vpack.c.b16 %v1424, %v1424
      %v1433 = vunpack.c.l.b16 %v1425
      %v1434 = vunpack.c.l.b16 %v1426
      %v1435 = vunpack.c.l.b16 %v1427
      %v1436 = vunpack.c.l.b16 %v1428
      %v1437 = vunpack.c.l.b16 %v1429
      %v1438 = vunpack.c.l.b16 %v1430
      %v1439 = vunpack.c.l.b16 %v1431
      %v1440 = vunpack.c.l.b16 %v1432
      %v1441 = vrot.slane %v1434, 7
      %v1442 = vsel %vm259, %v1441, %v1433
      %v1443 = vrot.slane %v1435, 6
      %v1444 = vsel %vm262, %v1443, %v1442
      %v1445 = vrot.slane %v1436, 5
      %v1446 = vsel %vm265, %v1445, %v1444
      %v1447 = vrot.slane %v1437, 4
      %v1448 = vsel %vm268, %v1447, %v1446
      %v1449 = vrot.slane %v1438, 3
      %v1450 = vsel %vm271, %v1449, %v1448
      %v1451 = vrot.slane %v1439, 2
      %v1452 = vsel %vm274, %v1451, %v1450
      %v1453 = vrot.slane %v1440, 1
      %v1454 = vsel %vm277, %v1453, %v1452
      %v1455 = vpack.c.b16 %v1454, %v1454
      %v1456 = vunpack.c.h.b16 %v1425
      %v1457 = vunpack.c.h.b16 %v1426
      %v1458 = vunpack.c.h.b16 %v1427
      %v1459 = vunpack.c.h.b16 %v1428
      %v1460 = vunpack.c.h.b16 %v1429
      %v1461 = vunpack.c.h.b16 %v1430
      %v1462 = vunpack.c.h.b16 %v1431
      %v1463 = vunpack.c.h.b16 %v1432
      %v1464 = vrot.slane %v1457, 7
      %v1465 = vsel %vm259, %v1464, %v1456
      %v1466 = vrot.slane %v1458, 6
      %v1467 = vsel %vm262, %v1466, %v1465
      %v1468 = vrot.slane %v1459, 5
      %v1469 = vsel %vm265, %v1468, %v1467
      %v1470 = vrot.slane %v1460, 4
      %v1471 = vsel %vm268, %v1470, %v1469
      %v1472 = vrot.slane %v1461, 3
      %v1473 = vsel %vm271, %v1472, %v1471
      %v1474 = vrot.slane %v1462, 2
      %v1475 = vsel %vm274, %v1474, %v1473
      %v1476 = vrot.slane %v1463, 1
      %v1477 = vsel %vm277, %v1476, %v1475
      %v1478 = vpack.c.b16 %v1477, %v1477
      %1479 = vrot.lane.b32.xlu0 %v1478, 126
      %v1480 = vpop.permute.xlu0 %1479
      %v1483 = vsel %vm322, %v1406, %v1408
      %v1487 = vsel %vm322, %v1455, %v1480
      %1489 = vmatpush.bf16.msra.mxu0 0
      %1490 = vmatpush.bf16.msra.mxu0 0
      %1491 = vmatpush.bf16.msra.mxu0 0
      %1492 = vmatpush.bf16.msra.mxu0 0
      %1493 = vmatpush.bf16.msra.mxu0 0
      %1494 = vmatpush.bf16.msra.mxu0 0
      %1495 = vmatpush.bf16.msra.mxu0 %v1487
      %1496 = vmatpush.bf16.msra.mxu0 %v1483
      %1497 = vmatmul.bf16.gmra.mxu0 %v343
      %v1498 = vpop.f32.mrf.mxu0
      %v1499 = vadd.f32 0.0, %v1498
      %v1500 = vpop.f32.mrf.mxu0
      %v1501 = vadd.f32 0.0, %v1500
      %1502 = vmatmul.bf16.gmra.mxu0 %v346
      %v1503 = vpop.f32.mrf.mxu0
      %v1504 = vadd.f32 0.0, %v1503
      %v1505 = vpop.f32.mrf.mxu0
      %v1506 = vadd.f32 0.0, %v1505
      %1507 = vdwg.mxu0
      %v1508 = vsel %vm368, %v1499, %v1501
      %v1509 = vsel %vm368, %v1504, %v1506
      %v1510 = vmul.f32 %v1508, %v374
      %v1511 = vadd.f32 %v1510, %v379
      %v1512 = vmax.f32 %v1511, 0.0
      %v1514 = vrot.slane %v1512, 1
      %v1515 = vrot.slane %v1512, 2
      %1518 = vst.msk [vmem:[%s206 + $0x7] sm:$0x1] %vm388, %v1512
      %1519 = vst.msk [vmem:[%s206 + $0x17] sm:$0x1] %vm388, %v1514
      %1520 = vst.msk [vmem:[%s206 + $0x27] sm:$0x1] %vm388, %v1515
      %v1521 = vmul.f32 %v1509, %v374
      %v1522 = vadd.f32 %v1521, %v379
      %v1523 = vmax.f32 %v1522, 0.0
      %v1525 = vrot.slane %v1523, 1
      %v1526 = vrot.slane %v1523, 2
      %v1527 = vperm.slane %v1523, 0
      %v1528 = vperm.slane %v1525, 0
      %v1529 = vperm.slane %v1526, 0
      %1530 = vrot.lane.b32.xlu0 %v1527, 32
      %v1531 = vpop.permute.xlu0 %1530
      %1532 = vrot.lane.b32.xlu0 %v1528, 32
      %v1533 = vpop.permute.xlu0 %1532
      %1534 = vrot.lane.b32.xlu0 %v1529, 32
      %v1535 = vpop.permute.xlu0 %1534
      %1539 = vst.msk [vmem:[%s206 + $0x7] sm:$0x1] %vm410, %v1531
      %1540 = vst.msk [vmem:[%s206 + $0x17] sm:$0x1] %vm410, %v1533
      %1541 = vst.msk [vmem:[%s206 + $0x27] sm:$0x1] %vm410, %v1535
      %v1542 = vld [vmem:[%s197 + $0x4] sm:$0x1]
      %v1543 = vld [vmem:[%s197 + $0x10] sm:$0x1]
      %v1544 = vld [vmem:[%s197 + $0x1c] sm:$0x1]
      %v1545 = vld [vmem:[%s197 + $0x28] sm:$0x1]
      %v1546 = vld [vmem:[%s197 + $0x34] sm:$0x1]
      %v1547 = vld [vmem:[%s197 + $0x40] sm:$0x1]
      %v1548 = vld [vmem:[%s197 + $0x4c] sm:$0x1]
      %v1549 = vld [vmem:[%s197 + $0x58] sm:$0x1]
      %v1558 = vunpack.c.l.b16 %v1542
      %v1559 = vunpack.c.l.b16 %v1543
      %v1560 = vunpack.c.l.b16 %v1544
      %v1561 = vunpack.c.l.b16 %v1545
      %v1562 = vunpack.c.l.b16 %v1546
      %v1563 = vunpack.c.l.b16 %v1547
      %v1564 = vunpack.c.l.b16 %v1548
      %v1565 = vunpack.c.l.b16 %v1549
      %v1566 = vpack.c.b16 %v1558, %v1558
      %v1567 = vpack.c.b16 %v1559, %v1559
      %v1568 = vpack.c.b16 %v1560, %v1560
      %v1569 = vpack.c.b16 %v1561, %v1561
      %v1570 = vpack.c.b16 %v1562, %v1562
      %v1571 = vpack.c.b16 %v1563, %v1563
      %v1572 = vpack.c.b16 %v1564, %v1564
      %v1573 = vpack.c.b16 %v1565, %v1565
      %v1574 = vunpack.c.l.b16 %v1566
      %v1575 = vunpack.c.l.b16 %v1567
      %v1576 = vunpack.c.l.b16 %v1568
      %v1577 = vunpack.c.l.b16 %v1569
      %v1578 = vunpack.c.l.b16 %v1570
      %v1579 = vunpack.c.l.b16 %v1571
      %v1580 = vunpack.c.l.b16 %v1572
      %v1581 = vunpack.c.l.b16 %v1573
      %v1582 = vrot.slane %v1575, 7
      %v1583 = vsel %vm259, %v1582, %v1574
      %v1584 = vrot.slane %v1576, 6
      %v1585 = vsel %vm262, %v1584, %v1583
      %v1586 = vrot.slane %v1577, 5
      %v1587 = vsel %vm265, %v1586, %v1585
      %v1588 = vrot.slane %v1578, 4
      %v1589 = vsel %vm268, %v1588, %v1587
      %v1590 = vrot.slane %v1579, 3
      %v1591 = vsel %vm271, %v1590, %v1589
      %v1592 = vrot.slane %v1580, 2
      %v1593 = vsel %vm274, %v1592, %v1591
      %v1594 = vrot.slane %v1581, 1
      %v1595 = vsel %vm277, %v1594, %v1593
      %v1596 = vpack.c.b16 %v1595, %v1595
      %v1597 = vunpack.c.h.b16 %v1566
      %v1598 = vunpack.c.h.b16 %v1567
      %v1599 = vunpack.c.h.b16 %v1568
      %v1600 = vunpack.c.h.b16 %v1569
      %v1601 = vunpack.c.h.b16 %v1570
      %v1602 = vunpack.c.h.b16 %v1571
      %v1603 = vunpack.c.h.b16 %v1572
      %v1604 = vunpack.c.h.b16 %v1573
      %v1605 = vrot.slane %v1598, 7
      %v1606 = vsel %vm259, %v1605, %v1597
      %v1607 = vrot.slane %v1599, 6
      %v1608 = vsel %vm262, %v1607, %v1606
      %v1609 = vrot.slane %v1600, 5
      %v1610 = vsel %vm265, %v1609, %v1608
      %v1611 = vrot.slane %v1601, 4
      %v1612 = vsel %vm268, %v1611, %v1610
      %v1613 = vrot.slane %v1602, 3
      %v1614 = vsel %vm271, %v1613, %v1612
      %v1615 = vrot.slane %v1603, 2
      %v1616 = vsel %vm274, %v1615, %v1614
      %v1617 = vrot.slane %v1604, 1
      %v1618 = vsel %vm277, %v1617, %v1616
      %v1619 = vpack.c.b16 %v1618, %v1618
      %1620 = vrot.lane.b32.xlu0 %v1619, 126
      %v1621 = vpop.permute.xlu0 %1620
      %v1622 = vrot.slane %v1574, 1
      %v1623 = vsel %vm259, %v1575, %v1622
      %v1624 = vrot.slane %v1576, 7
      %v1625 = vsel %vm262, %v1624, %v1623
      %v1626 = vrot.slane %v1577, 6
      %v1627 = vsel %vm265, %v1626, %v1625
      %v1628 = vrot.slane %v1578, 5
      %v1629 = vsel %vm268, %v1628, %v1627
      %v1630 = vrot.slane %v1579, 4
      %v1631 = vsel %vm271, %v1630, %v1629
      %v1632 = vrot.slane %v1580, 3
      %v1633 = vsel %vm274, %v1632, %v1631
      %v1634 = vrot.slane %v1581, 2
      %v1635 = vsel %vm277, %v1634, %v1633
      %v1636 = vpack.c.b16 %v1635, %v1635
      %1637 = vrot.lane.b32.xlu0 %v1636, 126
      %v1638 = vpop.permute.xlu0 %1637
      %v1641 = vsel %vm322, %v1596, %v1621
      %v1645 = vsel %vm322, %v1636, %v1638
      %1647 = vmatpush.bf16.msra.mxu0 0
      %1648 = vmatpush.bf16.msra.mxu0 0
      %1649 = vmatpush.bf16.msra.mxu0 0
      %1650 = vmatpush.bf16.msra.mxu0 0
      %1651 = vmatpush.bf16.msra.mxu0 0
      %1652 = vmatpush.bf16.msra.mxu0 0
      %1653 = vmatpush.bf16.msra.mxu0 %v1645
      %1654 = vmatpush.bf16.msra.mxu0 %v1641
      %1655 = vmatmul.bf16.gmra.mxu0 %v343
      %v1656 = vpop.f32.mrf.mxu0
      %v1657 = vadd.f32 0.0, %v1656
      %v1658 = vpop.f32.mrf.mxu0
      %v1659 = vadd.f32 0.0, %v1658
      %1660 = vmatmul.bf16.gmra.mxu0 %v346
      %v1661 = vpop.f32.mrf.mxu0
      %v1662 = vadd.f32 0.0, %v1661
      %v1663 = vpop.f32.mrf.mxu0
      %v1664 = vadd.f32 0.0, %v1663
      %1665 = vdwg.mxu0
      %v1666 = vsel %vm368, %v1657, %v1659
      %v1667 = vsel %vm368, %v1662, %v1664
      %v1668 = vmul.f32 %v1666, %v374
      %v1669 = vadd.f32 %v1668, %v379
      %v1670 = vmax.f32 %v1669, 0.0
      %v1672 = vrot.slane %v1670, 1
      %v1673 = vrot.slane %v1670, 2
      %1676 = vst.msk [vmem:[%s206 + $0x8] sm:$0x1] %vm388, %v1670
      %1677 = vst.msk [vmem:[%s206 + $0x18] sm:$0x1] %vm388, %v1672
      %1678 = vst.msk [vmem:[%s206 + $0x28] sm:$0x1] %vm388, %v1673
      %v1679 = vmul.f32 %v1667, %v374
      %v1680 = vadd.f32 %v1679, %v379
      %v1681 = vmax.f32 %v1680, 0.0
      %v1683 = vrot.slane %v1681, 1
      %v1684 = vrot.slane %v1681, 2
      %v1685 = vperm.slane %v1681, 0
      %v1686 = vperm.slane %v1683, 0
      %v1687 = vperm.slane %v1684, 0
      %1688 = vrot.lane.b32.xlu0 %v1685, 32
      %v1689 = vpop.permute.xlu0 %1688
      %1690 = vrot.lane.b32.xlu0 %v1686, 32
      %v1691 = vpop.permute.xlu0 %1690
      %1692 = vrot.lane.b32.xlu0 %v1687, 32
      %v1693 = vpop.permute.xlu0 %1692
      %1697 = vst.msk [vmem:[%s206 + $0x8] sm:$0x1] %vm410, %v1689
      %1698 = vst.msk [vmem:[%s206 + $0x18] sm:$0x1] %vm410, %v1691
      %1699 = vst.msk [vmem:[%s206 + $0x28] sm:$0x1] %vm410, %v1693
      %v1700 = vld [vmem:[%s197 + $0x4] sm:$0x1]
      %v1701 = vld [vmem:[%s197 + $0x10] sm:$0x1]
      %v1702 = vld [vmem:[%s197 + $0x1c] sm:$0x1]
      %v1703 = vld [vmem:[%s197 + $0x28] sm:$0x1]
      %v1704 = vld [vmem:[%s197 + $0x34] sm:$0x1]
      %v1705 = vld [vmem:[%s197 + $0x40] sm:$0x1]
      %v1706 = vld [vmem:[%s197 + $0x4c] sm:$0x1]
      %v1707 = vld [vmem:[%s197 + $0x58] sm:$0x1]
      %v1708 = vld [vmem:[%s197 + $0x4] sm:$0x2]
      %v1709 = vld [vmem:[%s197 + $0x10] sm:$0x2]
      %v1710 = vld [vmem:[%s197 + $0x1c] sm:$0x2]
      %v1711 = vld [vmem:[%s197 + $0x28] sm:$0x2]
      %v1712 = vld [vmem:[%s197 + $0x34] sm:$0x2]
      %v1713 = vld [vmem:[%s197 + $0x40] sm:$0x2]
      %v1714 = vld [vmem:[%s197 + $0x4c] sm:$0x2]
      %v1715 = vld [vmem:[%s197 + $0x58] sm:$0x2]
      %v1724 = vunpack.c.l.b16 %v1700
      %v1725 = vunpack.c.l.b16 %v1701
      %v1726 = vunpack.c.l.b16 %v1702
      %v1727 = vunpack.c.l.b16 %v1703
      %v1728 = vunpack.c.l.b16 %v1704
      %v1729 = vunpack.c.l.b16 %v1705
      %v1730 = vunpack.c.l.b16 %v1706
      %v1731 = vunpack.c.l.b16 %v1707
      %v1732 = vpack.c.b16 %v1724, %v1724
      %v1733 = vpack.c.b16 %v1725, %v1725
      %v1734 = vpack.c.b16 %v1726, %v1726
      %v1735 = vpack.c.b16 %v1727, %v1727
      %v1736 = vpack.c.b16 %v1728, %v1728
      %v1737 = vpack.c.b16 %v1729, %v1729
      %v1738 = vpack.c.b16 %v1730, %v1730
      %v1739 = vpack.c.b16 %v1731, %v1731
      %v1740 = vunpack.c.l.b16 %v1732
      %v1741 = vunpack.c.l.b16 %v1733
      %v1742 = vunpack.c.l.b16 %v1734
      %v1743 = vunpack.c.l.b16 %v1735
      %v1744 = vunpack.c.l.b16 %v1736
      %v1745 = vunpack.c.l.b16 %v1737
      %v1746 = vunpack.c.l.b16 %v1738
      %v1747 = vunpack.c.l.b16 %v1739
      %v1748 = vrot.slane %v1740, 1
      %v1749 = vsel %vm259, %v1741, %v1748
      %v1750 = vrot.slane %v1742, 7
      %v1751 = vsel %vm262, %v1750, %v1749
      %v1752 = vrot.slane %v1743, 6
      %v1753 = vsel %vm265, %v1752, %v1751
      %v1754 = vrot.slane %v1744, 5
      %v1755 = vsel %vm268, %v1754, %v1753
      %v1756 = vrot.slane %v1745, 4
      %v1757 = vsel %vm271, %v1756, %v1755
      %v1758 = vrot.slane %v1746, 3
      %v1759 = vsel %vm274, %v1758, %v1757
      %v1760 = vrot.slane %v1747, 2
      %v1761 = vsel %vm277, %v1760, %v1759
      %v1762 = vpack.c.b16 %v1761, %v1761
      %1763 = vrot.lane.b32.xlu0 %v1762, 126
      %v1764 = vpop.permute.xlu0 %1763
      %v1773 = vunpack.c.l.b16 %v1708
      %v1774 = vunpack.c.l.b16 %v1709
      %v1775 = vunpack.c.l.b16 %v1710
      %v1776 = vunpack.c.l.b16 %v1711
      %v1777 = vunpack.c.l.b16 %v1712
      %v1778 = vunpack.c.l.b16 %v1713
      %v1779 = vunpack.c.l.b16 %v1714
      %v1780 = vunpack.c.l.b16 %v1715
      %v1781 = vpack.c.b16 %v1773, %v1773
      %v1782 = vpack.c.b16 %v1774, %v1774
      %v1783 = vpack.c.b16 %v1775, %v1775
      %v1784 = vpack.c.b16 %v1776, %v1776
      %v1785 = vpack.c.b16 %v1777, %v1777
      %v1786 = vpack.c.b16 %v1778, %v1778
      %v1787 = vpack.c.b16 %v1779, %v1779
      %v1788 = vpack.c.b16 %v1780, %v1780
      %v1789 = vunpack.c.l.b16 %v1781
      %v1790 = vunpack.c.l.b16 %v1782
      %v1791 = vunpack.c.l.b16 %v1783
      %v1792 = vunpack.c.l.b16 %v1784
      %v1793 = vunpack.c.l.b16 %v1785
      %v1794 = vunpack.c.l.b16 %v1786
      %v1795 = vunpack.c.l.b16 %v1787
      %v1796 = vunpack.c.l.b16 %v1788
      %v1797 = vrot.slane %v1789, 2
      %v1798 = vrot.slane %v1790, 1
      %v1799 = vsel %vm259, %v1798, %v1797
      %v1800 = vsel %vm262, %v1791, %v1799
      %v1801 = vrot.slane %v1792, 7
      %v1802 = vsel %vm265, %v1801, %v1800
      %v1803 = vrot.slane %v1793, 6
      %v1804 = vsel %vm268, %v1803, %v1802
      %v1805 = vrot.slane %v1794, 5
      %v1806 = vsel %vm271, %v1805, %v1804
      %v1807 = vrot.slane %v1795, 4
      %v1808 = vsel %vm274, %v1807, %v1806
      %v1809 = vrot.slane %v1796, 3
      %v1810 = vsel %vm277, %v1809, %v1808
      %v1811 = vpack.c.b16 %v1810, %v1810
      %1812 = vrot.lane.b32.xlu0 %v1811, 126
      %v1813 = vpop.permute.xlu0 %1812
      %v1816 = vsel %vm322, %v1762, %v1764
      %v1820 = vsel %vm322, %v1811, %v1813
      %1822 = vmatpush.bf16.msra.mxu0 0
      %1823 = vmatpush.bf16.msra.mxu0 0
      %1824 = vmatpush.bf16.msra.mxu0 0
      %1825 = vmatpush.bf16.msra.mxu0 0
      %1826 = vmatpush.bf16.msra.mxu0 0
      %1827 = vmatpush.bf16.msra.mxu0 0
      %1828 = vmatpush.bf16.msra.mxu0 %v1820
      %1829 = vmatpush.bf16.msra.mxu0 %v1816
      %1830 = vmatmul.bf16.gmra.mxu0 %v343
      %v1831 = vpop.f32.mrf.mxu0
      %v1832 = vadd.f32 0.0, %v1831
      %v1833 = vpop.f32.mrf.mxu0
      %v1834 = vadd.f32 0.0, %v1833
      %1835 = vmatmul.bf16.gmra.mxu0 %v346
      %v1836 = vpop.f32.mrf.mxu0
      %v1837 = vadd.f32 0.0, %v1836
      %v1838 = vpop.f32.mrf.mxu0
      %v1839 = vadd.f32 0.0, %v1838
      %1840 = vdwg.mxu0
      %v1841 = vsel %vm368, %v1832, %v1834
      %v1842 = vsel %vm368, %v1837, %v1839
      %v1843 = vmul.f32 %v1841, %v374
      %v1844 = vadd.f32 %v1843, %v379
      %v1845 = vmax.f32 %v1844, 0.0
      %v1847 = vrot.slane %v1845, 1
      %v1848 = vrot.slane %v1845, 2
      %1851 = vst.msk [vmem:[%s206 + $0x9] sm:$0x1] %vm388, %v1845
      %1852 = vst.msk [vmem:[%s206 + $0x19] sm:$0x1] %vm388, %v1847
      %1853 = vst.msk [vmem:[%s206 + $0x29] sm:$0x1] %vm388, %v1848
      %v1854 = vmul.f32 %v1842, %v374
      %v1855 = vadd.f32 %v1854, %v379
      %v1856 = vmax.f32 %v1855, 0.0
      %v1858 = vrot.slane %v1856, 1
      %v1859 = vrot.slane %v1856, 2
      %v1860 = vperm.slane %v1856, 0
      %v1861 = vperm.slane %v1858, 0
      %v1862 = vperm.slane %v1859, 0
      %1863 = vrot.lane.b32.xlu0 %v1860, 32
      %v1864 = vpop.permute.xlu0 %1863
      %1865 = vrot.lane.b32.xlu0 %v1861, 32
      %v1866 = vpop.permute.xlu0 %1865
      %1867 = vrot.lane.b32.xlu0 %v1862, 32
      %v1868 = vpop.permute.xlu0 %1867
      %1872 = vst.msk [vmem:[%s206 + $0x9] sm:$0x1] %vm410, %v1864
      %1873 = vst.msk [vmem:[%s206 + $0x19] sm:$0x1] %vm410, %v1866
      %1874 = vst.msk [vmem:[%s206 + $0x29] sm:$0x1] %vm410, %v1868
      %v1875 = vld [vmem:[%s197 + $0x4] sm:$0x2]
      %v1876 = vld [vmem:[%s197 + $0x10] sm:$0x2]
      %v1877 = vld [vmem:[%s197 + $0x1c] sm:$0x2]
      %v1878 = vld [vmem:[%s197 + $0x28] sm:$0x2]
      %v1879 = vld [vmem:[%s197 + $0x34] sm:$0x2]
      %v1880 = vld [vmem:[%s197 + $0x40] sm:$0x2]
      %v1881 = vld [vmem:[%s197 + $0x4c] sm:$0x2]
      %v1882 = vld [vmem:[%s197 + $0x58] sm:$0x2]
      %v1891 = vunpack.c.l.b16 %v1875
      %v1892 = vunpack.c.l.b16 %v1876
      %v1893 = vunpack.c.l.b16 %v1877
      %v1894 = vunpack.c.l.b16 %v1878
      %v1895 = vunpack.c.l.b16 %v1879
      %v1896 = vunpack.c.l.b16 %v1880
      %v1897 = vunpack.c.l.b16 %v1881
      %v1898 = vunpack.c.l.b16 %v1882
      %v1899 = vpack.c.b16 %v1891, %v1891
      %v1900 = vpack.c.b16 %v1892, %v1892
      %v1901 = vpack.c.b16 %v1893, %v1893
      %v1902 = vpack.c.b16 %v1894, %v1894
      %v1903 = vpack.c.b16 %v1895, %v1895
      %v1904 = vpack.c.b16 %v1896, %v1896
      %v1905 = vpack.c.b16 %v1897, %v1897
      %v1906 = vpack.c.b16 %v1898, %v1898
      %v1907 = vunpack.c.l.b16 %v1899
      %v1908 = vunpack.c.l.b16 %v1900
      %v1909 = vunpack.c.l.b16 %v1901
      %v1910 = vunpack.c.l.b16 %v1902
      %v1911 = vunpack.c.l.b16 %v1903
      %v1912 = vunpack.c.l.b16 %v1904
      %v1913 = vunpack.c.l.b16 %v1905
      %v1914 = vunpack.c.l.b16 %v1906
      %v1915 = vrot.slane %v1907, 2
      %v1916 = vrot.slane %v1908, 1
      %v1917 = vsel %vm259, %v1916, %v1915
      %v1918 = vsel %vm262, %v1909, %v1917
      %v1919 = vrot.slane %v1910, 7
      %v1920 = vsel %vm265, %v1919, %v1918
      %v1921 = vrot.slane %v1911, 6
      %v1922 = vsel %vm268, %v1921, %v1920
      %v1923 = vrot.slane %v1912, 5
      %v1924 = vsel %vm271, %v1923, %v1922
      %v1925 = vrot.slane %v1913, 4
      %v1926 = vsel %vm274, %v1925, %v1924
      %v1927 = vrot.slane %v1914, 3
      %v1928 = vsel %vm277, %v1927, %v1926
      %v1929 = vpack.c.b16 %v1928, %v1928
      %1930 = vrot.lane.b32.xlu0 %v1929, 126
      %v1931 = vpop.permute.xlu0 %1930
      %v1932 = vrot.slane %v1907, 3
      %v1933 = vrot.slane %v1908, 2
      %v1934 = vsel %vm259, %v1933, %v1932
      %v1935 = vrot.slane %v1909, 1
      %v1936 = vsel %vm262, %v1935, %v1934
      %v1937 = vsel %vm265, %v1910, %v1936
      %v1938 = vrot.slane %v1911, 7
      %v1939 = vsel %vm268, %v1938, %v1937
      %v1940 = vrot.slane %v1912, 6
      %v1941 = vsel %vm271, %v1940, %v1939
      %v1942 = vrot.slane %v1913, 5
      %v1943 = vsel %vm274, %v1942, %v1941
      %v1944 = vrot.slane %v1914, 4
      %v1945 = vsel %vm277, %v1944, %v1943
      %v1946 = vpack.c.b16 %v1945, %v1945
      %1947 = vrot.lane.b32.xlu0 %v1946, 126
      %v1948 = vpop.permute.xlu0 %1947
      %v1951 = vsel %vm322, %v1929, %v1931
      %v1955 = vsel %vm322, %v1946, %v1948
      %1957 = vmatpush.bf16.msra.mxu0 0
      %1958 = vmatpush.bf16.msra.mxu0 0
      %1959 = vmatpush.bf16.msra.mxu0 0
      %1960 = vmatpush.bf16.msra.mxu0 0
      %1961 = vmatpush.bf16.msra.mxu0 0
      %1962 = vmatpush.bf16.msra.mxu0 0
      %1963 = vmatpush.bf16.msra.mxu0 %v1955
      %1964 = vmatpush.bf16.msra.mxu0 %v1951
      %1965 = vmatmul.bf16.gmra.mxu0 %v343
      %v1966 = vpop.f32.mrf.mxu0
      %v1967 = vadd.f32 0.0, %v1966
      %v1968 = vpop.f32.mrf.mxu0
      %v1969 = vadd.f32 0.0, %v1968
      %1970 = vmatmul.bf16.gmra.mxu0 %v346
      %v1971 = vpop.f32.mrf.mxu0
      %v1972 = vadd.f32 0.0, %v1971
      %v1973 = vpop.f32.mrf.mxu0
      %v1974 = vadd.f32 0.0, %v1973
      %1975 = vdwg.mxu0
      %v1976 = vsel %vm368, %v1967, %v1969
      %v1977 = vsel %vm368, %v1972, %v1974
      %v1978 = vmul.f32 %v1976, %v374
      %v1979 = vadd.f32 %v1978, %v379
      %v1980 = vmax.f32 %v1979, 0.0
      %v1982 = vrot.slane %v1980, 1
      %v1983 = vrot.slane %v1980, 2
      %1986 = vst.msk [vmem:[%s206 + $0xa] sm:$0x1] %vm388, %v1980
      %1987 = vst.msk [vmem:[%s206 + $0x1a] sm:$0x1] %vm388, %v1982
      %1988 = vst.msk [vmem:[%s206 + $0x2a] sm:$0x1] %vm388, %v1983
      %v1989 = vmul.f32 %v1977, %v374
      %v1990 = vadd.f32 %v1989, %v379
      %v1991 = vmax.f32 %v1990, 0.0
      %v1993 = vrot.slane %v1991, 1
      %v1994 = vrot.slane %v1991, 2
      %v1995 = vperm.slane %v1991, 0
      %v1996 = vperm.slane %v1993, 0
      %v1997 = vperm.slane %v1994, 0
      %1998 = vrot.lane.b32.xlu0 %v1995, 32
      %v1999 = vpop.permute.xlu0 %1998
      %2000 = vrot.lane.b32.xlu0 %v1996, 32
      %v2001 = vpop.permute.xlu0 %2000
      %2002 = vrot.lane.b32.xlu0 %v1997, 32
      %v2003 = vpop.permute.xlu0 %2002
      %2007 = vst.msk [vmem:[%s206 + $0xa] sm:$0x1] %vm410, %v1999
      %2008 = vst.msk [vmem:[%s206 + $0x1a] sm:$0x1] %vm410, %v2001
      %2009 = vst.msk [vmem:[%s206 + $0x2a] sm:$0x1] %vm410, %v2003
      %v2010 = vld [vmem:[%s197 + $0x4] sm:$0x2]
      %v2011 = vld [vmem:[%s197 + $0x10] sm:$0x2]
      %v2012 = vld [vmem:[%s197 + $0x1c] sm:$0x2]
      %v2013 = vld [vmem:[%s197 + $0x28] sm:$0x2]
      %v2014 = vld [vmem:[%s197 + $0x34] sm:$0x2]
      %v2015 = vld [vmem:[%s197 + $0x40] sm:$0x2]
      %v2016 = vld [vmem:[%s197 + $0x4c] sm:$0x2]
      %v2017 = vld [vmem:[%s197 + $0x58] sm:$0x2]
      %v2018 = vld [vmem:[%s197 + $0x4] sm:$0x4]
      %v2019 = vld [vmem:[%s197 + $0x10] sm:$0x4]
      %v2020 = vld [vmem:[%s197 + $0x1c] sm:$0x4]
      %v2021 = vld [vmem:[%s197 + $0x28] sm:$0x4]
      %v2022 = vld [vmem:[%s197 + $0x34] sm:$0x4]
      %v2023 = vld [vmem:[%s197 + $0x40] sm:$0x4]
      %v2024 = vld [vmem:[%s197 + $0x4c] sm:$0x4]
      %v2025 = vld [vmem:[%s197 + $0x58] sm:$0x4]
      %v2034 = vunpack.c.l.b16 %v2010
      %v2035 = vunpack.c.l.b16 %v2011
      %v2036 = vunpack.c.l.b16 %v2012
      %v2037 = vunpack.c.l.b16 %v2013
      %v2038 = vunpack.c.l.b16 %v2014
      %v2039 = vunpack.c.l.b16 %v2015
      %v2040 = vunpack.c.l.b16 %v2016
      %v2041 = vunpack.c.l.b16 %v2017
      %v2042 = vpack.c.b16 %v2034, %v2034
      %v2043 = vpack.c.b16 %v2035, %v2035
      %v2044 = vpack.c.b16 %v2036, %v2036
      %v2045 = vpack.c.b16 %v2037, %v2037
      %v2046 = vpack.c.b16 %v2038, %v2038
      %v2047 = vpack.c.b16 %v2039, %v2039
      %v2048 = vpack.c.b16 %v2040, %v2040
      %v2049 = vpack.c.b16 %v2041, %v2041
      %v2050 = vunpack.c.l.b16 %v2042
      %v2051 = vunpack.c.l.b16 %v2043
      %v2052 = vunpack.c.l.b16 %v2044
      %v2053 = vunpack.c.l.b16 %v2045
      %v2054 = vunpack.c.l.b16 %v2046
      %v2055 = vunpack.c.l.b16 %v2047
      %v2056 = vunpack.c.l.b16 %v2048
      %v2057 = vunpack.c.l.b16 %v2049
      %v2058 = vrot.slane %v2050, 3
      %v2059 = vrot.slane %v2051, 2
      %v2060 = vsel %vm259, %v2059, %v2058
      %v2061 = vrot.slane %v2052, 1
      %v2062 = vsel %vm262, %v2061, %v2060
      %v2063 = vsel %vm265, %v2053, %v2062
      %v2064 = vrot.slane %v2054, 7
      %v2065 = vsel %vm268, %v2064, %v2063
      %v2066 = vrot.slane %v2055, 6
      %v2067 = vsel %vm271, %v2066, %v2065
      %v2068 = vrot.slane %v2056, 5
      %v2069 = vsel %vm274, %v2068, %v2067
      %v2070 = vrot.slane %v2057, 4
      %v2071 = vsel %vm277, %v2070, %v2069
      %v2072 = vpack.c.b16 %v2071, %v2071
      %2073 = vrot.lane.b32.xlu0 %v2072, 126
      %v2074 = vpop.permute.xlu0 %2073
      %v2083 = vunpack.c.l.b16 %v2018
      %v2084 = vunpack.c.l.b16 %v2019
      %v2085 = vunpack.c.l.b16 %v2020
      %v2086 = vunpack.c.l.b16 %v2021
      %v2087 = vunpack.c.l.b16 %v2022
      %v2088 = vunpack.c.l.b16 %v2023
      %v2089 = vunpack.c.l.b16 %v2024
      %v2090 = vunpack.c.l.b16 %v2025
      %v2091 = vpack.c.b16 %v2083, %v2083
      %v2092 = vpack.c.b16 %v2084, %v2084
      %v2093 = vpack.c.b16 %v2085, %v2085
      %v2094 = vpack.c.b16 %v2086, %v2086
      %v2095 = vpack.c.b16 %v2087, %v2087
      %v2096 = vpack.c.b16 %v2088, %v2088
      %v2097 = vpack.c.b16 %v2089, %v2089
      %v2098 = vpack.c.b16 %v2090, %v2090
      %v2099 = vunpack.c.l.b16 %v2091
      %v2100 = vunpack.c.l.b16 %v2092
      %v2101 = vunpack.c.l.b16 %v2093
      %v2102 = vunpack.c.l.b16 %v2094
      %v2103 = vunpack.c.l.b16 %v2095
      %v2104 = vunpack.c.l.b16 %v2096
      %v2105 = vunpack.c.l.b16 %v2097
      %v2106 = vunpack.c.l.b16 %v2098
      %v2107 = vrot.slane %v2099, 4
      %v2108 = vrot.slane %v2100, 3
      %v2109 = vsel %vm259, %v2108, %v2107
      %v2110 = vrot.slane %v2101, 2
      %v2111 = vsel %vm262, %v2110, %v2109
      %v2112 = vrot.slane %v2102, 1
      %v2113 = vsel %vm265, %v2112, %v2111
      %v2114 = vsel %vm268, %v2103, %v2113
      %v2115 = vrot.slane %v2104, 7
      %v2116 = vsel %vm271, %v2115, %v2114
      %v2117 = vrot.slane %v2105, 6
      %v2118 = vsel %vm274, %v2117, %v2116
      %v2119 = vrot.slane %v2106, 5
      %v2120 = vsel %vm277, %v2119, %v2118
      %v2121 = vpack.c.b16 %v2120, %v2120
      %2122 = vrot.lane.b32.xlu0 %v2121, 126
      %v2123 = vpop.permute.xlu0 %2122
      %v2126 = vsel %vm322, %v2072, %v2074
      %v2130 = vsel %vm322, %v2121, %v2123
      %2132 = vmatpush.bf16.msra.mxu0 0
      %2133 = vmatpush.bf16.msra.mxu0 0
      %2134 = vmatpush.bf16.msra.mxu0 0
      %2135 = vmatpush.bf16.msra.mxu0 0
      %2136 = vmatpush.bf16.msra.mxu0 0
      %2137 = vmatpush.bf16.msra.mxu0 0
      %2138 = vmatpush.bf16.msra.mxu0 %v2130
      %2139 = vmatpush.bf16.msra.mxu0 %v2126
      %2140 = vmatmul.bf16.gmra.mxu0 %v343
      %v2141 = vpop.f32.mrf.mxu0
      %v2142 = vadd.f32 0.0, %v2141
      %v2143 = vpop.f32.mrf.mxu0
      %v2144 = vadd.f32 0.0, %v2143
      %2145 = vmatmul.bf16.gmra.mxu0 %v346
      %v2146 = vpop.f32.mrf.mxu0
      %v2147 = vadd.f32 0.0, %v2146
      %v2148 = vpop.f32.mrf.mxu0
      %v2149 = vadd.f32 0.0, %v2148
      %2150 = vdwg.mxu0
      %v2151 = vsel %vm368, %v2142, %v2144
      %v2152 = vsel %vm368, %v2147, %v2149
      %v2153 = vmul.f32 %v2151, %v374
      %v2154 = vadd.f32 %v2153, %v379
      %v2155 = vmax.f32 %v2154, 0.0
      %v2157 = vrot.slane %v2155, 1
      %v2158 = vrot.slane %v2155, 2
      %2161 = vst.msk [vmem:[%s206 + $0xb] sm:$0x1] %vm388, %v2155
      %2162 = vst.msk [vmem:[%s206 + $0x1b] sm:$0x1] %vm388, %v2157
      %2163 = vst.msk [vmem:[%s206 + $0x2b] sm:$0x1] %vm388, %v2158
      %v2164 = vmul.f32 %v2152, %v374
      %v2165 = vadd.f32 %v2164, %v379
      %v2166 = vmax.f32 %v2165, 0.0
      %v2168 = vrot.slane %v2166, 1
      %v2169 = vrot.slane %v2166, 2
      %v2170 = vperm.slane %v2166, 0
      %v2171 = vperm.slane %v2168, 0
      %v2172 = vperm.slane %v2169, 0
      %2173 = vrot.lane.b32.xlu0 %v2170, 32
      %v2174 = vpop.permute.xlu0 %2173
      %2175 = vrot.lane.b32.xlu0 %v2171, 32
      %v2176 = vpop.permute.xlu0 %2175
      %2177 = vrot.lane.b32.xlu0 %v2172, 32
      %v2178 = vpop.permute.xlu0 %2177
      %2182 = vst.msk [vmem:[%s206 + $0xb] sm:$0x1] %vm410, %v2174
      %2183 = vst.msk [vmem:[%s206 + $0x1b] sm:$0x1] %vm410, %v2176
      %2184 = vst.msk [vmem:[%s206 + $0x2b] sm:$0x1] %vm410, %v2178
      %v2185 = vld [vmem:[%s197 + $0x4] sm:$0x4]
      %v2186 = vld [vmem:[%s197 + $0x10] sm:$0x4]
      %v2187 = vld [vmem:[%s197 + $0x1c] sm:$0x4]
      %v2188 = vld [vmem:[%s197 + $0x28] sm:$0x4]
      %v2189 = vld [vmem:[%s197 + $0x34] sm:$0x4]
      %v2190 = vld [vmem:[%s197 + $0x40] sm:$0x4]
      %v2191 = vld [vmem:[%s197 + $0x4c] sm:$0x4]
      %v2192 = vld [vmem:[%s197 + $0x58] sm:$0x4]
      %v2201 = vunpack.c.l.b16 %v2185
      %v2202 = vunpack.c.l.b16 %v2186
      %v2203 = vunpack.c.l.b16 %v2187
      %v2204 = vunpack.c.l.b16 %v2188
      %v2205 = vunpack.c.l.b16 %v2189
      %v2206 = vunpack.c.l.b16 %v2190
      %v2207 = vunpack.c.l.b16 %v2191
      %v2208 = vunpack.c.l.b16 %v2192
      %v2209 = vpack.c.b16 %v2201, %v2201
      %v2210 = vpack.c.b16 %v2202, %v2202
      %v2211 = vpack.c.b16 %v2203, %v2203
      %v2212 = vpack.c.b16 %v2204, %v2204
      %v2213 = vpack.c.b16 %v2205, %v2205
      %v2214 = vpack.c.b16 %v2206, %v2206
      %v2215 = vpack.c.b16 %v2207, %v2207
      %v2216 = vpack.c.b16 %v2208, %v2208
      %v2217 = vunpack.c.l.b16 %v2209
      %v2218 = vunpack.c.l.b16 %v2210
      %v2219 = vunpack.c.l.b16 %v2211
      %v2220 = vunpack.c.l.b16 %v2212
      %v2221 = vunpack.c.l.b16 %v2213
      %v2222 = vunpack.c.l.b16 %v2214
      %v2223 = vunpack.c.l.b16 %v2215
      %v2224 = vunpack.c.l.b16 %v2216
      %v2225 = vrot.slane %v2217, 4
      %v2226 = vrot.slane %v2218, 3
      %v2227 = vsel %vm259, %v2226, %v2225
      %v2228 = vrot.slane %v2219, 2
      %v2229 = vsel %vm262, %v2228, %v2227
      %v2230 = vrot.slane %v2220, 1
      %v2231 = vsel %vm265, %v2230, %v2229
      %v2232 = vsel %vm268, %v2221, %v2231
      %v2233 = vrot.slane %v2222, 7
      %v2234 = vsel %vm271, %v2233, %v2232
      %v2235 = vrot.slane %v2223, 6
      %v2236 = vsel %vm274, %v2235, %v2234
      %v2237 = vrot.slane %v2224, 5
      %v2238 = vsel %vm277, %v2237, %v2236
      %v2239 = vpack.c.b16 %v2238, %v2238
      %2240 = vrot.lane.b32.xlu0 %v2239, 126
      %v2241 = vpop.permute.xlu0 %2240
      %v2242 = vrot.slane %v2217, 5
      %v2243 = vrot.slane %v2218, 4
      %v2244 = vsel %vm259, %v2243, %v2242
      %v2245 = vrot.slane %v2219, 3
      %v2246 = vsel %vm262, %v2245, %v2244
      %v2247 = vrot.slane %v2220, 2
      %v2248 = vsel %vm265, %v2247, %v2246
      %v2249 = vrot.slane %v2221, 1
      %v2250 = vsel %vm268, %v2249, %v2248
      %v2251 = vsel %vm271, %v2222, %v2250
      %v2252 = vrot.slane %v2223, 7
      %v2253 = vsel %vm274, %v2252, %v2251
      %v2254 = vrot.slane %v2224, 6
      %v2255 = vsel %vm277, %v2254, %v2253
      %v2256 = vpack.c.b16 %v2255, %v2255
      %2257 = vrot.lane.b32.xlu0 %v2256, 126
      %v2258 = vpop.permute.xlu0 %2257
      %v2261 = vsel %vm322, %v2239, %v2241
      %v2265 = vsel %vm322, %v2256, %v2258
      %2267 = vmatpush.bf16.msra.mxu0 0
      %2268 = vmatpush.bf16.msra.mxu0 0
      %2269 = vmatpush.bf16.msra.mxu0 0
      %2270 = vmatpush.bf16.msra.mxu0 0
      %2271 = vmatpush.bf16.msra.mxu0 0
      %2272 = vmatpush.bf16.msra.mxu0 0
      %2273 = vmatpush.bf16.msra.mxu0 %v2265
      %2274 = vmatpush.bf16.msra.mxu0 %v2261
      %2275 = vmatmul.bf16.gmra.mxu0 %v343
      %v2276 = vpop.f32.mrf.mxu0
      %v2277 = vadd.f32 0.0, %v2276
      %v2278 = vpop.f32.mrf.mxu0
      %v2279 = vadd.f32 0.0, %v2278
      %2280 = vmatmul.bf16.gmra.mxu0 %v346
      %v2281 = vpop.f32.mrf.mxu0
      %v2282 = vadd.f32 0.0, %v2281
      %v2283 = vpop.f32.mrf.mxu0
      %v2284 = vadd.f32 0.0, %v2283
      %2285 = vdwg.mxu0
      %v2286 = vsel %vm368, %v2277, %v2279
      %v2287 = vsel %vm368, %v2282, %v2284
      %v2288 = vmul.f32 %v2286, %v374
      %v2289 = vadd.f32 %v2288, %v379
      %v2290 = vmax.f32 %v2289, 0.0
      %v2292 = vrot.slane %v2290, 1
      %v2293 = vrot.slane %v2290, 2
      %2296 = vst.msk [vmem:[%s206 + $0xc] sm:$0x1] %vm388, %v2290
      %2297 = vst.msk [vmem:[%s206 + $0x1c] sm:$0x1] %vm388, %v2292
      %2298 = vst.msk [vmem:[%s206 + $0x2c] sm:$0x1] %vm388, %v2293
      %v2299 = vmul.f32 %v2287, %v374
      %v2300 = vadd.f32 %v2299, %v379
      %v2301 = vmax.f32 %v2300, 0.0
      %v2303 = vrot.slane %v2301, 1
      %v2304 = vrot.slane %v2301, 2
      %v2305 = vperm.slane %v2301, 0
      %v2306 = vperm.slane %v2303, 0
      %v2307 = vperm.slane %v2304, 0
      %2308 = vrot.lane.b32.xlu0 %v2305, 32
      %v2309 = vpop.permute.xlu0 %2308
      %2310 = vrot.lane.b32.xlu0 %v2306, 32
      %v2311 = vpop.permute.xlu0 %2310
      %2312 = vrot.lane.b32.xlu0 %v2307, 32
      %v2313 = vpop.permute.xlu0 %2312
      %2317 = vst.msk [vmem:[%s206 + $0xc] sm:$0x1] %vm410, %v2309
      %2318 = vst.msk [vmem:[%s206 + $0x1c] sm:$0x1] %vm410, %v2311
      %2319 = vst.msk [vmem:[%s206 + $0x2c] sm:$0x1] %vm410, %v2313
      %v2320 = vld [vmem:[%s197 + $0x4] sm:$0x4]
      %v2321 = vld [vmem:[%s197 + $0x10] sm:$0x4]
      %v2322 = vld [vmem:[%s197 + $0x1c] sm:$0x4]
      %v2323 = vld [vmem:[%s197 + $0x28] sm:$0x4]
      %v2324 = vld [vmem:[%s197 + $0x34] sm:$0x4]
      %v2325 = vld [vmem:[%s197 + $0x40] sm:$0x4]
      %v2326 = vld [vmem:[%s197 + $0x4c] sm:$0x4]
      %v2327 = vld [vmem:[%s197 + $0x58] sm:$0x4]
      %v2328 = vld [vmem:[%s197 + $0x4] sm:$0x8]
      %v2329 = vld [vmem:[%s197 + $0x10] sm:$0x8]
      %v2330 = vld [vmem:[%s197 + $0x1c] sm:$0x8]
      %v2331 = vld [vmem:[%s197 + $0x28] sm:$0x8]
      %v2332 = vld [vmem:[%s197 + $0x34] sm:$0x8]
      %v2333 = vld [vmem:[%s197 + $0x40] sm:$0x8]
      %v2334 = vld [vmem:[%s197 + $0x4c] sm:$0x8]
      %v2335 = vld [vmem:[%s197 + $0x58] sm:$0x8]
      %v2344 = vunpack.c.l.b16 %v2320
      %v2345 = vunpack.c.l.b16 %v2321
      %v2346 = vunpack.c.l.b16 %v2322
      %v2347 = vunpack.c.l.b16 %v2323
      %v2348 = vunpack.c.l.b16 %v2324
      %v2349 = vunpack.c.l.b16 %v2325
      %v2350 = vunpack.c.l.b16 %v2326
      %v2351 = vunpack.c.l.b16 %v2327
      %v2352 = vpack.c.b16 %v2344, %v2344
      %v2353 = vpack.c.b16 %v2345, %v2345
      %v2354 = vpack.c.b16 %v2346, %v2346
      %v2355 = vpack.c.b16 %v2347, %v2347
      %v2356 = vpack.c.b16 %v2348, %v2348
      %v2357 = vpack.c.b16 %v2349, %v2349
      %v2358 = vpack.c.b16 %v2350, %v2350
      %v2359 = vpack.c.b16 %v2351, %v2351
      %v2360 = vunpack.c.l.b16 %v2352
      %v2361 = vunpack.c.l.b16 %v2353
      %v2362 = vunpack.c.l.b16 %v2354
      %v2363 = vunpack.c.l.b16 %v2355
      %v2364 = vunpack.c.l.b16 %v2356
      %v2365 = vunpack.c.l.b16 %v2357
      %v2366 = vunpack.c.l.b16 %v2358
      %v2367 = vunpack.c.l.b16 %v2359
      %v2368 = vrot.slane %v2360, 5
      %v2369 = vrot.slane %v2361, 4
      %v2370 = vsel %vm259, %v2369, %v2368
      %v2371 = vrot.slane %v2362, 3
      %v2372 = vsel %vm262, %v2371, %v2370
      %v2373 = vrot.slane %v2363, 2
      %v2374 = vsel %vm265, %v2373, %v2372
      %v2375 = vrot.slane %v2364, 1
      %v2376 = vsel %vm268, %v2375, %v2374
      %v2377 = vsel %vm271, %v2365, %v2376
      %v2378 = vrot.slane %v2366, 7
      %v2379 = vsel %vm274, %v2378, %v2377
      %v2380 = vrot.slane %v2367, 6
      %v2381 = vsel %vm277, %v2380, %v2379
      %v2382 = vpack.c.b16 %v2381, %v2381
      %2383 = vrot.lane.b32.xlu0 %v2382, 126
      %v2384 = vpop.permute.xlu0 %2383
      %v2393 = vunpack.c.l.b16 %v2328
      %v2394 = vunpack.c.l.b16 %v2329
      %v2395 = vunpack.c.l.b16 %v2330
      %v2396 = vunpack.c.l.b16 %v2331
      %v2397 = vunpack.c.l.b16 %v2332
      %v2398 = vunpack.c.l.b16 %v2333
      %v2399 = vunpack.c.l.b16 %v2334
      %v2400 = vunpack.c.l.b16 %v2335
      %v2401 = vpack.c.b16 %v2393, %v2393
      %v2402 = vpack.c.b16 %v2394, %v2394
      %v2403 = vpack.c.b16 %v2395, %v2395
      %v2404 = vpack.c.b16 %v2396, %v2396
      %v2405 = vpack.c.b16 %v2397, %v2397
      %v2406 = vpack.c.b16 %v2398, %v2398
      %v2407 = vpack.c.b16 %v2399, %v2399
      %v2408 = vpack.c.b16 %v2400, %v2400
      %v2409 = vunpack.c.l.b16 %v2401
      %v2410 = vunpack.c.l.b16 %v2402
      %v2411 = vunpack.c.l.b16 %v2403
      %v2412 = vunpack.c.l.b16 %v2404
      %v2413 = vunpack.c.l.b16 %v2405
      %v2414 = vunpack.c.l.b16 %v2406
      %v2415 = vunpack.c.l.b16 %v2407
      %v2416 = vunpack.c.l.b16 %v2408
      %v2417 = vrot.slane %v2409, 6
      %v2418 = vrot.slane %v2410, 5
      %v2419 = vsel %vm259, %v2418, %v2417
      %v2420 = vrot.slane %v2411, 4
      %v2421 = vsel %vm262, %v2420, %v2419
      %v2422 = vrot.slane %v2412, 3
      %v2423 = vsel %vm265, %v2422, %v2421
      %v2424 = vrot.slane %v2413, 2
      %v2425 = vsel %vm268, %v2424, %v2423
      %v2426 = vrot.slane %v2414, 1
      %v2427 = vsel %vm271, %v2426, %v2425
      %v2428 = vsel %vm274, %v2415, %v2427
      %v2429 = vrot.slane %v2416, 7
      %v2430 = vsel %vm277, %v2429, %v2428
      %v2431 = vpack.c.b16 %v2430, %v2430
      %2432 = vrot.lane.b32.xlu0 %v2431, 126
      %v2433 = vpop.permute.xlu0 %2432
      %v2436 = vsel %vm322, %v2382, %v2384
      %v2440 = vsel %vm322, %v2431, %v2433
      %2442 = vmatpush.bf16.msra.mxu0 0
      %2443 = vmatpush.bf16.msra.mxu0 0
      %2444 = vmatpush.bf16.msra.mxu0 0
      %2445 = vmatpush.bf16.msra.mxu0 0
      %2446 = vmatpush.bf16.msra.mxu0 0
      %2447 = vmatpush.bf16.msra.mxu0 0
      %2448 = vmatpush.bf16.msra.mxu0 %v2440
      %2449 = vmatpush.bf16.msra.mxu0 %v2436
      %2450 = vmatmul.bf16.gmra.mxu0 %v343
      %v2451 = vpop.f32.mrf.mxu0
      %v2452 = vadd.f32 0.0, %v2451
      %v2453 = vpop.f32.mrf.mxu0
      %v2454 = vadd.f32 0.0, %v2453
      %2455 = vmatmul.bf16.gmra.mxu0 %v346
      %v2456 = vpop.f32.mrf.mxu0
      %v2457 = vadd.f32 0.0, %v2456
      %v2458 = vpop.f32.mrf.mxu0
      %v2459 = vadd.f32 0.0, %v2458
      %2460 = vdwg.mxu0
      %v2461 = vsel %vm368, %v2452, %v2454
      %v2462 = vsel %vm368, %v2457, %v2459
      %v2463 = vmul.f32 %v2461, %v374
      %v2464 = vadd.f32 %v2463, %v379
      %v2465 = vmax.f32 %v2464, 0.0
      %v2467 = vrot.slane %v2465, 1
      %v2468 = vrot.slane %v2465, 2
      %2471 = vst.msk [vmem:[%s206 + $0xd] sm:$0x1] %vm388, %v2465
      %2472 = vst.msk [vmem:[%s206 + $0x1d] sm:$0x1] %vm388, %v2467
      %2473 = vst.msk [vmem:[%s206 + $0x2d] sm:$0x1] %vm388, %v2468
      %v2474 = vmul.f32 %v2462, %v374
      %v2475 = vadd.f32 %v2474, %v379
      %v2476 = vmax.f32 %v2475, 0.0
      %v2478 = vrot.slane %v2476, 1
      %v2479 = vrot.slane %v2476, 2
      %v2480 = vperm.slane %v2476, 0
      %v2481 = vperm.slane %v2478, 0
      %v2482 = vperm.slane %v2479, 0
      %2483 = vrot.lane.b32.xlu0 %v2480, 32
      %v2484 = vpop.permute.xlu0 %2483
      %2485 = vrot.lane.b32.xlu0 %v2481, 32
      %v2486 = vpop.permute.xlu0 %2485
      %2487 = vrot.lane.b32.xlu0 %v2482, 32
      %v2488 = vpop.permute.xlu0 %2487
      %2492 = vst.msk [vmem:[%s206 + $0xd] sm:$0x1] %vm410, %v2484
      %2493 = vst.msk [vmem:[%s206 + $0x1d] sm:$0x1] %vm410, %v2486
      %2494 = vst.msk [vmem:[%s206 + $0x2d] sm:$0x1] %vm410, %v2488
      %v2495 = vld [vmem:[%s197 + $0x4] sm:$0x8]
      %v2496 = vld [vmem:[%s197 + $0x10] sm:$0x8]
      %v2497 = vld [vmem:[%s197 + $0x1c] sm:$0x8]
      %v2498 = vld [vmem:[%s197 + $0x28] sm:$0x8]
      %v2499 = vld [vmem:[%s197 + $0x34] sm:$0x8]
      %v2500 = vld [vmem:[%s197 + $0x40] sm:$0x8]
      %v2501 = vld [vmem:[%s197 + $0x4c] sm:$0x8]
      %v2502 = vld [vmem:[%s197 + $0x58] sm:$0x8]
      %v2511 = vunpack.c.l.b16 %v2495
      %v2512 = vunpack.c.l.b16 %v2496
      %v2513 = vunpack.c.l.b16 %v2497
      %v2514 = vunpack.c.l.b16 %v2498
      %v2515 = vunpack.c.l.b16 %v2499
      %v2516 = vunpack.c.l.b16 %v2500
      %v2517 = vunpack.c.l.b16 %v2501
      %v2518 = vunpack.c.l.b16 %v2502
      %v2519 = vpack.c.b16 %v2511, %v2511
      %v2520 = vpack.c.b16 %v2512, %v2512
      %v2521 = vpack.c.b16 %v2513, %v2513
      %v2522 = vpack.c.b16 %v2514, %v2514
      %v2523 = vpack.c.b16 %v2515, %v2515
      %v2524 = vpack.c.b16 %v2516, %v2516
      %v2525 = vpack.c.b16 %v2517, %v2517
      %v2526 = vpack.c.b16 %v2518, %v2518
      %v2527 = vunpack.c.l.b16 %v2519
      %v2528 = vunpack.c.l.b16 %v2520
      %v2529 = vunpack.c.l.b16 %v2521
      %v2530 = vunpack.c.l.b16 %v2522
      %v2531 = vunpack.c.l.b16 %v2523
      %v2532 = vunpack.c.l.b16 %v2524
      %v2533 = vunpack.c.l.b16 %v2525
      %v2534 = vunpack.c.l.b16 %v2526
      %v2535 = vrot.slane %v2527, 6
      %v2536 = vrot.slane %v2528, 5
      %v2537 = vsel %vm259, %v2536, %v2535
      %v2538 = vrot.slane %v2529, 4
      %v2539 = vsel %vm262, %v2538, %v2537
      %v2540 = vrot.slane %v2530, 3
      %v2541 = vsel %vm265, %v2540, %v2539
      %v2542 = vrot.slane %v2531, 2
      %v2543 = vsel %vm268, %v2542, %v2541
      %v2544 = vrot.slane %v2532, 1
      %v2545 = vsel %vm271, %v2544, %v2543
      %v2546 = vsel %vm274, %v2533, %v2545
      %v2547 = vrot.slane %v2534, 7
      %v2548 = vsel %vm277, %v2547, %v2546
      %v2549 = vpack.c.b16 %v2548, %v2548
      %2550 = vrot.lane.b32.xlu0 %v2549, 126
      %v2551 = vpop.permute.xlu0 %2550
      %v2552 = vrot.slane %v2527, 7
      %v2553 = vrot.slane %v2528, 6
      %v2554 = vsel %vm259, %v2553, %v2552
      %v2555 = vrot.slane %v2529, 5
      %v2556 = vsel %vm262, %v2555, %v2554
      %v2557 = vrot.slane %v2530, 4
      %v2558 = vsel %vm265, %v2557, %v2556
      %v2559 = vrot.slane %v2531, 3
      %v2560 = vsel %vm268, %v2559, %v2558
      %v2561 = vrot.slane %v2532, 2
      %v2562 = vsel %vm271, %v2561, %v2560
      %v2563 = vrot.slane %v2533, 1
      %v2564 = vsel %vm274, %v2563, %v2562
      %v2565 = vsel %vm277, %v2534, %v2564
      %v2566 = vpack.c.b16 %v2565, %v2565
      %2567 = vrot.lane.b32.xlu0 %v2566, 126
      %v2568 = vpop.permute.xlu0 %2567
      %v2571 = vsel %vm322, %v2549, %v2551
      %v2575 = vsel %vm322, %v2566, %v2568
      %2577 = vmatpush.bf16.msra.mxu0 0
      %2578 = vmatpush.bf16.msra.mxu0 0
      %2579 = vmatpush.bf16.msra.mxu0 0
      %2580 = vmatpush.bf16.msra.mxu0 0
      %2581 = vmatpush.bf16.msra.mxu0 0
      %2582 = vmatpush.bf16.msra.mxu0 0
      %2583 = vmatpush.bf16.msra.mxu0 %v2575
      %2584 = vmatpush.bf16.msra.mxu0 %v2571
      %2585 = vmatmul.bf16.gmra.mxu0 %v343
      %v2586 = vpop.f32.mrf.mxu0
      %v2587 = vadd.f32 0.0, %v2586
      %v2588 = vpop.f32.mrf.mxu0
      %v2589 = vadd.f32 0.0, %v2588
      %2590 = vmatmul.bf16.gmra.mxu0 %v346
      %v2591 = vpop.f32.mrf.mxu0
      %v2592 = vadd.f32 0.0, %v2591
      %v2593 = vpop.f32.mrf.mxu0
      %v2594 = vadd.f32 0.0, %v2593
      %2595 = vdwg.mxu0
      %v2596 = vsel %vm368, %v2587, %v2589
      %v2597 = vsel %vm368, %v2592, %v2594
      %v2598 = vmul.f32 %v2596, %v374
      %v2599 = vadd.f32 %v2598, %v379
      %v2600 = vmax.f32 %v2599, 0.0
      %v2602 = vrot.slane %v2600, 1
      %v2603 = vrot.slane %v2600, 2
      %2606 = vst.msk [vmem:[%s206 + $0xe] sm:$0x1] %vm388, %v2600
      %2607 = vst.msk [vmem:[%s206 + $0x1e] sm:$0x1] %vm388, %v2602
      %2608 = vst.msk [vmem:[%s206 + $0x2e] sm:$0x1] %vm388, %v2603
      %v2609 = vmul.f32 %v2597, %v374
      %v2610 = vadd.f32 %v2609, %v379
      %v2611 = vmax.f32 %v2610, 0.0
      %v2613 = vrot.slane %v2611, 1
      %v2614 = vrot.slane %v2611, 2
      %v2615 = vperm.slane %v2611, 0
      %v2616 = vperm.slane %v2613, 0
      %v2617 = vperm.slane %v2614, 0
      %2618 = vrot.lane.b32.xlu0 %v2615, 32
      %v2619 = vpop.permute.xlu0 %2618
      %2620 = vrot.lane.b32.xlu0 %v2616, 32
      %v2621 = vpop.permute.xlu0 %2620
      %2622 = vrot.lane.b32.xlu0 %v2617, 32
      %v2623 = vpop.permute.xlu0 %2622
      %2627 = vst.msk [vmem:[%s206 + $0xe] sm:$0x1] %vm410, %v2619
      %2628 = vst.msk [vmem:[%s206 + $0x1e] sm:$0x1] %vm410, %v2621
      %2629 = vst.msk [vmem:[%s206 + $0x2e] sm:$0x1] %vm410, %v2623
      %v2630 = vld [vmem:[%s197 + $0x4] sm:$0x8]
      %v2631 = vld [vmem:[%s197 + $0x10] sm:$0x8]
      %v2632 = vld [vmem:[%s197 + $0x1c] sm:$0x8]
      %v2633 = vld [vmem:[%s197 + $0x28] sm:$0x8]
      %v2634 = vld [vmem:[%s197 + $0x34] sm:$0x8]
      %v2635 = vld [vmem:[%s197 + $0x40] sm:$0x8]
      %v2636 = vld [vmem:[%s197 + $0x4c] sm:$0x8]
      %v2637 = vld [vmem:[%s197 + $0x58] sm:$0x8]
      %v2638 = vld [vmem:[%s197 + $0x8] sm:$0x1]
      %v2639 = vld [vmem:[%s197 + $0x14] sm:$0x1]
      %v2640 = vld [vmem:[%s197 + $0x20] sm:$0x1]
      %v2641 = vld [vmem:[%s197 + $0x2c] sm:$0x1]
      %v2642 = vld [vmem:[%s197 + $0x38] sm:$0x1]
      %v2643 = vld [vmem:[%s197 + $0x44] sm:$0x1]
      %v2644 = vld [vmem:[%s197 + $0x50] sm:$0x1]
      %v2645 = vld [vmem:[%s197 + $0x5c] sm:$0x1]
      %v2654 = vunpack.c.l.b16 %v2630
      %v2655 = vunpack.c.l.b16 %v2631
      %v2656 = vunpack.c.l.b16 %v2632
      %v2657 = vunpack.c.l.b16 %v2633
      %v2658 = vunpack.c.l.b16 %v2634
      %v2659 = vunpack.c.l.b16 %v2635
      %v2660 = vunpack.c.l.b16 %v2636
      %v2661 = vunpack.c.l.b16 %v2637
      %v2662 = vpack.c.b16 %v2654, %v2654
      %v2663 = vpack.c.b16 %v2655, %v2655
      %v2664 = vpack.c.b16 %v2656, %v2656
      %v2665 = vpack.c.b16 %v2657, %v2657
      %v2666 = vpack.c.b16 %v2658, %v2658
      %v2667 = vpack.c.b16 %v2659, %v2659
      %v2668 = vpack.c.b16 %v2660, %v2660
      %v2669 = vpack.c.b16 %v2661, %v2661
      %v2670 = vunpack.c.l.b16 %v2662
      %v2671 = vunpack.c.l.b16 %v2663
      %v2672 = vunpack.c.l.b16 %v2664
      %v2673 = vunpack.c.l.b16 %v2665
      %v2674 = vunpack.c.l.b16 %v2666
      %v2675 = vunpack.c.l.b16 %v2667
      %v2676 = vunpack.c.l.b16 %v2668
      %v2677 = vunpack.c.l.b16 %v2669
      %v2678 = vrot.slane %v2670, 7
      %v2679 = vrot.slane %v2671, 6
      %v2680 = vsel %vm259, %v2679, %v2678
      %v2681 = vrot.slane %v2672, 5
      %v2682 = vsel %vm262, %v2681, %v2680
      %v2683 = vrot.slane %v2673, 4
      %v2684 = vsel %vm265, %v2683, %v2682
      %v2685 = vrot.slane %v2674, 3
      %v2686 = vsel %vm268, %v2685, %v2684
      %v2687 = vrot.slane %v2675, 2
      %v2688 = vsel %vm271, %v2687, %v2686
      %v2689 = vrot.slane %v2676, 1
      %v2690 = vsel %vm274, %v2689, %v2688
      %v2691 = vsel %vm277, %v2677, %v2690
      %v2692 = vpack.c.b16 %v2691, %v2691
      %2693 = vrot.lane.b32.xlu0 %v2692, 126
      %v2694 = vpop.permute.xlu0 %2693
      %v2703 = vunpack.c.l.b16 %v2638
      %v2704 = vunpack.c.l.b16 %v2639
      %v2705 = vunpack.c.l.b16 %v2640
      %v2706 = vunpack.c.l.b16 %v2641
      %v2707 = vunpack.c.l.b16 %v2642
      %v2708 = vunpack.c.l.b16 %v2643
      %v2709 = vunpack.c.l.b16 %v2644
      %v2710 = vunpack.c.l.b16 %v2645
      %v2711 = vpack.c.b16 %v2703, %v2703
      %v2712 = vpack.c.b16 %v2704, %v2704
      %v2713 = vpack.c.b16 %v2705, %v2705
      %v2714 = vpack.c.b16 %v2706, %v2706
      %v2715 = vpack.c.b16 %v2707, %v2707
      %v2716 = vpack.c.b16 %v2708, %v2708
      %v2717 = vpack.c.b16 %v2709, %v2709
      %v2718 = vpack.c.b16 %v2710, %v2710
      %v2719 = vunpack.c.l.b16 %v2711
      %v2720 = vunpack.c.l.b16 %v2712
      %v2721 = vunpack.c.l.b16 %v2713
      %v2722 = vunpack.c.l.b16 %v2714
      %v2723 = vunpack.c.l.b16 %v2715
      %v2724 = vunpack.c.l.b16 %v2716
      %v2725 = vunpack.c.l.b16 %v2717
      %v2726 = vunpack.c.l.b16 %v2718
      %v2727 = vrot.slane %v2720, 7
      %v2728 = vsel %vm259, %v2727, %v2719
      %v2729 = vrot.slane %v2721, 6
      %v2730 = vsel %vm262, %v2729, %v2728
      %v2731 = vrot.slane %v2722, 5
      %v2732 = vsel %vm265, %v2731, %v2730
      %v2733 = vrot.slane %v2723, 4
      %v2734 = vsel %vm268, %v2733, %v2732
      %v2735 = vrot.slane %v2724, 3
      %v2736 = vsel %vm271, %v2735, %v2734
      %v2737 = vrot.slane %v2725, 2
      %v2738 = vsel %vm274, %v2737, %v2736
      %v2739 = vrot.slane %v2726, 1
      %v2740 = vsel %vm277, %v2739, %v2738
      %v2741 = vpack.c.b16 %v2740, %v2740
      %v2742 = vunpack.c.h.b16 %v2711
      %v2743 = vunpack.c.h.b16 %v2712
      %v2744 = vunpack.c.h.b16 %v2713
      %v2745 = vunpack.c.h.b16 %v2714
      %v2746 = vunpack.c.h.b16 %v2715
      %v2747 = vunpack.c.h.b16 %v2716
      %v2748 = vunpack.c.h.b16 %v2717
      %v2749 = vunpack.c.h.b16 %v2718
      %v2750 = vrot.slane %v2743, 7
      %v2751 = vsel %vm259, %v2750, %v2742
      %v2752 = vrot.slane %v2744, 6
      %v2753 = vsel %vm262, %v2752, %v2751
      %v2754 = vrot.slane %v2745, 5
      %v2755 = vsel %vm265, %v2754, %v2753
      %v2756 = vrot.slane %v2746, 4
      %v2757 = vsel %vm268, %v2756, %v2755
      %v2758 = vrot.slane %v2747, 3
      %v2759 = vsel %vm271, %v2758, %v2757
      %v2760 = vrot.slane %v2748, 2
      %v2761 = vsel %vm274, %v2760, %v2759
      %v2762 = vrot.slane %v2749, 1
      %v2763 = vsel %vm277, %v2762, %v2761
      %v2764 = vpack.c.b16 %v2763, %v2763
      %2765 = vrot.lane.b32.xlu0 %v2764, 126
      %v2766 = vpop.permute.xlu0 %2765
      %v2769 = vsel %vm322, %v2692, %v2694
      %v2773 = vsel %vm322, %v2741, %v2766
      %2775 = vmatpush.bf16.msra.mxu0 0
      %2776 = vmatpush.bf16.msra.mxu0 0
      %2777 = vmatpush.bf16.msra.mxu0 0
      %2778 = vmatpush.bf16.msra.mxu0 0
      %2779 = vmatpush.bf16.msra.mxu0 0
      %2780 = vmatpush.bf16.msra.mxu0 0
      %2781 = vmatpush.bf16.msra.mxu0 %v2773
      %2782 = vmatpush.bf16.msra.mxu0 %v2769
      %2783 = vmatmul.bf16.gmra.mxu0 %v343
      %v2784 = vpop.f32.mrf.mxu0
      %v2785 = vadd.f32 0.0, %v2784
      %v2786 = vpop.f32.mrf.mxu0
      %v2787 = vadd.f32 0.0, %v2786
      %2788 = vmatmul.bf16.gmra.mxu0 %v346
      %v2789 = vpop.f32.mrf.mxu0
      %v2790 = vadd.f32 0.0, %v2789
      %v2791 = vpop.f32.mrf.mxu0
      %v2792 = vadd.f32 0.0, %v2791
      %2793 = vdwg.mxu0
      %v2794 = vsel %vm368, %v2785, %v2787
      %v2795 = vsel %vm368, %v2790, %v2792
      %v2796 = vmul.f32 %v2794, %v374
      %v2797 = vadd.f32 %v2796, %v379
      %v2798 = vmax.f32 %v2797, 0.0
      %v2800 = vrot.slane %v2798, 1
      %v2801 = vrot.slane %v2798, 2
      %2804 = vst.msk [vmem:[%s206 + $0xf] sm:$0x1] %vm388, %v2798
      %2805 = vst.msk [vmem:[%s206 + $0x1f] sm:$0x1] %vm388, %v2800
      %2806 = vst.msk [vmem:[%s206 + $0x2f] sm:$0x1] %vm388, %v2801
      %v2807 = vmul.f32 %v2795, %v374
      %v2808 = vadd.f32 %v2807, %v379
      %v2809 = vmax.f32 %v2808, 0.0
      %v2811 = vrot.slane %v2809, 1
      %v2812 = vrot.slane %v2809, 2
      %v2813 = vperm.slane %v2809, 0
      %v2814 = vperm.slane %v2811, 0
      %v2815 = vperm.slane %v2812, 0
      %2816 = vrot.lane.b32.xlu0 %v2813, 32
      %v2817 = vpop.permute.xlu0 %2816
      %2818 = vrot.lane.b32.xlu0 %v2814, 32
      %v2819 = vpop.permute.xlu0 %2818
      %2820 = vrot.lane.b32.xlu0 %v2815, 32
      %v2821 = vpop.permute.xlu0 %2820
      %2825 = vst.msk [vmem:[%s206 + $0xf] sm:$0x1] %vm410, %v2817
      %2826 = vst.msk [vmem:[%s206 + $0x1f] sm:$0x1] %vm410, %v2819
      %2827 = vst.msk [vmem:[%s206 + $0x2f] sm:$0x1] %vm410, %v2821
      %s2828 = smul.u32 2, %s19
      %p2829 = scmp.lt.s32.totalorder %s18, 1
      %s2830 = scalar_select %p2829, %s18, 1
      %p2831 = scmp.lt.s32.totalorder %s2828, 1
      %s2832 = scalar_select %p2831, %s2828, 1
      %s2833 = smul.addr %s2830, 6
      %s2834 = sadd.s32 %s2832, %s2833
      %s2835 = smul.addr %s2834, 8
      %s2836 = scalar_lea.vmem %s3, %s2835
      // Predicated region
      $region33: #{convtr_pallas.1} parent=31 // pred_check
        %p2837 = pneg %p116
      $region34: #{convtr_pallas.1} parent=31 // pred_check_branch
        %2839 = sbr.rel (%p2837) target = $region36
      $region35: #{convtr_pallas.1} parent=31 // pred_region
        %s2840 = smul.u32 2, %s19
      $region36: #{convtr_pallas.1} parent=31 // pred_fallthru
        _
    $region32: #{convtr_pallas.1} parent=5 // pred_fallthru
      _
    %p2841 = scmp.le.s32.totalorder 2, %s9
    // Predicated region
    $region37: #{convtr_pallas.1} parent=5 // pred_check
      %p2842 = pneg %p2841
    $region38: #{convtr_pallas.1} parent=5 // pred_check_branch
      %2844 = sbr.rel (%p2842) target = $region40
    $region39: #{convtr_pallas.1} parent=5 // pred_region
      %s2845 = ssub.s32 %s9, 2
      // Predicated region
      $region41: #{convtr_pallas.1} parent=39 // pred_check
        %p2846 = pneg %p122
      $region42: #{convtr_pallas.1} parent=39 // pred_check_branch
        %2848 = sbr.rel (%p2846) target = $region44
      $region43: #{convtr_pallas.1} parent=39 // pred_region
        %s2849 = smul.u32 2, %s21
        %p2850 = scmp.lt.s32.totalorder %s20, 1
        %s2851 = scalar_select %p2850, %s20, 1
        %p2852 = scmp.lt.s32.totalorder %s2849, 1
        %s2853 = scalar_select %p2852, %s2849, 1
        %s2854 = smul.addr %s2851, 6
        %s2855 = sadd.s32 %s2853, %s2854
        %s2856 = smul.addr %s2855, 8
        %s2857 = scalar_lea.vmem %s3, %s2856
      $region44: #{convtr_pallas.1} parent=39 // pred_fallthru
        _
    $region40: #{convtr_pallas.1} parent=5 // pred_fallthru
      _
  $region6: #{convtr_pallas.1} parent=0 // loop_footer
    %s13 = sadd.s32 1, %s9
  $region7: #{convtr_pallas.1} parent=0 // loop_footer_branch
    %8 = sbr.rel target = $region3
  $region8: #{convtr_pallas.1} parent=0 // loop_exit
    _

</llo_original>
